<compile_context>
chip_gen: v6e
topology: v6e:2x2x1
jax: 0.10.0
libtpu: 0.0.40
codegen_flags: <defaults>
</compile_context>

<pallas_src>
import math
import jax
import jax.numpy as jnp
from jax.experimental import pallas as pl
from jax.experimental.pallas import tpu as pltpu


# ----------------------------- in-kernel helpers -----------------------------

def _layer_norm(v, gamma, beta, eps=1e-5):
    mu = jnp.mean(v, axis=-1, keepdims=True)
    var = jnp.mean((v - mu) ** 2, axis=-1, keepdims=True)
    return (v - mu) * jax.lax.rsqrt(var + eps) * gamma + beta


def _mm(a_f32, w_bf16):
    """bf16-operand matmul with f32 MXU accumulation."""
    return jnp.dot(a_f32.astype(jnp.bfloat16), w_bf16,
                   preferred_element_type=jnp.float32)


def _mha(q, k, v, bb, tq, tk, num_heads):
    """Multi-head attention core for `bb` folded batches.

    q: (bb*tq, D), k/v: (bb*tk, D) f32; 1/sqrt(d_k) already folded into q's
    projection.  All (batch, head) score matmuls are issued first (contraction
    over d_k only) and stacked along sublanes; ONE softmax pass runs over the
    stacked (bb*H*tq, tk) tensor; then all PV matmuls run, with each head's
    output re-assembled into its lane slice of a (bb*tq, D) context so the
    caller can do a single output-projection matmul.
    """
    d_model = q.shape[-1]
    d_k = d_model // num_heads
    qb = q.astype(jnp.bfloat16)
    kb = k.astype(jnp.bfloat16)
    vb = v.astype(jnp.bfloat16)

    # 1) all score matmuls, stacked along sublanes
    s_parts = []
    for b in range(bb):                                  # static, tiny counts
        qs = qb[b * tq:(b + 1) * tq]
        ks = kb[b * tk:(b + 1) * tk]
        for h in range(num_heads):
            lo = h * d_k
            s_parts.append(jax.lax.dot_general(
                qs[:, lo:lo + d_k], ks[:, lo:lo + d_k],
                (((1,), (1,)), ((), ())),
                preferred_element_type=jnp.float32))      # (tq, tk)
    s = jnp.concatenate(s_parts, axis=0)                  # (bb*H*tq, tk)

    # 2) one softmax pass over all (batch, head) rows
    s = s - jnp.max(s, axis=-1, keepdims=True)
    e = jnp.exp(s)
    p = (e * pl.reciprocal(jnp.sum(e, axis=-1, keepdims=True), approx=True)
         ).astype(jnp.bfloat16)

    # 3) all PV matmuls; heads re-assembled along lanes (the "concat")
    rows = []
    for b in range(bb):
        vs = vb[b * tk:(b + 1) * tk]
        heads = []
        for h in range(num_heads):
            r0 = (b * num_heads + h) * tq
            heads.append(jnp.dot(p[r0:r0 + tq], vs[:, h * d_k:(h + 1) * d_k],
                                 preferred_element_type=jnp.float32))
        rows.append(jnp.concatenate(heads, axis=-1))       # (tq, D)
    return jnp.concatenate(rows, axis=0)                   # (bb*tq, D)


# --------------------------------- kernel ------------------------------------

def make_decoder_layer_kernel(num_heads, bb, t_dec, t_enc):
    def kernel(x_ref, enc_ref,
               wqkv_s, wo_s, wq_c, wkv_c, wo_c, w1, w2,   # bf16 weights
               bias_ref, b1_ref,                          # f32 bias/LN slabs
               out_ref):
        x = x_ref[...]                     # (bb*T, D) f32
        enc = enc_ref[...]                 # (bb*S, D) f32
        d_model = x.shape[-1]

        bias = bias_ref[...]               # (15, D) f32
        b_q_s, b_k_s, b_v_s, b_o_s = bias[0:1], bias[1:2], bias[2:3], bias[3:4]
        b_q_c, b_k_c, b_v_c, b_o_c = bias[4:5], bias[5:6], bias[6:7], bias[7:8]
        b2 = bias[8:9]
        g1, be1 = bias[9:10], bias[10:11]
        g2, be2 = bias[11:12], bias[12:13]
        g3, be3 = bias[13:14], bias[14:15]
        b1 = b1_ref[...]                   # (1, F)

        # 1) self-attention (fused QKV projection) + residual + LayerNorm
        qkv = _mm(x, wqkv_s[...])                              # (bb*T, 3D)
        q = qkv[:, :d_model] + b_q_s       # 1/sqrt(d_k) folded into W_Q / b_Q
        k = qkv[:, d_model:2 * d_model] + b_k_s
        v = qkv[:, 2 * d_model:] + b_v_s
        ctx1 = _mha(q, k, v, bb, t_dec, t_dec, num_heads)
        attn1 = _mm(ctx1, wo_s[...]) + b_o_s                   # single W_out
        out1 = _layer_norm(x + attn1, g1, be1)

        # 2) cross-attention over encoder output (fused KV projection) + LN
        qc = _mm(out1, wq_c[...]) + b_q_c
        kv = _mm(enc, wkv_c[...])                              # (bb*S, 2D)
        kc = kv[:, :d_model] + b_k_c
        vc = kv[:, d_model:] + b_v_c
        ctx2 = _mha(qc, kc, vc, bb, t_dec, t_enc, num_heads)
        attn2 = _mm(ctx2, wo_c[...]) + b_o_c
        out2 = _layer_norm(out1 + attn2, g2, be2)

        # 3) position-wise FFN (Linear -> ReLU -> Linear) + residual + LN
        hdn = jnp.maximum(_mm(out2, w1[...]) + b1, 0.0)
        ff = _mm(hdn, w2[...]) + b2
        out3 = _layer_norm(out2 + ff, g3, be3)

        out_ref[...] = out3.astype(out_ref.dtype)
    return kernel


# --------------------------------- packing -----------------------------------

def pack_decoder_params(raw, num_heads, weight_dtype=jnp.bfloat16):
    """Fuse QKV/KV weights, fold 1/sqrt(d_k) into Q, pack small params.

    `raw` is the PyTorch-style unfused list: weights pre-transposed to
    (in_features, out_features), biases / LN params as (1, out_features).
    Returns (weights_list_bf16, bias_slab_f32[(15, D)], b1_f32[(1, F)]).
    """
    (sqw, sqb, skw, skb, svw, svb, sow, sob,
     cqw, cqb, ckw, ckb, cvw, cvb, cow, cob,
     w1, b1, w2, b2, g1, be1, g2, be2, g3, be3) = raw
    d_model = sqw.shape[0]
    scale = 1.0 / math.sqrt(d_model // num_heads)

    wqkv_s = jnp.concatenate([sqw * scale, skw, svw], axis=1).astype(weight_dtype)
    wkv_c = jnp.concatenate([ckw, cvw], axis=1).astype(weight_dtype)
    weights = [
        wqkv_s,
        sow.astype(weight_dtype),
        (cqw * scale).astype(weight_dtype),
        wkv_c,
        cow.astype(weight_dtype),
        w1.astype(weight_dtype),
        w2.astype(weight_dtype),
    ]
    bias_slab = jnp.concatenate(
        [sqb * scale, skb, svb, sob,
         cqb * scale, ckb, cvb, cob,
         b2, g1, be1, g2, be2, g3, be3], axis=0).astype(jnp.float32)   # (15, D)
    return weights, bias_slab, b1.astype(jnp.float32)


# --------------------------------- wrapper -----------------------------------

def transformer_decoder_layer(x, enc, packed, num_heads, batch_block=None):
    weights, bias_slab, b1 = packed
    B, T, D = x.shape
    S = enc.shape[1]
    F = weights[5].shape[1]              # w1: (D, F)
    assert D % num_heads == 0
    bb = B if batch_block is None else batch_block
    assert B % bb == 0

    # Fold batch rows into the MXU M dimension (host-side reshape is free).
    x2 = x.reshape(B * T, D)
    enc2 = enc.reshape(B * S, D)

    kernel = make_decoder_layer_kernel(num_heads, bb, T, S)

    in_specs = (
        [pl.BlockSpec((bb * T, D), lambda i: (i, 0)),
         pl.BlockSpec((bb * S, D), lambda i: (i, 0))]
        # weights / bias slabs: full-array blocks with constant index maps so
        # they stay resident across grid steps (no refetch).
        + [pl.BlockSpec(w.shape, lambda i: (0, 0)) for w in weights]
        + [pl.BlockSpec(bias_slab.shape, lambda i: (0, 0)),
           pl.BlockSpec(b1.shape, lambda i: (0, 0))]
    )

    flops = 2 * B * (
        T * D * 3 * D          # fused self QKV projection
        + 2 * T * T * D        # self scores + PV (summed over heads)
        + T * D * D            # self output projection
        + T * D * D            # cross Q projection
        + S * D * 2 * D        # fused cross KV projection
        + 2 * T * S * D        # cross scores + PV
        + T * D * D            # cross output projection
        + 2 * T * D * F        # FFN
    )
    transcendentals = B * (num_heads * T * (T + S) + 3 * T)
    bytes_accessed = int(
        (x.size + enc.size + B * T * D) * 4
        + sum(int(w.size) * w.dtype.itemsize for w in weights)
        + bias_slab.size * 4 + b1.size * 4)

    out2d = pl.pallas_call(
        kernel,
        out_shape=jax.ShapeDtypeStruct((B * T, D), jnp.float32),
        grid=(B // bb,),
        in_specs=in_specs,
        out_specs=pl.BlockSpec((bb * T, D), lambda i: (i, 0)),
        compiler_params=pltpu.CompilerParams(
            dimension_semantics=("parallel",),
            vmem_limit_bytes=32 * 1024 * 1024),
        cost_estimate=pl.CostEstimate(
            flops=int(flops), transcendentals=int(transcendentals),
            bytes_accessed=bytes_accessed),
    )(x2, enc2, *weights, bias_slab, b1)
    return out2d.reshape(B, T, D)


# --------------------------- pure-JAX reference -------------------------------
# Mirrors the kernel's precision policy (bf16 matmul operands, f32 accumulation,
# f32 LayerNorm/softmax, scale folded into W_Q) so the check is tight.

def _ref_mha(q_in, k_in, v_in, wq, bq, wk, bk, wv, bv, wo, bo, num_heads):
    f32, bf16 = jnp.float32, jnp.bfloat16

    def mm(a, w):
        return jnp.dot(a.astype(bf16), w.astype(bf16), preferred_element_type=f32)

    B, Tq, D = q_in.shape
    Tk = k_in.shape[1]
    dk = D // num_heads
    scale = 1.0 / math.sqrt(dk)
    Q = mm(q_in, wq * scale) + bq * scale
    K = mm(k_in, wk) + bk
    V = mm(v_in, wv) + bv
    Qh = Q.reshape(B, Tq, num_heads, dk).transpose(0, 2, 1, 3)
    Kh = K.reshape(B, Tk, num_heads, dk).transpose(0, 2, 1, 3)
    Vh = V.reshape(B, Tk, num_heads, dk).transpose(0, 2, 1, 3)
    s = jnp.einsum('bhqd,bhkd->bhqk', Qh.astype(bf16), Kh.astype(bf16),
                   preferred_element_type=f32)
    p = jax.nn.softmax(s, axis=-1)
    o = jnp.einsum('bhqk,bhkd->bhqd', p.astype(bf16), Vh.astype(bf16),
                   preferred_element_type=f32)
    o = o.transpose(0, 2, 1, 3).reshape(B, Tq, D)
    return mm(o, wo) + bo


def _ref_decoder_layer(x, enc, raw, num_heads):
    (sqw, sqb, skw, skb, svw, svb, sow, sob,
     cqw, cqb, ckw, ckb, cvw, cvb, cow, cob,
     w1, b1, w2, b2, g1, be1, g2, be2, g3, be3) = raw

    def ln(v, g, b):
        mu = v.mean(-1, keepdims=True)
        var = ((v - mu) ** 2).mean(-1, keepdims=True)
        return (v - mu) / jnp.sqrt(var + 1e-5) * g + b

    def mm(a, w):
        return jnp.dot(a.astype(jnp.bfloat16), w.astype(jnp.bfloat16),
                       preferred_element_type=jnp.float32)

    a1 = _ref_mha(x, x, x, sqw, sqb, skw, skb, svw, svb, sow, sob, num_heads)
    o1 = ln(x + a1, g1, be1)
    a2 = _ref_mha(o1, enc, enc, cqw, cqb, ckw, ckb, cvw, cvb, cow, cob, num_heads)
    o2 = ln(o1 + a2, g2, be2)
    ff = mm(jax.nn.relu(mm(o2, w1) + b1), w2) + b2
    return ln(o2 + ff, g3, be3)


# ----------------------------------- main -------------------------------------

if __name__ == "__main__":
    # Small but lane-dense shapes: d_model / d_ff are multiples of 128.
    B, T, S, D, H, F = 2, 16, 16, 128, 4, 256

    root = jax.random.PRNGKey(0)
    k_params, k_x, k_enc = jax.random.split(root, 3)

    def init_linear(k, din, dout):
        k1, k2 = jax.random.split(k)
        bound = 1.0 / math.sqrt(din)
        w = jax.random.uniform(k1, (din, dout), jnp.float32, -bound, bound)
        b = jax.random.uniform(k2, (1, dout), jnp.float32, -bound, bound)
        return w, b

    ks = jax.random.split(k_params, 10)
    raw = []
    for i in range(8):      # self-attn WQ,WK,WV,Wout then cross-attn WQ,WK,WV,Wout
        w, b = init_linear(ks[i], D, D)
        raw += [w, b]
    w1, b1 = init_linear(ks[8], D, F)
    w2, b2 = init_linear(ks[9], F, D)
    raw += [w1, b1, w2, b2]
    for _ in range(3):      # LayerNorm gamma/beta (PyTorch default init)
        raw += [jnp.ones((1, D), jnp.float32), jnp.zeros((1, D), jnp.float32)]

    x = jax.random.normal(k_x, (B, T, D), jnp.float32)
    enc = jax.random.normal(k_enc, (B, S, D), jnp.float32)

    packed = pack_decoder_params(raw, H)
    out = transformer_decoder_layer(x, enc, packed, H)
    out = jax.block_until_ready(out)

    ref = _ref_decoder_layer(x, enc, raw, H)
    assert out.shape == (B, T, D)
    max_err = float(jnp.max(jnp.abs(out - ref)))
    assert bool(jnp.allclose(out, ref, atol=2e-2, rtol=2e-2)), max_err
    print("KERNEL_OK")
</pallas_src>

<mosaic_0001>
module attributes {stable_mosaic.version = 11 : i64} {
  func.func @kernel(%arg0: i32, %arg1: memref<32x128xf32, #tpu.memory_space<vmem>>, %arg2: memref<32x128xf32, #tpu.memory_space<vmem>>, %arg3: memref<128x384xbf16, #tpu.memory_space<vmem>>, %arg4: memref<128x128xbf16, #tpu.memory_space<vmem>>, %arg5: memref<128x128xbf16, #tpu.memory_space<vmem>>, %arg6: memref<128x256xbf16, #tpu.memory_space<vmem>>, %arg7: memref<128x128xbf16, #tpu.memory_space<vmem>>, %arg8: memref<128x256xbf16, #tpu.memory_space<vmem>>, %arg9: memref<256x128xbf16, #tpu.memory_space<vmem>>, %arg10: memref<15x128xf32, #tpu.memory_space<vmem>>, %arg11: memref<1x256xf32, #tpu.memory_space<vmem>>, %arg12: memref<32x128xf32, #tpu.memory_space<vmem>>) attributes {dimension_semantics = [#tpu.dimension_semantics<parallel>], iteration_bounds = array<i64: 1>, scalar_prefetch = 0 : i64, scratch_operands = 0 : i64, tpu.core_type = #tpu.core_type<tc>, window_params = [{transform_indices = @transform_0, window_bounds = array<i64: 32, 128>}, {transform_indices = @transform_1, window_bounds = array<i64: 32, 128>}, {pipeline_mode = #tpu.pipeline_mode<synchronous>, transform_indices = @transform_2, window_bounds = array<i64: 128, 384>}, {pipeline_mode = #tpu.pipeline_mode<synchronous>, transform_indices = @transform_3, window_bounds = array<i64: 128, 128>}, {pipeline_mode = #tpu.pipeline_mode<synchronous>, transform_indices = @transform_4, window_bounds = array<i64: 128, 128>}, {pipeline_mode = #tpu.pipeline_mode<synchronous>, transform_indices = @transform_5, window_bounds = array<i64: 128, 256>}, {pipeline_mode = #tpu.pipeline_mode<synchronous>, transform_indices = @transform_6, window_bounds = array<i64: 128, 128>}, {pipeline_mode = #tpu.pipeline_mode<synchronous>, transform_indices = @transform_7, window_bounds = array<i64: 128, 256>}, {pipeline_mode = #tpu.pipeline_mode<synchronous>, transform_indices = @transform_8, window_bounds = array<i64: 256, 128>}, {pipeline_mode = #tpu.pipeline_mode<synchronous>, transform_indices = @transform_9, window_bounds = array<i64: 15, 128>}, {pipeline_mode = #tpu.pipeline_mode<synchronous>, transform_indices = @transform_10, window_bounds = array<i64: 1, 256>}, {transform_indices = @transform_11, window_bounds = array<i64: 32, 128>}]} {
    %c0 = arith.constant 0 : index
    %c0_0 = arith.constant 0 : index
    %0 = vector.load %arg1[%c0, %c0_0] : memref<32x128xf32, #tpu.memory_space<vmem>>, vector<32x128xf32>
    %c0_1 = arith.constant 0 : index
    %c0_2 = arith.constant 0 : index
    %1 = vector.load %arg2[%c0_1, %c0_2] : memref<32x128xf32, #tpu.memory_space<vmem>>, vector<32x128xf32>
    %c0_3 = arith.constant 0 : index
    %c0_4 = arith.constant 0 : index
    %2 = vector.load %arg10[%c0_3, %c0_4] : memref<15x128xf32, #tpu.memory_space<vmem>>, vector<15x128xf32>
    %3 = vector.extract_strided_slice %2 {offsets = [0, 0], sizes = [1, 128], strides = [1, 1]} : vector<15x128xf32> to vector<1x128xf32>
    %4 = vector.extract_strided_slice %2 {offsets = [1, 0], sizes = [1, 128], strides = [1, 1]} : vector<15x128xf32> to vector<1x128xf32>
    %5 = vector.extract_strided_slice %2 {offsets = [2, 0], sizes = [1, 128], strides = [1, 1]} : vector<15x128xf32> to vector<1x128xf32>
    %6 = vector.extract_strided_slice %2 {offsets = [3, 0], sizes = [1, 128], strides = [1, 1]} : vector<15x128xf32> to vector<1x128xf32>
    %7 = vector.extract_strided_slice %2 {offsets = [4, 0], sizes = [1, 128], strides = [1, 1]} : vector<15x128xf32> to vector<1x128xf32>
    %8 = vector.extract_strided_slice %2 {offsets = [5, 0], sizes = [1, 128], strides = [1, 1]} : vector<15x128xf32> to vector<1x128xf32>
    %9 = vector.extract_strided_slice %2 {offsets = [6, 0], sizes = [1, 128], strides = [1, 1]} : vector<15x128xf32> to vector<1x128xf32>
    %10 = vector.extract_strided_slice %2 {offsets = [7, 0], sizes = [1, 128], strides = [1, 1]} : vector<15x128xf32> to vector<1x128xf32>
    %11 = vector.extract_strided_slice %2 {offsets = [8, 0], sizes = [1, 128], strides = [1, 1]} : vector<15x128xf32> to vector<1x128xf32>
    %12 = vector.extract_strided_slice %2 {offsets = [9, 0], sizes = [1, 128], strides = [1, 1]} : vector<15x128xf32> to vector<1x128xf32>
    %13 = vector.extract_strided_slice %2 {offsets = [10, 0], sizes = [1, 128], strides = [1, 1]} : vector<15x128xf32> to vector<1x128xf32>
    %14 = vector.extract_strided_slice %2 {offsets = [11, 0], sizes = [1, 128], strides = [1, 1]} : vector<15x128xf32> to vector<1x128xf32>
    %15 = vector.extract_strided_slice %2 {offsets = [12, 0], sizes = [1, 128], strides = [1, 1]} : vector<15x128xf32> to vector<1x128xf32>
    %16 = vector.extract_strided_slice %2 {offsets = [13, 0], sizes = [1, 128], strides = [1, 1]} : vector<15x128xf32> to vector<1x128xf32>
    %17 = vector.extract_strided_slice %2 {offsets = [14, 0], sizes = [1, 128], strides = [1, 1]} : vector<15x128xf32> to vector<1x128xf32>
    %c0_5 = arith.constant 0 : index
    %c0_6 = arith.constant 0 : index
    %18 = vector.load %arg11[%c0_5, %c0_6] : memref<1x256xf32, #tpu.memory_space<vmem>>, vector<1x256xf32>
    %c0_7 = arith.constant 0 : index
    %c0_8 = arith.constant 0 : index
    %19 = vector.load %arg3[%c0_7, %c0_8] : memref<128x384xbf16, #tpu.memory_space<vmem>>, vector<128x384xbf16>
    %20 = arith.truncf %0 : vector<32x128xf32> to vector<32x128xbf16>
    %cst = arith.constant dense<0.000000e+00> : vector<32x384xf32>
    %21 = tpu.matmul %20, %19, %cst {dimension_numbers = #tpu.dot_dimension_numbers<[1], [0], [0], [1], [0, 0, 1, 1], [], []>} : vector<32x128xbf16>, vector<128x384xbf16>, vector<32x384xf32> -> vector<32x384xf32>
    %22 = vector.extract_strided_slice %21 {offsets = [0, 0], sizes = [32, 128], strides = [1, 1]} : vector<32x384xf32> to vector<32x128xf32>
    %23 = vector.broadcast %3 : vector<1x128xf32> to vector<32x128xf32>
    %24 = arith.addf %22, %23 : vector<32x128xf32>
    %25 = vector.extract_strided_slice %21 {offsets = [0, 128], sizes = [32, 128], strides = [1, 1]} : vector<32x384xf32> to vector<32x128xf32>
    %26 = vector.broadcast %4 : vector<1x128xf32> to vector<32x128xf32>
    %27 = arith.addf %25, %26 : vector<32x128xf32>
    %28 = vector.extract_strided_slice %21 {offsets = [0, 256], sizes = [32, 128], strides = [1, 1]} : vector<32x384xf32> to vector<32x128xf32>
    %29 = vector.broadcast %5 : vector<1x128xf32> to vector<32x128xf32>
    %30 = arith.addf %28, %29 : vector<32x128xf32>
    %31 = arith.truncf %24 : vector<32x128xf32> to vector<32x128xbf16>
    %32 = arith.truncf %27 : vector<32x128xf32> to vector<32x128xbf16>
    %33 = arith.truncf %30 : vector<32x128xf32> to vector<32x128xbf16>
    %34 = vector.extract_strided_slice %31 {offsets = [0, 0], sizes = [16, 128], strides = [1, 1]} : vector<32x128xbf16> to vector<16x128xbf16>
    %35 = vector.extract_strided_slice %32 {offsets = [0, 0], sizes = [16, 128], strides = [1, 1]} : vector<32x128xbf16> to vector<16x128xbf16>
    %36 = vector.extract_strided_slice %34 {offsets = [0, 0], sizes = [16, 32], strides = [1, 1]} : vector<16x128xbf16> to vector<16x32xbf16>
    %37 = vector.extract_strided_slice %35 {offsets = [0, 0], sizes = [16, 32], strides = [1, 1]} : vector<16x128xbf16> to vector<16x32xbf16>
    %cst_9 = arith.constant dense<0.000000e+00> : vector<16x16xf32>
    %38 = tpu.matmul %36, %37, %cst_9 {dimension_numbers = #tpu.dot_dimension_numbers<[1], [1], [0], [0], [0, 0, 1, 0], [], []>} : vector<16x32xbf16>, vector<16x32xbf16>, vector<16x16xf32> -> vector<16x16xf32>
    %39 = vector.extract_strided_slice %34 {offsets = [0, 32], sizes = [16, 32], strides = [1, 1]} : vector<16x128xbf16> to vector<16x32xbf16>
    %40 = vector.extract_strided_slice %35 {offsets = [0, 32], sizes = [16, 32], strides = [1, 1]} : vector<16x128xbf16> to vector<16x32xbf16>
    %cst_10 = arith.constant dense<0.000000e+00> : vector<16x16xf32>
    %41 = tpu.matmul %39, %40, %cst_10 {dimension_numbers = #tpu.dot_dimension_numbers<[1], [1], [0], [0], [0, 0, 1, 0], [], []>} : vector<16x32xbf16>, vector<16x32xbf16>, vector<16x16xf32> -> vector<16x16xf32>
    %42 = vector.extract_strided_slice %34 {offsets = [0, 64], sizes = [16, 32], strides = [1, 1]} : vector<16x128xbf16> to vector<16x32xbf16>
    %43 = vector.extract_strided_slice %35 {offsets = [0, 64], sizes = [16, 32], strides = [1, 1]} : vector<16x128xbf16> to vector<16x32xbf16>
    %cst_11 = arith.constant dense<0.000000e+00> : vector<16x16xf32>
    %44 = tpu.matmul %42, %43, %cst_11 {dimension_numbers = #tpu.dot_dimension_numbers<[1], [1], [0], [0], [0, 0, 1, 0], [], []>} : vector<16x32xbf16>, vector<16x32xbf16>, vector<16x16xf32> -> vector<16x16xf32>
    %45 = vector.extract_strided_slice %34 {offsets = [0, 96], sizes = [16, 32], strides = [1, 1]} : vector<16x128xbf16> to vector<16x32xbf16>
    %46 = vector.extract_strided_slice %35 {offsets = [0, 96], sizes = [16, 32], strides = [1, 1]} : vector<16x128xbf16> to vector<16x32xbf16>
    %cst_12 = arith.constant dense<0.000000e+00> : vector<16x16xf32>
    %47 = tpu.matmul %45, %46, %cst_12 {dimension_numbers = #tpu.dot_dimension_numbers<[1], [1], [0], [0], [0, 0, 1, 0], [], []>} : vector<16x32xbf16>, vector<16x32xbf16>, vector<16x16xf32> -> vector<16x16xf32>
    %48 = vector.extract_strided_slice %31 {offsets = [16, 0], sizes = [16, 128], strides = [1, 1]} : vector<32x128xbf16> to vector<16x128xbf16>
    %49 = vector.extract_strided_slice %32 {offsets = [16, 0], sizes = [16, 128], strides = [1, 1]} : vector<32x128xbf16> to vector<16x128xbf16>
    %50 = vector.extract_strided_slice %48 {offsets = [0, 0], sizes = [16, 32], strides = [1, 1]} : vector<16x128xbf16> to vector<16x32xbf16>
    %51 = vector.extract_strided_slice %49 {offsets = [0, 0], sizes = [16, 32], strides = [1, 1]} : vector<16x128xbf16> to vector<16x32xbf16>
    %cst_13 = arith.constant dense<0.000000e+00> : vector<16x16xf32>
    %52 = tpu.matmul %50, %51, %cst_13 {dimension_numbers = #tpu.dot_dimension_numbers<[1], [1], [0], [0], [0, 0, 1, 0], [], []>} : vector<16x32xbf16>, vector<16x32xbf16>, vector<16x16xf32> -> vector<16x16xf32>
    %53 = vector.extract_strided_slice %48 {offsets = [0, 32], sizes = [16, 32], strides = [1, 1]} : vector<16x128xbf16> to vector<16x32xbf16>
    %54 = vector.extract_strided_slice %49 {offsets = [0, 32], sizes = [16, 32], strides = [1, 1]} : vector<16x128xbf16> to vector<16x32xbf16>
    %cst_14 = arith.constant dense<0.000000e+00> : vector<16x16xf32>
    %55 = tpu.matmul %53, %54, %cst_14 {dimension_numbers = #tpu.dot_dimension_numbers<[1], [1], [0], [0], [0, 0, 1, 0], [], []>} : vector<16x32xbf16>, vector<16x32xbf16>, vector<16x16xf32> -> vector<16x16xf32>
    %56 = vector.extract_strided_slice %48 {offsets = [0, 64], sizes = [16, 32], strides = [1, 1]} : vector<16x128xbf16> to vector<16x32xbf16>
    %57 = vector.extract_strided_slice %49 {offsets = [0, 64], sizes = [16, 32], strides = [1, 1]} : vector<16x128xbf16> to vector<16x32xbf16>
    %cst_15 = arith.constant dense<0.000000e+00> : vector<16x16xf32>
    %58 = tpu.matmul %56, %57, %cst_15 {dimension_numbers = #tpu.dot_dimension_numbers<[1], [1], [0], [0], [0, 0, 1, 0], [], []>} : vector<16x32xbf16>, vector<16x32xbf16>, vector<16x16xf32> -> vector<16x16xf32>
    %59 = vector.extract_strided_slice %48 {offsets = [0, 96], sizes = [16, 32], strides = [1, 1]} : vector<16x128xbf16> to vector<16x32xbf16>
    %60 = vector.extract_strided_slice %49 {offsets = [0, 96], sizes = [16, 32], strides = [1, 1]} : vector<16x128xbf16> to vector<16x32xbf16>
    %cst_16 = arith.constant dense<0.000000e+00> : vector<16x16xf32>
    %61 = tpu.matmul %59, %60, %cst_16 {dimension_numbers = #tpu.dot_dimension_numbers<[1], [1], [0], [0], [0, 0, 1, 0], [], []>} : vector<16x32xbf16>, vector<16x32xbf16>, vector<16x16xf32> -> vector<16x16xf32>
    %62 = tpu.concatenate %38, %41, %44, %47, %52, %55, %58, %61 in 0 : vector<16x16xf32>, vector<16x16xf32>, vector<16x16xf32>, vector<16x16xf32>, vector<16x16xf32>, vector<16x16xf32>, vector<16x16xf32>, vector<16x16xf32> -> vector<128x16xf32>
    %cst_17 = arith.constant dense<0xFF800000> : vector<128xf32>
    %63 = vector.multi_reduction <maximumf>, %62, %cst_17 [1] : vector<128x16xf32> to vector<128xf32>
    %64 = vector.shape_cast %63 : vector<128xf32> to vector<128x1xf32>
    %65 = vector.broadcast %64 : vector<128x1xf32> to vector<128x16xf32>
    %66 = arith.subf %62, %65 : vector<128x16xf32>
    %67 = math.exp %66 : vector<128x16xf32>
    %cst_18 = arith.constant dense<0.000000e+00> : vector<128xf32>
    %68 = vector.multi_reduction <add>, %67, %cst_18 [1] : vector<128x16xf32> to vector<128xf32>
    %69 = vector.shape_cast %68 : vector<128xf32> to vector<128x1xf32>
    %70 = tpu.reciprocal %69 {approx = true} : vector<128x1xf32> -> vector<128x1xf32>
    %71 = vector.broadcast %70 : vector<128x1xf32> to vector<128x16xf32>
    %72 = arith.mulf %67, %71 : vector<128x16xf32>
    %73 = arith.truncf %72 : vector<128x16xf32> to vector<128x16xbf16>
    %74 = vector.extract_strided_slice %33 {offsets = [0, 0], sizes = [16, 128], strides = [1, 1]} : vector<32x128xbf16> to vector<16x128xbf16>
    %75 = vector.extract_strided_slice %73 {offsets = [0, 0], sizes = [16, 16], strides = [1, 1]} : vector<128x16xbf16> to vector<16x16xbf16>
    %76 = vector.extract_strided_slice %74 {offsets = [0, 0], sizes = [16, 32], strides = [1, 1]} : vector<16x128xbf16> to vector<16x32xbf16>
    %cst_19 = arith.constant dense<0.000000e+00> : vector<16x32xf32>
    %77 = tpu.matmul %75, %76, %cst_19 {dimension_numbers = #tpu.dot_dimension_numbers<[1], [0], [0], [1], [0, 0, 1, 1], [], []>} : vector<16x16xbf16>, vector<16x32xbf16>, vector<16x32xf32> -> vector<16x32xf32>
    %78 = vector.extract_strided_slice %73 {offsets = [16, 0], sizes = [16, 16], strides = [1, 1]} : vector<128x16xbf16> to vector<16x16xbf16>
    %79 = vector.extract_strided_slice %74 {offsets = [0, 32], sizes = [16, 32], strides = [1, 1]} : vector<16x128xbf16> to vector<16x32xbf16>
    %cst_20 = arith.constant dense<0.000000e+00> : vector<16x32xf32>
    %80 = tpu.matmul %78, %79, %cst_20 {dimension_numbers = #tpu.dot_dimension_numbers<[1], [0], [0], [1], [0, 0, 1, 1], [], []>} : vector<16x16xbf16>, vector<16x32xbf16>, vector<16x32xf32> -> vector<16x32xf32>
    %81 = vector.extract_strided_slice %73 {offsets = [32, 0], sizes = [16, 16], strides = [1, 1]} : vector<128x16xbf16> to vector<16x16xbf16>
    %82 = vector.extract_strided_slice %74 {offsets = [0, 64], sizes = [16, 32], strides = [1, 1]} : vector<16x128xbf16> to vector<16x32xbf16>
    %cst_21 = arith.constant dense<0.000000e+00> : vector<16x32xf32>
    %83 = tpu.matmul %81, %82, %cst_21 {dimension_numbers = #tpu.dot_dimension_numbers<[1], [0], [0], [1], [0, 0, 1, 1], [], []>} : vector<16x16xbf16>, vector<16x32xbf16>, vector<16x32xf32> -> vector<16x32xf32>
    %84 = vector.extract_strided_slice %73 {offsets = [48, 0], sizes = [16, 16], strides = [1, 1]} : vector<128x16xbf16> to vector<16x16xbf16>
    %85 = vector.extract_strided_slice %74 {offsets = [0, 96], sizes = [16, 32], strides = [1, 1]} : vector<16x128xbf16> to vector<16x32xbf16>
    %cst_22 = arith.constant dense<0.000000e+00> : vector<16x32xf32>
    %86 = tpu.matmul %84, %85, %cst_22 {dimension_numbers = #tpu.dot_dimension_numbers<[1], [0], [0], [1], [0, 0, 1, 1], [], []>} : vector<16x16xbf16>, vector<16x32xbf16>, vector<16x32xf32> -> vector<16x32xf32>
    %87 = tpu.concatenate %77, %80, %83, %86 in 1 : vector<16x32xf32>, vector<16x32xf32>, vector<16x32xf32>, vector<16x32xf32> -> vector<16x128xf32>
    %88 = vector.extract_strided_slice %33 {offsets = [16, 0], sizes = [16, 128], strides = [1, 1]} : vector<32x128xbf16> to vector<16x128xbf16>
    %89 = vector.extract_strided_slice %73 {offsets = [64, 0], sizes = [16, 16], strides = [1, 1]} : vector<128x16xbf16> to vector<16x16xbf16>
    %90 = vector.extract_strided_slice %88 {offsets = [0, 0], sizes = [16, 32], strides = [1, 1]} : vector<16x128xbf16> to vector<16x32xbf16>
    %cst_23 = arith.constant dense<0.000000e+00> : vector<16x32xf32>
    %91 = tpu.matmul %89, %90, %cst_23 {dimension_numbers = #tpu.dot_dimension_numbers<[1], [0], [0], [1], [0, 0, 1, 1], [], []>} : vector<16x16xbf16>, vector<16x32xbf16>, vector<16x32xf32> -> vector<16x32xf32>
    %92 = vector.extract_strided_slice %73 {offsets = [80, 0], sizes = [16, 16], strides = [1, 1]} : vector<128x16xbf16> to vector<16x16xbf16>
    %93 = vector.extract_strided_slice %88 {offsets = [0, 32], sizes = [16, 32], strides = [1, 1]} : vector<16x128xbf16> to vector<16x32xbf16>
    %cst_24 = arith.constant dense<0.000000e+00> : vector<16x32xf32>
    %94 = tpu.matmul %92, %93, %cst_24 {dimension_numbers = #tpu.dot_dimension_numbers<[1], [0], [0], [1], [0, 0, 1, 1], [], []>} : vector<16x16xbf16>, vector<16x32xbf16>, vector<16x32xf32> -> vector<16x32xf32>
    %95 = vector.extract_strided_slice %73 {offsets = [96, 0], sizes = [16, 16], strides = [1, 1]} : vector<128x16xbf16> to vector<16x16xbf16>
    %96 = vector.extract_strided_slice %88 {offsets = [0, 64], sizes = [16, 32], strides = [1, 1]} : vector<16x128xbf16> to vector<16x32xbf16>
    %cst_25 = arith.constant dense<0.000000e+00> : vector<16x32xf32>
    %97 = tpu.matmul %95, %96, %cst_25 {dimension_numbers = #tpu.dot_dimension_numbers<[1], [0], [0], [1], [0, 0, 1, 1], [], []>} : vector<16x16xbf16>, vector<16x32xbf16>, vector<16x32xf32> -> vector<16x32xf32>
    %98 = vector.extract_strided_slice %73 {offsets = [112, 0], sizes = [16, 16], strides = [1, 1]} : vector<128x16xbf16> to vector<16x16xbf16>
    %99 = vector.extract_strided_slice %88 {offsets = [0, 96], sizes = [16, 32], strides = [1, 1]} : vector<16x128xbf16> to vector<16x32xbf16>
    %cst_26 = arith.constant dense<0.000000e+00> : vector<16x32xf32>
    %100 = tpu.matmul %98, %99, %cst_26 {dimension_numbers = #tpu.dot_dimension_numbers<[1], [0], [0], [1], [0, 0, 1, 1], [], []>} : vector<16x16xbf16>, vector<16x32xbf16>, vector<16x32xf32> -> vector<16x32xf32>
    %101 = tpu.concatenate %91, %94, %97, %100 in 1 : vector<16x32xf32>, vector<16x32xf32>, vector<16x32xf32>, vector<16x32xf32> -> vector<16x128xf32>
    %102 = tpu.concatenate %87, %101 in 0 : vector<16x128xf32>, vector<16x128xf32> -> vector<32x128xf32>
    %c0_27 = arith.constant 0 : index
    %c0_28 = arith.constant 0 : index
    %103 = vector.load %arg4[%c0_27, %c0_28] : memref<128x128xbf16, #tpu.memory_space<vmem>>, vector<128x128xbf16>
    %104 = arith.truncf %102 : vector<32x128xf32> to vector<32x128xbf16>
    %cst_29 = arith.constant dense<0.000000e+00> : vector<32x128xf32>
    %105 = tpu.matmul %104, %103, %cst_29 {dimension_numbers = #tpu.dot_dimension_numbers<[1], [0], [0], [1], [0, 0, 1, 1], [], []>} : vector<32x128xbf16>, vector<128x128xbf16>, vector<32x128xf32> -> vector<32x128xf32>
    %106 = vector.broadcast %6 : vector<1x128xf32> to vector<32x128xf32>
    %107 = arith.addf %105, %106 : vector<32x128xf32>
    %108 = arith.addf %0, %107 : vector<32x128xf32>
    %cst_30 = arith.constant dense<0.000000e+00> : vector<32xf32>
    %109 = vector.multi_reduction <add>, %108, %cst_30 [1] : vector<32x128xf32> to vector<32xf32>
    %110 = vector.shape_cast %109 : vector<32xf32> to vector<32x1xf32>
    %cst_31 = arith.constant 1.280000e+02 : f32
    %111 = vector.broadcast %cst_31 : f32 to vector<32x1xf32>
    %112 = arith.divf %110, %111 : vector<32x1xf32>
    %113 = vector.broadcast %112 : vector<32x1xf32> to vector<32x128xf32>
    %114 = arith.subf %108, %113 : vector<32x128xf32>
    %115 = arith.mulf %114, %114 : vector<32x128xf32>
    %cst_32 = arith.constant dense<0.000000e+00> : vector<32xf32>
    %116 = vector.multi_reduction <add>, %115, %cst_32 [1] : vector<32x128xf32> to vector<32xf32>
    %117 = vector.shape_cast %116 : vector<32xf32> to vector<32x1xf32>
    %cst_33 = arith.constant 1.280000e+02 : f32
    %118 = vector.broadcast %cst_33 : f32 to vector<32x1xf32>
    %119 = arith.divf %117, %118 : vector<32x1xf32>
    %120 = vector.broadcast %112 : vector<32x1xf32> to vector<32x128xf32>
    %121 = arith.subf %108, %120 : vector<32x128xf32>
    %cst_34 = arith.constant 9.99999974E-6 : f32
    %122 = vector.broadcast %cst_34 : f32 to vector<32x1xf32>
    %123 = arith.addf %119, %122 : vector<32x1xf32>
    %124 = math.rsqrt %123 : vector<32x1xf32>
    %125 = vector.broadcast %124 : vector<32x1xf32> to vector<32x128xf32>
    %126 = arith.mulf %121, %125 : vector<32x128xf32>
    %127 = vector.broadcast %12 : vector<1x128xf32> to vector<32x128xf32>
    %128 = arith.mulf %126, %127 : vector<32x128xf32>
    %129 = vector.broadcast %13 : vector<1x128xf32> to vector<32x128xf32>
    %130 = arith.addf %128, %129 : vector<32x128xf32>
    %c0_35 = arith.constant 0 : index
    %c0_36 = arith.constant 0 : index
    %131 = vector.load %arg5[%c0_35, %c0_36] : memref<128x128xbf16, #tpu.memory_space<vmem>>, vector<128x128xbf16>
    %132 = arith.truncf %130 : vector<32x128xf32> to vector<32x128xbf16>
    %cst_37 = arith.constant dense<0.000000e+00> : vector<32x128xf32>
    %133 = tpu.matmul %132, %131, %cst_37 {dimension_numbers = #tpu.dot_dimension_numbers<[1], [0], [0], [1], [0, 0, 1, 1], [], []>} : vector<32x128xbf16>, vector<128x128xbf16>, vector<32x128xf32> -> vector<32x128xf32>
    %134 = vector.broadcast %7 : vector<1x128xf32> to vector<32x128xf32>
    %135 = arith.addf %133, %134 : vector<32x128xf32>
    %c0_38 = arith.constant 0 : index
    %c0_39 = arith.constant 0 : index
    %136 = vector.load %arg6[%c0_38, %c0_39] : memref<128x256xbf16, #tpu.memory_space<vmem>>, vector<128x256xbf16>
    %137 = arith.truncf %1 : vector<32x128xf32> to vector<32x128xbf16>
    %cst_40 = arith.constant dense<0.000000e+00> : vector<32x256xf32>
    %138 = tpu.matmul %137, %136, %cst_40 {dimension_numbers = #tpu.dot_dimension_numbers<[1], [0], [0], [1], [0, 0, 1, 1], [], []>} : vector<32x128xbf16>, vector<128x256xbf16>, vector<32x256xf32> -> vector<32x256xf32>
    %139 = vector.extract_strided_slice %138 {offsets = [0, 0], sizes = [32, 128], strides = [1, 1]} : vector<32x256xf32> to vector<32x128xf32>
    %140 = vector.broadcast %8 : vector<1x128xf32> to vector<32x128xf32>
    %141 = arith.addf %139, %140 : vector<32x128xf32>
    %142 = vector.extract_strided_slice %138 {offsets = [0, 128], sizes = [32, 128], strides = [1, 1]} : vector<32x256xf32> to vector<32x128xf32>
    %143 = vector.broadcast %9 : vector<1x128xf32> to vector<32x128xf32>
    %144 = arith.addf %142, %143 : vector<32x128xf32>
    %145 = arith.truncf %135 : vector<32x128xf32> to vector<32x128xbf16>
    %146 = arith.truncf %141 : vector<32x128xf32> to vector<32x128xbf16>
    %147 = arith.truncf %144 : vector<32x128xf32> to vector<32x128xbf16>
    %148 = vector.extract_strided_slice %145 {offsets = [0, 0], sizes = [16, 128], strides = [1, 1]} : vector<32x128xbf16> to vector<16x128xbf16>
    %149 = vector.extract_strided_slice %146 {offsets = [0, 0], sizes = [16, 128], strides = [1, 1]} : vector<32x128xbf16> to vector<16x128xbf16>
    %150 = vector.extract_strided_slice %148 {offsets = [0, 0], sizes = [16, 32], strides = [1, 1]} : vector<16x128xbf16> to vector<16x32xbf16>
    %151 = vector.extract_strided_slice %149 {offsets = [0, 0], sizes = [16, 32], strides = [1, 1]} : vector<16x128xbf16> to vector<16x32xbf16>
    %cst_41 = arith.constant dense<0.000000e+00> : vector<16x16xf32>
    %152 = tpu.matmul %150, %151, %cst_41 {dimension_numbers = #tpu.dot_dimension_numbers<[1], [1], [0], [0], [0, 0, 1, 0], [], []>} : vector<16x32xbf16>, vector<16x32xbf16>, vector<16x16xf32> -> vector<16x16xf32>
    %153 = vector.extract_strided_slice %148 {offsets = [0, 32], sizes = [16, 32], strides = [1, 1]} : vector<16x128xbf16> to vector<16x32xbf16>
    %154 = vector.extract_strided_slice %149 {offsets = [0, 32], sizes = [16, 32], strides = [1, 1]} : vector<16x128xbf16> to vector<16x32xbf16>
    %cst_42 = arith.constant dense<0.000000e+00> : vector<16x16xf32>
    %155 = tpu.matmul %153, %154, %cst_42 {dimension_numbers = #tpu.dot_dimension_numbers<[1], [1], [0], [0], [0, 0, 1, 0], [], []>} : vector<16x32xbf16>, vector<16x32xbf16>, vector<16x16xf32> -> vector<16x16xf32>
    %156 = vector.extract_strided_slice %148 {offsets = [0, 64], sizes = [16, 32], strides = [1, 1]} : vector<16x128xbf16> to vector<16x32xbf16>
    %157 = vector.extract_strided_slice %149 {offsets = [0, 64], sizes = [16, 32], strides = [1, 1]} : vector<16x128xbf16> to vector<16x32xbf16>
    %cst_43 = arith.constant dense<0.000000e+00> : vector<16x16xf32>
    %158 = tpu.matmul %156, %157, %cst_43 {dimension_numbers = #tpu.dot_dimension_numbers<[1], [1], [0], [0], [0, 0, 1, 0], [], []>} : vector<16x32xbf16>, vector<16x32xbf16>, vector<16x16xf32> -> vector<16x16xf32>
    %159 = vector.extract_strided_slice %148 {offsets = [0, 96], sizes = [16, 32], strides = [1, 1]} : vector<16x128xbf16> to vector<16x32xbf16>
    %160 = vector.extract_strided_slice %149 {offsets = [0, 96], sizes = [16, 32], strides = [1, 1]} : vector<16x128xbf16> to vector<16x32xbf16>
    %cst_44 = arith.constant dense<0.000000e+00> : vector<16x16xf32>
    %161 = tpu.matmul %159, %160, %cst_44 {dimension_numbers = #tpu.dot_dimension_numbers<[1], [1], [0], [0], [0, 0, 1, 0], [], []>} : vector<16x32xbf16>, vector<16x32xbf16>, vector<16x16xf32> -> vector<16x16xf32>
    %162 = vector.extract_strided_slice %145 {offsets = [16, 0], sizes = [16, 128], strides = [1, 1]} : vector<32x128xbf16> to vector<16x128xbf16>
    %163 = vector.extract_strided_slice %146 {offsets = [16, 0], sizes = [16, 128], strides = [1, 1]} : vector<32x128xbf16> to vector<16x128xbf16>
    %164 = vector.extract_strided_slice %162 {offsets = [0, 0], sizes = [16, 32], strides = [1, 1]} : vector<16x128xbf16> to vector<16x32xbf16>
    %165 = vector.extract_strided_slice %163 {offsets = [0, 0], sizes = [16, 32], strides = [1, 1]} : vector<16x128xbf16> to vector<16x32xbf16>
    %cst_45 = arith.constant dense<0.000000e+00> : vector<16x16xf32>
    %166 = tpu.matmul %164, %165, %cst_45 {dimension_numbers = #tpu.dot_dimension_numbers<[1], [1], [0], [0], [0, 0, 1, 0], [], []>} : vector<16x32xbf16>, vector<16x32xbf16>, vector<16x16xf32> -> vector<16x16xf32>
    %167 = vector.extract_strided_slice %162 {offsets = [0, 32], sizes = [16, 32], strides = [1, 1]} : vector<16x128xbf16> to vector<16x32xbf16>
    %168 = vector.extract_strided_slice %163 {offsets = [0, 32], sizes = [16, 32], strides = [1, 1]} : vector<16x128xbf16> to vector<16x32xbf16>
    %cst_46 = arith.constant dense<0.000000e+00> : vector<16x16xf32>
    %169 = tpu.matmul %167, %168, %cst_46 {dimension_numbers = #tpu.dot_dimension_numbers<[1], [1], [0], [0], [0, 0, 1, 0], [], []>} : vector<16x32xbf16>, vector<16x32xbf16>, vector<16x16xf32> -> vector<16x16xf32>
    %170 = vector.extract_strided_slice %162 {offsets = [0, 64], sizes = [16, 32], strides = [1, 1]} : vector<16x128xbf16> to vector<16x32xbf16>
    %171 = vector.extract_strided_slice %163 {offsets = [0, 64], sizes = [16, 32], strides = [1, 1]} : vector<16x128xbf16> to vector<16x32xbf16>
    %cst_47 = arith.constant dense<0.000000e+00> : vector<16x16xf32>
    %172 = tpu.matmul %170, %171, %cst_47 {dimension_numbers = #tpu.dot_dimension_numbers<[1], [1], [0], [0], [0, 0, 1, 0], [], []>} : vector<16x32xbf16>, vector<16x32xbf16>, vector<16x16xf32> -> vector<16x16xf32>
    %173 = vector.extract_strided_slice %162 {offsets = [0, 96], sizes = [16, 32], strides = [1, 1]} : vector<16x128xbf16> to vector<16x32xbf16>
    %174 = vector.extract_strided_slice %163 {offsets = [0, 96], sizes = [16, 32], strides = [1, 1]} : vector<16x128xbf16> to vector<16x32xbf16>
    %cst_48 = arith.constant dense<0.000000e+00> : vector<16x16xf32>
    %175 = tpu.matmul %173, %174, %cst_48 {dimension_numbers = #tpu.dot_dimension_numbers<[1], [1], [0], [0], [0, 0, 1, 0], [], []>} : vector<16x32xbf16>, vector<16x32xbf16>, vector<16x16xf32> -> vector<16x16xf32>
    %176 = tpu.concatenate %152, %155, %158, %161, %166, %169, %172, %175 in 0 : vector<16x16xf32>, vector<16x16xf32>, vector<16x16xf32>, vector<16x16xf32>, vector<16x16xf32>, vector<16x16xf32>, vector<16x16xf32>, vector<16x16xf32> -> vector<128x16xf32>
    %cst_49 = arith.constant dense<0xFF800000> : vector<128xf32>
    %177 = vector.multi_reduction <maximumf>, %176, %cst_49 [1] : vector<128x16xf32> to vector<128xf32>
    %178 = vector.shape_cast %177 : vector<128xf32> to vector<128x1xf32>
    %179 = vector.broadcast %178 : vector<128x1xf32> to vector<128x16xf32>
    %180 = arith.subf %176, %179 : vector<128x16xf32>
    %181 = math.exp %180 : vector<128x16xf32>
    %cst_50 = arith.constant dense<0.000000e+00> : vector<128xf32>
    %182 = vector.multi_reduction <add>, %181, %cst_50 [1] : vector<128x16xf32> to vector<128xf32>
    %183 = vector.shape_cast %182 : vector<128xf32> to vector<128x1xf32>
    %184 = tpu.reciprocal %183 {approx = true} : vector<128x1xf32> -> vector<128x1xf32>
    %185 = vector.broadcast %184 : vector<128x1xf32> to vector<128x16xf32>
    %186 = arith.mulf %181, %185 : vector<128x16xf32>
    %187 = arith.truncf %186 : vector<128x16xf32> to vector<128x16xbf16>
    %188 = vector.extract_strided_slice %147 {offsets = [0, 0], sizes = [16, 128], strides = [1, 1]} : vector<32x128xbf16> to vector<16x128xbf16>
    %189 = vector.extract_strided_slice %187 {offsets = [0, 0], sizes = [16, 16], strides = [1, 1]} : vector<128x16xbf16> to vector<16x16xbf16>
    %190 = vector.extract_strided_slice %188 {offsets = [0, 0], sizes = [16, 32], strides = [1, 1]} : vector<16x128xbf16> to vector<16x32xbf16>
    %cst_51 = arith.constant dense<0.000000e+00> : vector<16x32xf32>
    %191 = tpu.matmul %189, %190, %cst_51 {dimension_numbers = #tpu.dot_dimension_numbers<[1], [0], [0], [1], [0, 0, 1, 1], [], []>} : vector<16x16xbf16>, vector<16x32xbf16>, vector<16x32xf32> -> vector<16x32xf32>
    %192 = vector.extract_strided_slice %187 {offsets = [16, 0], sizes = [16, 16], strides = [1, 1]} : vector<128x16xbf16> to vector<16x16xbf16>
    %193 = vector.extract_strided_slice %188 {offsets = [0, 32], sizes = [16, 32], strides = [1, 1]} : vector<16x128xbf16> to vector<16x32xbf16>
    %cst_52 = arith.constant dense<0.000000e+00> : vector<16x32xf32>
    %194 = tpu.matmul %192, %193, %cst_52 {dimension_numbers = #tpu.dot_dimension_numbers<[1], [0], [0], [1], [0, 0, 1, 1], [], []>} : vector<16x16xbf16>, vector<16x32xbf16>, vector<16x32xf32> -> vector<16x32xf32>
    %195 = vector.extract_strided_slice %187 {offsets = [32, 0], sizes = [16, 16], strides = [1, 1]} : vector<128x16xbf16> to vector<16x16xbf16>
    %196 = vector.extract_strided_slice %188 {offsets = [0, 64], sizes = [16, 32], strides = [1, 1]} : vector<16x128xbf16> to vector<16x32xbf16>
    %cst_53 = arith.constant dense<0.000000e+00> : vector<16x32xf32>
    %197 = tpu.matmul %195, %196, %cst_53 {dimension_numbers = #tpu.dot_dimension_numbers<[1], [0], [0], [1], [0, 0, 1, 1], [], []>} : vector<16x16xbf16>, vector<16x32xbf16>, vector<16x32xf32> -> vector<16x32xf32>
    %198 = vector.extract_strided_slice %187 {offsets = [48, 0], sizes = [16, 16], strides = [1, 1]} : vector<128x16xbf16> to vector<16x16xbf16>
    %199 = vector.extract_strided_slice %188 {offsets = [0, 96], sizes = [16, 32], strides = [1, 1]} : vector<16x128xbf16> to vector<16x32xbf16>
    %cst_54 = arith.constant dense<0.000000e+00> : vector<16x32xf32>
    %200 = tpu.matmul %198, %199, %cst_54 {dimension_numbers = #tpu.dot_dimension_numbers<[1], [0], [0], [1], [0, 0, 1, 1], [], []>} : vector<16x16xbf16>, vector<16x32xbf16>, vector<16x32xf32> -> vector<16x32xf32>
    %201 = tpu.concatenate %191, %194, %197, %200 in 1 : vector<16x32xf32>, vector<16x32xf32>, vector<16x32xf32>, vector<16x32xf32> -> vector<16x128xf32>
    %202 = vector.extract_strided_slice %147 {offsets = [16, 0], sizes = [16, 128], strides = [1, 1]} : vector<32x128xbf16> to vector<16x128xbf16>
    %203 = vector.extract_strided_slice %187 {offsets = [64, 0], sizes = [16, 16], strides = [1, 1]} : vector<128x16xbf16> to vector<16x16xbf16>
    %204 = vector.extract_strided_slice %202 {offsets = [0, 0], sizes = [16, 32], strides = [1, 1]} : vector<16x128xbf16> to vector<16x32xbf16>
    %cst_55 = arith.constant dense<0.000000e+00> : vector<16x32xf32>
    %205 = tpu.matmul %203, %204, %cst_55 {dimension_numbers = #tpu.dot_dimension_numbers<[1], [0], [0], [1], [0, 0, 1, 1], [], []>} : vector<16x16xbf16>, vector<16x32xbf16>, vector<16x32xf32> -> vector<16x32xf32>
    %206 = vector.extract_strided_slice %187 {offsets = [80, 0], sizes = [16, 16], strides = [1, 1]} : vector<128x16xbf16> to vector<16x16xbf16>
    %207 = vector.extract_strided_slice %202 {offsets = [0, 32], sizes = [16, 32], strides = [1, 1]} : vector<16x128xbf16> to vector<16x32xbf16>
    %cst_56 = arith.constant dense<0.000000e+00> : vector<16x32xf32>
    %208 = tpu.matmul %206, %207, %cst_56 {dimension_numbers = #tpu.dot_dimension_numbers<[1], [0], [0], [1], [0, 0, 1, 1], [], []>} : vector<16x16xbf16>, vector<16x32xbf16>, vector<16x32xf32> -> vector<16x32xf32>
    %209 = vector.extract_strided_slice %187 {offsets = [96, 0], sizes = [16, 16], strides = [1, 1]} : vector<128x16xbf16> to vector<16x16xbf16>
    %210 = vector.extract_strided_slice %202 {offsets = [0, 64], sizes = [16, 32], strides = [1, 1]} : vector<16x128xbf16> to vector<16x32xbf16>
    %cst_57 = arith.constant dense<0.000000e+00> : vector<16x32xf32>
    %211 = tpu.matmul %209, %210, %cst_57 {dimension_numbers = #tpu.dot_dimension_numbers<[1], [0], [0], [1], [0, 0, 1, 1], [], []>} : vector<16x16xbf16>, vector<16x32xbf16>, vector<16x32xf32> -> vector<16x32xf32>
    %212 = vector.extract_strided_slice %187 {offsets = [112, 0], sizes = [16, 16], strides = [1, 1]} : vector<128x16xbf16> to vector<16x16xbf16>
    %213 = vector.extract_strided_slice %202 {offsets = [0, 96], sizes = [16, 32], strides = [1, 1]} : vector<16x128xbf16> to vector<16x32xbf16>
    %cst_58 = arith.constant dense<0.000000e+00> : vector<16x32xf32>
    %214 = tpu.matmul %212, %213, %cst_58 {dimension_numbers = #tpu.dot_dimension_numbers<[1], [0], [0], [1], [0, 0, 1, 1], [], []>} : vector<16x16xbf16>, vector<16x32xbf16>, vector<16x32xf32> -> vector<16x32xf32>
    %215 = tpu.concatenate %205, %208, %211, %214 in 1 : vector<16x32xf32>, vector<16x32xf32>, vector<16x32xf32>, vector<16x32xf32> -> vector<16x128xf32>
    %216 = tpu.concatenate %201, %215 in 0 : vector<16x128xf32>, vector<16x128xf32> -> vector<32x128xf32>
    %c0_59 = arith.constant 0 : index
    %c0_60 = arith.constant 0 : index
    %217 = vector.load %arg7[%c0_59, %c0_60] : memref<128x128xbf16, #tpu.memory_space<vmem>>, vector<128x128xbf16>
    %218 = arith.truncf %216 : vector<32x128xf32> to vector<32x128xbf16>
    %cst_61 = arith.constant dense<0.000000e+00> : vector<32x128xf32>
    %219 = tpu.matmul %218, %217, %cst_61 {dimension_numbers = #tpu.dot_dimension_numbers<[1], [0], [0], [1], [0, 0, 1, 1], [], []>} : vector<32x128xbf16>, vector<128x128xbf16>, vector<32x128xf32> -> vector<32x128xf32>
    %220 = vector.broadcast %10 : vector<1x128xf32> to vector<32x128xf32>
    %221 = arith.addf %219, %220 : vector<32x128xf32>
    %222 = arith.addf %130, %221 : vector<32x128xf32>
    %cst_62 = arith.constant dense<0.000000e+00> : vector<32xf32>
    %223 = vector.multi_reduction <add>, %222, %cst_62 [1] : vector<32x128xf32> to vector<32xf32>
    %224 = vector.shape_cast %223 : vector<32xf32> to vector<32x1xf32>
    %cst_63 = arith.constant 1.280000e+02 : f32
    %225 = vector.broadcast %cst_63 : f32 to vector<32x1xf32>
    %226 = arith.divf %224, %225 : vector<32x1xf32>
    %227 = vector.broadcast %226 : vector<32x1xf32> to vector<32x128xf32>
    %228 = arith.subf %222, %227 : vector<32x128xf32>
    %229 = arith.mulf %228, %228 : vector<32x128xf32>
    %cst_64 = arith.constant dense<0.000000e+00> : vector<32xf32>
    %230 = vector.multi_reduction <add>, %229, %cst_64 [1] : vector<32x128xf32> to vector<32xf32>
    %231 = vector.shape_cast %230 : vector<32xf32> to vector<32x1xf32>
    %cst_65 = arith.constant 1.280000e+02 : f32
    %232 = vector.broadcast %cst_65 : f32 to vector<32x1xf32>
    %233 = arith.divf %231, %232 : vector<32x1xf32>
    %234 = vector.broadcast %226 : vector<32x1xf32> to vector<32x128xf32>
    %235 = arith.subf %222, %234 : vector<32x128xf32>
    %cst_66 = arith.constant 9.99999974E-6 : f32
    %236 = vector.broadcast %cst_66 : f32 to vector<32x1xf32>
    %237 = arith.addf %233, %236 : vector<32x1xf32>
    %238 = math.rsqrt %237 : vector<32x1xf32>
    %239 = vector.broadcast %238 : vector<32x1xf32> to vector<32x128xf32>
    %240 = arith.mulf %235, %239 : vector<32x128xf32>
    %241 = vector.broadcast %14 : vector<1x128xf32> to vector<32x128xf32>
    %242 = arith.mulf %240, %241 : vector<32x128xf32>
    %243 = vector.broadcast %15 : vector<1x128xf32> to vector<32x128xf32>
    %244 = arith.addf %242, %243 : vector<32x128xf32>
    %c0_67 = arith.constant 0 : index
    %c0_68 = arith.constant 0 : index
    %245 = vector.load %arg8[%c0_67, %c0_68] : memref<128x256xbf16, #tpu.memory_space<vmem>>, vector<128x256xbf16>
    %246 = arith.truncf %244 : vector<32x128xf32> to vector<32x128xbf16>
    %cst_69 = arith.constant dense<0.000000e+00> : vector<32x256xf32>
    %247 = tpu.matmul %246, %245, %cst_69 {dimension_numbers = #tpu.dot_dimension_numbers<[1], [0], [0], [1], [0, 0, 1, 1], [], []>} : vector<32x128xbf16>, vector<128x256xbf16>, vector<32x256xf32> -> vector<32x256xf32>
    %248 = vector.broadcast %18 : vector<1x256xf32> to vector<32x256xf32>
    %249 = arith.addf %247, %248 : vector<32x256xf32>
    %cst_70 = arith.constant 0.000000e+00 : f32
    %250 = vector.broadcast %cst_70 : f32 to vector<32x256xf32>
    %251 = arith.maximumf %249, %250 : vector<32x256xf32>
    %c0_71 = arith.constant 0 : index
    %c0_72 = arith.constant 0 : index
    %252 = vector.load %arg9[%c0_71, %c0_72] : memref<256x128xbf16, #tpu.memory_space<vmem>>, vector<256x128xbf16>
    %253 = arith.truncf %251 : vector<32x256xf32> to vector<32x256xbf16>
    %cst_73 = arith.constant dense<0.000000e+00> : vector<32x128xf32>
    %254 = tpu.matmul %253, %252, %cst_73 {dimension_numbers = #tpu.dot_dimension_numbers<[1], [0], [0], [1], [0, 0, 1, 1], [], []>} : vector<32x256xbf16>, vector<256x128xbf16>, vector<32x128xf32> -> vector<32x128xf32>
    %255 = vector.broadcast %11 : vector<1x128xf32> to vector<32x128xf32>
    %256 = arith.addf %254, %255 : vector<32x128xf32>
    %257 = arith.addf %244, %256 : vector<32x128xf32>
    %cst_74 = arith.constant dense<0.000000e+00> : vector<32xf32>
    %258 = vector.multi_reduction <add>, %257, %cst_74 [1] : vector<32x128xf32> to vector<32xf32>
    %259 = vector.shape_cast %258 : vector<32xf32> to vector<32x1xf32>
    %cst_75 = arith.constant 1.280000e+02 : f32
    %260 = vector.broadcast %cst_75 : f32 to vector<32x1xf32>
    %261 = arith.divf %259, %260 : vector<32x1xf32>
    %262 = vector.broadcast %261 : vector<32x1xf32> to vector<32x128xf32>
    %263 = arith.subf %257, %262 : vector<32x128xf32>
    %264 = arith.mulf %263, %263 : vector<32x128xf32>
    %cst_76 = arith.constant dense<0.000000e+00> : vector<32xf32>
    %265 = vector.multi_reduction <add>, %264, %cst_76 [1] : vector<32x128xf32> to vector<32xf32>
    %266 = vector.shape_cast %265 : vector<32xf32> to vector<32x1xf32>
    %cst_77 = arith.constant 1.280000e+02 : f32
    %267 = vector.broadcast %cst_77 : f32 to vector<32x1xf32>
    %268 = arith.divf %266, %267 : vector<32x1xf32>
    %269 = vector.broadcast %261 : vector<32x1xf32> to vector<32x128xf32>
    %270 = arith.subf %257, %269 : vector<32x128xf32>
    %cst_78 = arith.constant 9.99999974E-6 : f32
    %271 = vector.broadcast %cst_78 : f32 to vector<32x1xf32>
    %272 = arith.addf %268, %271 : vector<32x1xf32>
    %273 = math.rsqrt %272 : vector<32x1xf32>
    %274 = vector.broadcast %273 : vector<32x1xf32> to vector<32x128xf32>
    %275 = arith.mulf %270, %274 : vector<32x128xf32>
    %276 = vector.broadcast %16 : vector<1x128xf32> to vector<32x128xf32>
    %277 = arith.mulf %275, %276 : vector<32x128xf32>
    %278 = vector.broadcast %17 : vector<1x128xf32> to vector<32x128xf32>
    %279 = arith.addf %277, %278 : vector<32x128xf32>
    %c0_79 = arith.constant 0 : index
    %c0_80 = arith.constant 0 : index
    %280 = vector.load %arg12[%c0_79, %c0_80] : memref<32x128xf32, #tpu.memory_space<vmem>>, vector<32x128xf32>
    tpu.vector_store %arg12[%c0_79, %c0_80], %279 {strides = array<i32>} : memref<32x128xf32, #tpu.memory_space<vmem>>, vector<32x128xf32>,
    return
  }
  func.func @transform_0(%arg0: i32) -> (i32, i32) {
    %c0_i32 = arith.constant 0 : i32
    %c0_i32_0 = arith.constant 0 : i32
    return %arg0, %c0_i32 : i32, i32
  }
  func.func @transform_1(%arg0: i32) -> (i32, i32) {
    %c0_i32 = arith.constant 0 : i32
    %c0_i32_0 = arith.constant 0 : i32
    return %arg0, %c0_i32 : i32, i32
  }
  func.func @transform_2(%arg0: i32) -> (i32, i32) {
    %c0_i32 = arith.constant 0 : i32
    %c0_i32_0 = arith.constant 0 : i32
    %c0_i32_1 = arith.constant 0 : i32
    return %c0_i32, %c0_i32_0 : i32, i32
  }
  func.func @transform_3(%arg0: i32) -> (i32, i32) {
    %c0_i32 = arith.constant 0 : i32
    %c0_i32_0 = arith.constant 0 : i32
    %c0_i32_1 = arith.constant 0 : i32
    return %c0_i32, %c0_i32_0 : i32, i32
  }
  func.func @transform_4(%arg0: i32) -> (i32, i32) {
    %c0_i32 = arith.constant 0 : i32
    %c0_i32_0 = arith.constant 0 : i32
    %c0_i32_1 = arith.constant 0 : i32
    return %c0_i32, %c0_i32_0 : i32, i32
  }
  func.func @transform_5(%arg0: i32) -> (i32, i32) {
    %c0_i32 = arith.constant 0 : i32
    %c0_i32_0 = arith.constant 0 : i32
    %c0_i32_1 = arith.constant 0 : i32
    return %c0_i32, %c0_i32_0 : i32, i32
  }
  func.func @transform_6(%arg0: i32) -> (i32, i32) {
    %c0_i32 = arith.constant 0 : i32
    %c0_i32_0 = arith.constant 0 : i32
    %c0_i32_1 = arith.constant 0 : i32
    return %c0_i32, %c0_i32_0 : i32, i32
  }
  func.func @transform_7(%arg0: i32) -> (i32, i32) {
    %c0_i32 = arith.constant 0 : i32
    %c0_i32_0 = arith.constant 0 : i32
    %c0_i32_1 = arith.constant 0 : i32
    return %c0_i32, %c0_i32_0 : i32, i32
  }
  func.func @transform_8(%arg0: i32) -> (i32, i32) {
    %c0_i32 = arith.constant 0 : i32
    %c0_i32_0 = arith.constant 0 : i32
    %c0_i32_1 = arith.constant 0 : i32
    return %c0_i32, %c0_i32_0 : i32, i32
  }
  func.func @transform_9(%arg0: i32) -> (i32, i32) {
    %c0_i32 = arith.constant 0 : i32
    %c0_i32_0 = arith.constant 0 : i32
    %c0_i32_1 = arith.constant 0 : i32
    return %c0_i32, %c0_i32_0 : i32, i32
  }
  func.func @transform_10(%arg0: i32) -> (i32, i32) {
    %c0_i32 = arith.constant 0 : i32
    %c0_i32_0 = arith.constant 0 : i32
    %c0_i32_1 = arith.constant 0 : i32
    return %c0_i32, %c0_i32_0 : i32, i32
  }
  func.func @transform_11(%arg0: i32) -> (i32, i32) {
    %c0_i32 = arith.constant 0 : i32
    %c0_i32_0 = arith.constant 0 : i32
    return %arg0, %c0_i32 : i32, i32
  }
}

</mosaic_0001>

<llo_original>
// kernel: tpu_custom_call.1
$region0: #{tpu_custom_call.1}
  #allocation0 [shape = 'u32[]', space=smem, size = 0x4, offset = 0x4, fixed_abs, tag = 'smem constant byte address 0x4 - core index']
  #allocation1 [shape = 'u32[144,128]{1,0:T(1,128)}', space=vmem, size = 0x12000, scoped, tag = 'internal scratch']
  %s0 = inlined_call_operand.hbm [shape: f32[32,128], index: 0, kind: input, shape index: {}]
  %s1 = inlined_call_operand.hbm [shape: f32[32,128], index: 1, kind: input, shape index: {}]
  %s2 = inlined_call_operand.hbm [shape: bf16[128,384], index: 2, kind: input, shape index: {}]
  %s3 = inlined_call_operand.hbm [shape: bf16[128,128], index: 3, kind: input, shape index: {}]
  %s4 = inlined_call_operand.hbm [shape: bf16[128,128], index: 4, kind: input, shape index: {}]
  %s5 = inlined_call_operand.hbm [shape: bf16[128,256], index: 5, kind: input, shape index: {}]
  %s6 = inlined_call_operand.hbm [shape: bf16[128,128], index: 6, kind: input, shape index: {}]
  %s7 = inlined_call_operand.hbm [shape: bf16[128,256], index: 7, kind: input, shape index: {}]
  %s8 = inlined_call_operand.hbm [shape: bf16[256,128], index: 8, kind: input, shape index: {}]
  %s9 = inlined_call_operand.vmem [shape: f32[15,128], index: 9, kind: input, shape index: {}]
  %s10 = inlined_call_operand.vmem [shape: f32[1,256], index: 10, kind: input, shape index: {}]
  %s11 = inlined_call_operand.hbm [shape: f32[32,128], index: 11, kind: output, shape index: {}]
  %s12 = sld [smem:[#allocation0]]
  $region90: #{tpu_custom_call.1} parent=0
    _
  %s14 = ssub.s32 1, %s12
  %s15 = scalar_select 0, %s14, %s12
  $region1: #{tpu_custom_call.1} parent=0
    #allocation2 [shape = 'u8[16384]{0}', space=vmem, size = 0x4000, scoped, tag = 'input window, operand 0, single buffered']
    #allocation3 [shape = 's32[1]{0}', space=sflag, size = 0x4, scoped, tag = 'scoped memory for tpu_custom_call.1']
    #allocation4 [shape = 's32[1]{0}', space=sflag, size = 0x4, scoped, tag = 'scoped memory for tpu_custom_call.1']
    #allocation5 [shape = 'u8[16384]{0}', space=vmem, size = 0x4000, scoped, tag = 'input window, operand 1, single buffered']
    #allocation6 [shape = 's32[1]{0}', space=sflag, size = 0x4, scoped, tag = 'scoped memory for tpu_custom_call.1']
    #allocation7 [shape = 'u8[98304]{0}', space=vmem, size = 0x18000, scoped, tag = 'input window, operand 2, single buffered']
    #allocation8 [shape = 'u8[32768]{0}', space=vmem, size = 0x8000, scoped, tag = 'input window, operand 3, single buffered']
    #allocation9 [shape = 's32[1]{0}', space=sflag, size = 0x4, scoped, tag = 'scoped memory for tpu_custom_call.1']
    #allocation10 [shape = 'u8[32768]{0}', space=vmem, size = 0x8000, scoped, tag = 'input window, operand 4, single buffered']
    #allocation11 [shape = 'u8[65536]{0}', space=vmem, size = 0x10000, scoped, tag = 'input window, operand 5, single buffered']
    #allocation12 [shape = 's32[1]{0}', space=sflag, size = 0x4, scoped, tag = 'scoped memory for tpu_custom_call.1']
    #allocation13 [shape = 'u8[32768]{0}', space=vmem, size = 0x8000, scoped, tag = 'input window, operand 6, single buffered']
    #allocation14 [shape = 'u8[65536]{0}', space=vmem, size = 0x10000, scoped, tag = 'input window, operand 7, single buffered']
    #allocation15 [shape = 's32[1]{0}', space=sflag, size = 0x4, scoped, tag = 'scoped memory for tpu_custom_call.1']
    #allocation16 [shape = 'u8[65536]{0}', space=vmem, size = 0x10000, scoped, tag = 'input window, operand 8, single buffered']
    #allocation17 [shape = 'u8[16384]{0}', space=vmem, size = 0x4000, scoped, tag = 'output window, operand 0, single buffered']
    %16 = vsyncpa [#allocation3], 0
    %17 = vsyncpa [#allocation6], 0
    %18 = vsyncpa [#allocation9], 0
    %19 = vsyncpa [#allocation12], 0
    %20 = vsyncpa [#allocation15], 0
    %21 = vsyncpa [#allocation4], 0
    // Predicated region
    $region2: #{tpu_custom_call.1} parent=1 // pred_check
      _
    $region3: #{tpu_custom_call.1} parent=1 // pred_check_branch
      %23 = sbr.rel (0) target = $region5
    $region4: #{tpu_custom_call.1} parent=1 // pred_region
      %s25 = ssub.s32 512, 512
      %26 = vsyncadd [#allocation3], %s25
      %s27 = sshll.u32 [#allocation2], 4
      %s28 = int_to_ptr.vmem [resolvable:$true] %s27
      %33 = dma.hbm_to_vmem [thread:$0]  %s0, 512, %s28, [#allocation3], 128, 128, 8
    $region5: #{tpu_custom_call.1} parent=1 // pred_fallthru
      _
    // Predicated region
    $region6: #{tpu_custom_call.1} parent=1 // pred_check
      _
    $region7: #{tpu_custom_call.1} parent=1 // pred_check_branch
      %35 = sbr.rel (0) target = $region9
    $region8: #{tpu_custom_call.1} parent=1 // pred_region
      %s37 = ssub.s32 512, 512
      %38 = vsyncadd [#allocation6], %s37
      %s39 = sshll.u32 [#allocation5], 4
      %s40 = int_to_ptr.vmem [resolvable:$true] %s39
      %45 = dma.hbm_to_vmem [thread:$0]  %s1, 512, %s40, [#allocation6], 128, 128, 8
    $region9: #{tpu_custom_call.1} parent=1 // pred_fallthru
      _
    // Predicated region
    $region10: #{tpu_custom_call.1} parent=1 // pred_check
      _
    $region11: #{tpu_custom_call.1} parent=1 // pred_check_branch
      %47 = sbr.rel (0) target = $region13
    $region12: #{tpu_custom_call.1} parent=1 // pred_region
      %s49 = ssub.s32 3072, 3072
      %50 = vsyncadd [#allocation6], %s49
      %s51 = sshll.u32 [#allocation7], 4
      %s52 = int_to_ptr.vmem [resolvable:$true] %s51
      %57 = dma.hbm_to_vmem [thread:$0]  %s2, 3072, %s52, [#allocation6], 192, 192, 12
    $region13: #{tpu_custom_call.1} parent=1 // pred_fallthru
      _
    // Predicated region
    $region14: #{tpu_custom_call.1} parent=1 // pred_check
      _
    $region15: #{tpu_custom_call.1} parent=1 // pred_check_branch
      %59 = sbr.rel (0) target = $region17
    $region16: #{tpu_custom_call.1} parent=1 // pred_region
      %s61 = ssub.s32 1024, 1024
      %62 = vsyncadd [#allocation9], %s61
      %s63 = sshll.u32 [#allocation8], 4
      %s64 = int_to_ptr.vmem [resolvable:$true] %s63
      %69 = dma.hbm_to_vmem [thread:$0]  %s3, 1024, %s64, [#allocation9], 64, 64, 4
    $region17: #{tpu_custom_call.1} parent=1 // pred_fallthru
      _
    // Predicated region
    $region18: #{tpu_custom_call.1} parent=1 // pred_check
      _
    $region19: #{tpu_custom_call.1} parent=1 // pred_check_branch
      %71 = sbr.rel (0) target = $region21
    $region20: #{tpu_custom_call.1} parent=1 // pred_region
      %s73 = ssub.s32 1024, 1024
      %74 = vsyncadd [#allocation9], %s73
      %s75 = sshll.u32 [#allocation10], 4
      %s76 = int_to_ptr.vmem [resolvable:$true] %s75
      %81 = dma.hbm_to_vmem [thread:$0]  %s4, 1024, %s76, [#allocation9], 64, 64, 4
    $region21: #{tpu_custom_call.1} parent=1 // pred_fallthru
      _
    // Predicated region
    $region22: #{tpu_custom_call.1} parent=1 // pred_check
      _
    $region23: #{tpu_custom_call.1} parent=1 // pred_check_branch
      %83 = sbr.rel (0) target = $region25
    $region24: #{tpu_custom_call.1} parent=1 // pred_region
      %s85 = ssub.s32 2048, 2048
      %86 = vsyncadd [#allocation12], %s85
      %s87 = sshll.u32 [#allocation11], 4
      %s88 = int_to_ptr.vmem [resolvable:$true] %s87
      %93 = dma.hbm_to_vmem [thread:$0]  %s5, 2048, %s88, [#allocation12], 128, 128, 8
    $region25: #{tpu_custom_call.1} parent=1 // pred_fallthru
      _
    // Predicated region
    $region26: #{tpu_custom_call.1} parent=1 // pred_check
      _
    $region27: #{tpu_custom_call.1} parent=1 // pred_check_branch
      %95 = sbr.rel (0) target = $region29
    $region28: #{tpu_custom_call.1} parent=1 // pred_region
      %s97 = ssub.s32 1024, 1024
      %98 = vsyncadd [#allocation12], %s97
      %s99 = sshll.u32 [#allocation13], 4
      %s100 = int_to_ptr.vmem [resolvable:$true] %s99
      %105 = dma.hbm_to_vmem [thread:$0]  %s6, 1024, %s100, [#allocation12], 64, 64, 4
    $region29: #{tpu_custom_call.1} parent=1 // pred_fallthru
      _
    // Predicated region
    $region30: #{tpu_custom_call.1} parent=1 // pred_check
      _
    $region31: #{tpu_custom_call.1} parent=1 // pred_check_branch
      %107 = sbr.rel (0) target = $region33
    $region32: #{tpu_custom_call.1} parent=1 // pred_region
      %s109 = ssub.s32 2048, 2048
      %110 = vsyncadd [#allocation15], %s109
      %s111 = sshll.u32 [#allocation14], 4
      %s112 = int_to_ptr.vmem [resolvable:$true] %s111
      %117 = dma.hbm_to_vmem [thread:$0]  %s7, 2048, %s112, [#allocation15], 128, 128, 8
    $region33: #{tpu_custom_call.1} parent=1 // pred_fallthru
      _
    // Predicated region
    $region34: #{tpu_custom_call.1} parent=1 // pred_check
      _
    $region35: #{tpu_custom_call.1} parent=1 // pred_check_branch
      %119 = sbr.rel (0) target = $region37
    $region36: #{tpu_custom_call.1} parent=1 // pred_region
      %s121 = ssub.s32 2048, 2048
      %122 = vsyncadd [#allocation15], %s121
      %s123 = sshll.u32 [#allocation16], 4
      %s124 = int_to_ptr.vmem [resolvable:$true] %s123
      %129 = dma.hbm_to_vmem [thread:$0]  %s8, 2048, %s124, [#allocation15], 64, 64, 4
    $region37: #{tpu_custom_call.1} parent=1 // pred_fallthru
      _
    // Predicated region
    $region38: #{tpu_custom_call.1} parent=1 // pred_check
      _
    $region39: #{tpu_custom_call.1} parent=1 // pred_check_branch
      %131 = sbr.rel (0) target = $region41
    $region40: #{tpu_custom_call.1} parent=1 // pred_region
      _
    $region41: #{tpu_custom_call.1} parent=1 // pred_fallthru
      _
    // Predicated region
    $region42: #{tpu_custom_call.1} parent=1 // pred_check
      _
    $region43: #{tpu_custom_call.1} parent=1 // pred_check_branch
      %133 = sbr.rel (0) target = $region45
    $region44: #{tpu_custom_call.1} parent=1 // pred_region
      _
    $region45: #{tpu_custom_call.1} parent=1 // pred_fallthru
      _
    // Predicated region
    $region46: #{tpu_custom_call.1} parent=1 // pred_check
      _
    $region47: #{tpu_custom_call.1} parent=1 // pred_check_branch
      %135 = sbr.rel (0) target = $region49
    $region48: #{tpu_custom_call.1} parent=1 // pred_region
      %136 = dma.done [#allocation3], 512
    $region49: #{tpu_custom_call.1} parent=1 // pred_fallthru
      _
    // Predicated region
    $region50: #{tpu_custom_call.1} parent=1 // pred_check
      _
    $region51: #{tpu_custom_call.1} parent=1 // pred_check_branch
      %138 = sbr.rel (0) target = $region53
    $region52: #{tpu_custom_call.1} parent=1 // pred_region
      %139 = dma.done [#allocation6], 512
    $region53: #{tpu_custom_call.1} parent=1 // pred_fallthru
      _
    // Predicated region
    $region54: #{tpu_custom_call.1} parent=1 // pred_check
      _
    $region55: #{tpu_custom_call.1} parent=1 // pred_check_branch
      %141 = sbr.rel (0) target = $region57
    $region56: #{tpu_custom_call.1} parent=1 // pred_region
      %142 = dma.done [#allocation6], 3072
    $region57: #{tpu_custom_call.1} parent=1 // pred_fallthru
      _
    // Predicated region
    $region58: #{tpu_custom_call.1} parent=1 // pred_check
      _
    $region59: #{tpu_custom_call.1} parent=1 // pred_check_branch
      %144 = sbr.rel (0) target = $region61
    $region60: #{tpu_custom_call.1} parent=1 // pred_region
      %145 = dma.done [#allocation9], 1024
    $region61: #{tpu_custom_call.1} parent=1 // pred_fallthru
      _
    // Predicated region
    $region62: #{tpu_custom_call.1} parent=1 // pred_check
      _
    $region63: #{tpu_custom_call.1} parent=1 // pred_check_branch
      %147 = sbr.rel (0) target = $region65
    $region64: #{tpu_custom_call.1} parent=1 // pred_region
      %148 = dma.done [#allocation9], 1024
    $region65: #{tpu_custom_call.1} parent=1 // pred_fallthru
      _
    // Predicated region
    $region66: #{tpu_custom_call.1} parent=1 // pred_check
      _
    $region67: #{tpu_custom_call.1} parent=1 // pred_check_branch
      %150 = sbr.rel (0) target = $region69
    $region68: #{tpu_custom_call.1} parent=1 // pred_region
      %151 = dma.done [#allocation12], 2048
    $region69: #{tpu_custom_call.1} parent=1 // pred_fallthru
      _
    // Predicated region
    $region70: #{tpu_custom_call.1} parent=1 // pred_check
      _
    $region71: #{tpu_custom_call.1} parent=1 // pred_check_branch
      %153 = sbr.rel (0) target = $region73
    $region72: #{tpu_custom_call.1} parent=1 // pred_region
      %154 = dma.done [#allocation12], 1024
    $region73: #{tpu_custom_call.1} parent=1 // pred_fallthru
      _
    // Predicated region
    $region74: #{tpu_custom_call.1} parent=1 // pred_check
      _
    $region75: #{tpu_custom_call.1} parent=1 // pred_check_branch
      %156 = sbr.rel (0) target = $region77
    $region76: #{tpu_custom_call.1} parent=1 // pred_region
      %157 = dma.done [#allocation15], 2048
    $region77: #{tpu_custom_call.1} parent=1 // pred_fallthru
      _
    // Predicated region
    $region78: #{tpu_custom_call.1} parent=1 // pred_check
      _
    $region79: #{tpu_custom_call.1} parent=1 // pred_check_branch
      %159 = sbr.rel (0) target = $region81
    $region80: #{tpu_custom_call.1} parent=1 // pred_region
      %160 = dma.done [#allocation15], 2048
    $region81: #{tpu_custom_call.1} parent=1 // pred_fallthru
      _
    %v162 = vld [vmem:[#allocation2] sm:$0xff]
    %v163 = vld [vmem:[#allocation2 + $0x8] sm:$0xff]
    %v164 = vld [vmem:[#allocation2 + $0x10] sm:$0xff]
    %v165 = vld [vmem:[#allocation2 + $0x18] sm:$0xff]
    %v166 = vld [vmem:[#allocation5] sm:$0xff]
    %v167 = vld [vmem:[#allocation5 + $0x8] sm:$0xff]
    %v168 = vld [vmem:[#allocation5 + $0x10] sm:$0xff]
    %v169 = vld [vmem:[#allocation5 + $0x18] sm:$0xff]
    %v170 = vld [vmem:[%s9] sm:$0xff]
    %v171 = vld [vmem:[%s9 + $0x8] sm:$0x7f]
    %v172 = vld [vmem:[%s10] sm:$0x3]
    %v173 = vld [vmem:[#allocation7] sm:$0xff]
    %v174 = vld [vmem:[#allocation7 + $0x8] sm:$0xf]
    %v175 = vld [vmem:[#allocation7 + $0xc] sm:$0xff]
    %v176 = vld [vmem:[#allocation7 + $0x14] sm:$0xf]
    %v177 = vld [vmem:[#allocation7 + $0x18] sm:$0xff]
    %v178 = vld [vmem:[#allocation7 + $0x20] sm:$0xf]
    %v179 = vld [vmem:[#allocation7 + $0x24] sm:$0xff]
    %v180 = vld [vmem:[#allocation7 + $0x2c] sm:$0xf]
    %v181 = vld [vmem:[#allocation7 + $0x30] sm:$0xff]
    %v182 = vld [vmem:[#allocation7 + $0x38] sm:$0xf]
    %v183 = vld [vmem:[#allocation7 + $0x3c] sm:$0xff]
    %v184 = vld [vmem:[#allocation7 + $0x44] sm:$0xf]
    %v185 = vld [vmem:[#allocation7 + $0x48] sm:$0xff]
    %v186 = vld [vmem:[#allocation7 + $0x50] sm:$0xf]
    %v187 = vld [vmem:[#allocation7 + $0x54] sm:$0xff]
    %v188 = vld [vmem:[#allocation7 + $0x5c] sm:$0xf]
    %v189 = vld [vmem:[#allocation7 + $0x60] sm:$0xff]
    %v190 = vld [vmem:[#allocation7 + $0x68] sm:$0xf]
    %v191 = vld [vmem:[#allocation7 + $0x6c] sm:$0xff]
    %v192 = vld [vmem:[#allocation7 + $0x74] sm:$0xf]
    %v193 = vld [vmem:[#allocation7 + $0x78] sm:$0xff]
    %v194 = vld [vmem:[#allocation7 + $0x80] sm:$0xf]
    %v195 = vld [vmem:[#allocation7 + $0x84] sm:$0xff]
    %v196 = vld [vmem:[#allocation7 + $0x8c] sm:$0xf]
    %v197 = vld [vmem:[#allocation7 + $0x90] sm:$0xff]
    %v198 = vld [vmem:[#allocation7 + $0x98] sm:$0xf]
    %v199 = vld [vmem:[#allocation7 + $0x9c] sm:$0xff]
    %v200 = vld [vmem:[#allocation7 + $0xa4] sm:$0xf]
    %v201 = vld [vmem:[#allocation7 + $0xa8] sm:$0xff]
    %v202 = vld [vmem:[#allocation7 + $0xb0] sm:$0xf]
    %v203 = vld [vmem:[#allocation7 + $0xb4] sm:$0xff]
    %v204 = vld [vmem:[#allocation7 + $0xbc] sm:$0xf]
    %v205 = vpack.c.bf16 %v163, %v162
    %v206 = vpack.c.bf16 %v165, %v164
    %v239 = vunpack.c.l.b16 %v173
    %v240 = vunpack.c.h.b16 %v173
    %v241 = vunpack.c.l.b16 %v174
    %v242 = vunpack.c.l.b16 %v175
    %v243 = vunpack.c.h.b16 %v175
    %v244 = vunpack.c.l.b16 %v176
    %v245 = vunpack.c.l.b16 %v177
    %v246 = vunpack.c.h.b16 %v177
    %v247 = vunpack.c.l.b16 %v178
    %v248 = vunpack.c.l.b16 %v179
    %v249 = vunpack.c.h.b16 %v179
    %v250 = vunpack.c.l.b16 %v180
    %v251 = vunpack.c.l.b16 %v181
    %v252 = vunpack.c.h.b16 %v181
    %v253 = vunpack.c.l.b16 %v182
    %v254 = vunpack.c.l.b16 %v183
    %v255 = vunpack.c.h.b16 %v183
    %v256 = vunpack.c.l.b16 %v184
    %v257 = vunpack.c.l.b16 %v185
    %v258 = vunpack.c.h.b16 %v185
    %v259 = vunpack.c.l.b16 %v186
    %v260 = vunpack.c.l.b16 %v187
    %v261 = vunpack.c.h.b16 %v187
    %v262 = vunpack.c.l.b16 %v188
    %v263 = vunpack.c.l.b16 %v189
    %v264 = vunpack.c.h.b16 %v189
    %v265 = vunpack.c.l.b16 %v190
    %v266 = vunpack.c.l.b16 %v191
    %v267 = vunpack.c.h.b16 %v191
    %v268 = vunpack.c.l.b16 %v192
    %v269 = vunpack.c.l.b16 %v193
    %v270 = vunpack.c.h.b16 %v193
    %v271 = vunpack.c.l.b16 %v194
    %v272 = vunpack.c.l.b16 %v195
    %v273 = vunpack.c.h.b16 %v195
    %v274 = vunpack.c.l.b16 %v196
    %v275 = vunpack.c.l.b16 %v197
    %v276 = vunpack.c.h.b16 %v197
    %v277 = vunpack.c.l.b16 %v198
    %v278 = vunpack.c.l.b16 %v199
    %v279 = vunpack.c.h.b16 %v199
    %v280 = vunpack.c.l.b16 %v200
    %v281 = vunpack.c.l.b16 %v201
    %v282 = vunpack.c.h.b16 %v201
    %v283 = vunpack.c.l.b16 %v202
    %v284 = vunpack.c.l.b16 %v203
    %v285 = vunpack.c.h.b16 %v203
    %v286 = vunpack.c.l.b16 %v204
    %v287 = vpack.c.b16 %v242, %v239
    %v288 = vpack.c.b16 %v243, %v240
    %v289 = vpack.c.b16 %v244, %v241
    %v290 = vpack.c.b16 %v248, %v245
    %v291 = vpack.c.b16 %v249, %v246
    %v292 = vpack.c.b16 %v250, %v247
    %v293 = vpack.c.b16 %v254, %v251
    %v294 = vpack.c.b16 %v255, %v252
    %v295 = vpack.c.b16 %v256, %v253
    %v296 = vpack.c.b16 %v260, %v257
    %v297 = vpack.c.b16 %v261, %v258
    %v298 = vpack.c.b16 %v262, %v259
    %v299 = vpack.c.b16 %v266, %v263
    %v300 = vpack.c.b16 %v267, %v264
    %v301 = vpack.c.b16 %v268, %v265
    %v302 = vpack.c.b16 %v272, %v269
    %v303 = vpack.c.b16 %v273, %v270
    %v304 = vpack.c.b16 %v274, %v271
    %v305 = vpack.c.b16 %v278, %v275
    %v306 = vpack.c.b16 %v279, %v276
    %v307 = vpack.c.b16 %v280, %v277
    %v308 = vpack.c.b16 %v284, %v281
    %v309 = vpack.c.b16 %v285, %v282
    %v310 = vpack.c.b16 %v286, %v283
    %335 = vmatprep.subr.bf16.mxu0 %v309
    %336 = vmatpush1.bf16.msra.mxu0 %v308
    %337 = vmatprep.subr.bf16.mxu0 %v306
    %338 = vmatpush1.bf16.msra.mxu0 %v305
    %339 = vmatprep.subr.bf16.mxu0 %v303
    %340 = vmatpush1.bf16.msra.mxu0 %v302
    %341 = vmatprep.subr.bf16.mxu0 %v300
    %342 = vmatpush1.bf16.msra.mxu0 %v299
    %343 = vmatprep.subr.bf16.mxu0 %v297
    %344 = vmatpush1.bf16.msra.mxu0 %v296
    %345 = vmatprep.subr.bf16.mxu0 %v294
    %346 = vmatpush1.bf16.msra.mxu0 %v293
    %347 = vmatprep.subr.bf16.mxu0 %v291
    %348 = vmatpush1.bf16.msra.mxu0 %v290
    %349 = vmatprep.subr.bf16.mxu0 %v288
    %350 = vmatpush1.bf16.msra.mxu0 %v287
    %351 = vmatprep.subr.bf16.mxu0 0
    %352 = vmatpush2.bf16.msra.mxu0 0
    %353 = vmatprep.subr.bf16.mxu0 0
    %354 = vmatpush2.bf16.msra.mxu0 0
    %355 = vmatprep.subr.bf16.mxu0 0
    %356 = vmatpush2.bf16.msra.mxu0 0
    %357 = vmatprep.subr.bf16.mxu0 0
    %358 = vmatpush2.bf16.msra.mxu0 0
    %359 = vmatprep.subr.bf16.mxu0 0
    %360 = vmatpush2.bf16.msra.mxu0 0
    %361 = vmatprep.subr.bf16.mxu0 0
    %362 = vmatpush2.bf16.msra.mxu0 0
    %363 = vmatprep.subr.bf16.mxu0 0
    %364 = vmatpush2.bf16.msra.mxu0 0
    %365 = vmatprep.subr.bf16.mxu0 0
    %366 = vmatpush2.bf16.msra.mxu0 0
    %367 = vmatprep.mubr.bf16.mxu0 0
    %368 = vmatmul.mubr.bf16.gmra.mxu0 %v205
    %v369 = vpop.f32.mrf.mxu0
    %v370 = vadd.f32 0.0, %v369
    %v371 = vpop.f32.mrf.mxu0
    %v372 = vadd.f32 0.0, %v371
    %v373 = vpop.f32.mrf.mxu0
    %v374 = vadd.f32 0.0, %v373
    %v375 = vpop.f32.mrf.mxu0
    %v376 = vadd.f32 0.0, %v375
    %377 = vmatprep.mubr.bf16.mxu0 0
    %378 = vmatmul.mubr.bf16.gmra.mxu0 %v206
    %v379 = vpop.f32.mrf.mxu0
    %v380 = vadd.f32 0.0, %v379
    %v381 = vpop.f32.mrf.mxu0
    %v382 = vadd.f32 0.0, %v381
    %v383 = vpop.f32.mrf.mxu0
    %v384 = vadd.f32 0.0, %v383
    %v385 = vpop.f32.mrf.mxu0
    %v386 = vadd.f32 0.0, %v385
    %387 = vdwg.mxu0
    %388 = vmatprep.subr.bf16.mxu0 0
    %389 = vmatpush1.bf16.msra.mxu0 %v310
    %390 = vmatprep.subr.bf16.mxu0 0
    %391 = vmatpush1.bf16.msra.mxu0 %v307
    %392 = vmatprep.subr.bf16.mxu0 0
    %393 = vmatpush1.bf16.msra.mxu0 %v304
    %394 = vmatprep.subr.bf16.mxu0 0
    %395 = vmatpush1.bf16.msra.mxu0 %v301
    %396 = vmatprep.subr.bf16.mxu0 0
    %397 = vmatpush1.bf16.msra.mxu0 %v298
    %398 = vmatprep.subr.bf16.mxu0 0
    %399 = vmatpush1.bf16.msra.mxu0 %v295
    %400 = vmatprep.subr.bf16.mxu0 0
    %401 = vmatpush1.bf16.msra.mxu0 %v292
    %402 = vmatprep.subr.bf16.mxu0 0
    %403 = vmatpush1.bf16.msra.mxu0 %v289
    %404 = vmatprep.subr.bf16.mxu0 0
    %405 = vmatpush2.bf16.msra.mxu0 0
    %406 = vmatprep.subr.bf16.mxu0 0
    %407 = vmatpush2.bf16.msra.mxu0 0
    %408 = vmatprep.subr.bf16.mxu0 0
    %409 = vmatpush2.bf16.msra.mxu0 0
    %410 = vmatprep.subr.bf16.mxu0 0
    %411 = vmatpush2.bf16.msra.mxu0 0
    %412 = vmatprep.subr.bf16.mxu0 0
    %413 = vmatpush2.bf16.msra.mxu0 0
    %414 = vmatprep.subr.bf16.mxu0 0
    %415 = vmatpush2.bf16.msra.mxu0 0
    %416 = vmatprep.subr.bf16.mxu0 0
    %417 = vmatpush2.bf16.msra.mxu0 0
    %418 = vmatprep.subr.bf16.mxu0 0
    %419 = vmatpush2.bf16.msra.mxu0 0
    %420 = vmatprep.mubr.bf16.mxu0 0
    %421 = vmatmul.mubr.bf16.gmra.mxu0 %v205
    %v422 = vpop.f32.mrf.mxu0
    %v423 = vadd.f32 0.0, %v422
    %v424 = vpop.f32.mrf.mxu0
    %v425 = vpop.f32.mrf.mxu0
    %v426 = vadd.f32 0.0, %v425
    %v427 = vpop.f32.mrf.mxu0
    %428 = vmatprep.mubr.bf16.mxu0 0
    %429 = vmatmul.mubr.bf16.gmra.mxu0 %v206
    %v430 = vpop.f32.mrf.mxu0
    %v431 = vadd.f32 0.0, %v430
    %v432 = vpop.f32.mrf.mxu0
    %v433 = vpop.f32.mrf.mxu0
    %v434 = vadd.f32 0.0, %v433
    %v435 = vpop.f32.mrf.mxu0
    %436 = vdwg.mxu0
    %v437 = vlaneseq
    %v438 = vshrl.u32 %v437, 7
    %v439 = vsub.s32 0, %v438
    %v440 = vrot.slane %v170, %v439
    %v441 = vadd.f32 %v370, %v440
    %v442 = vadd.f32 %v374, %v440
    %v443 = vadd.f32 %v380, %v440
    %v444 = vadd.f32 %v384, %v440
    %v445 = vlaneseq
    %v446 = vshrl.u32 %v445, 7
    %v447 = vsub.s32 1, %v446
    %v448 = vrot.slane %v170, %v447
    %v449 = vadd.f32 %v372, %v448
    %v450 = vadd.f32 %v376, %v448
    %v451 = vadd.f32 %v382, %v448
    %v452 = vadd.f32 %v386, %v448
    %v453 = vlaneseq
    %v454 = vshrl.u32 %v453, 7
    %v455 = vsub.s32 2, %v454
    %v456 = vrot.slane %v170, %v455
    %v457 = vadd.f32 %v423, %v456
    %v458 = vadd.f32 %v426, %v456
    %v459 = vadd.f32 %v431, %v456
    %v460 = vadd.f32 %v434, %v456
    %v461 = vpack.c.bf16 %v442, %v441
    %v462 = vpack.c.bf16 %v444, %v443
    %v463 = vpack.c.bf16 %v450, %v449
    %v464 = vpack.c.bf16 %v452, %v451
    %v465 = vpack.c.bf16 %v458, %v457
    %v466 = vpack.c.bf16 %v460, %v459
    %vm467 = vcmask 261120
    %v469 = vsel %vm467, %v461, 0
    %v472 = vsel %vm467, %v463, 0
    %474 = vmatprep.subr.bf16.mxu0 0
    %475 = vmatpush1.bf16.xpose.msra.mxu0 0
    %476 = vmatprep.subr.bf16.mxu0 0
    %477 = vmatpush1.bf16.xpose.msra.mxu0 0
    %478 = vmatprep.subr.bf16.mxu0 0
    %479 = vmatpush1.bf16.xpose.msra.mxu0 0
    %480 = vmatprep.subr.bf16.mxu0 0
    %481 = vmatpush1.bf16.xpose.msra.mxu0 0
    %482 = vmatprep.subr.bf16.mxu0 0
    %483 = vmatpush1.bf16.xpose.msra.mxu0 0
    %484 = vmatprep.subr.bf16.mxu0 0
    %485 = vmatpush1.bf16.xpose.msra.mxu0 0
    %486 = vmatprep.subr.bf16.mxu0 0
    %487 = vmatpush1.bf16.xpose.msra.mxu0 0
    %488 = vmatprep.subr.bf16.mxu0 0
    %489 = vmatpush1.bf16.xpose.msra.mxu0 %v472
    %490 = vmatprep.subr.bf16.mxu0 0
    %491 = vmatpush2.bf16.xpose.msra.mxu0 0
    %492 = vmatprep.subr.bf16.mxu0 0
    %493 = vmatpush2.bf16.xpose.msra.mxu0 0
    %494 = vmatprep.subr.bf16.mxu0 0
    %495 = vmatpush2.bf16.xpose.msra.mxu0 0
    %496 = vmatprep.subr.bf16.mxu0 0
    %497 = vmatpush2.bf16.xpose.msra.mxu0 0
    %498 = vmatprep.subr.bf16.mxu0 0
    %499 = vmatpush2.bf16.xpose.msra.mxu0 0
    %500 = vmatprep.subr.bf16.mxu0 0
    %501 = vmatpush2.bf16.xpose.msra.mxu0 0
    %502 = vmatprep.subr.bf16.mxu0 0
    %503 = vmatpush2.bf16.xpose.msra.mxu0 0
    %504 = vmatprep.subr.bf16.mxu0 0
    %505 = vmatpush2.bf16.xpose.msra.mxu0 0
    %506 = vmatprep.mubr.bf16.mxu0 0
    %507 = vmatmul.mubr.bf16.gmra.mxu0 %v469
    %v508 = vpop.f32.mrf.mxu0
    %v509 = vadd.f32 0.0, %v508
    %v510 = vpop.f32.mrf.mxu0
    %v511 = vpop.f32.mrf.mxu0
    %v512 = vadd.f32 0.0, %v511
    %v513 = vpop.f32.mrf.mxu0
    %514 = vdwg.mxu0
    %516 = vrot.lane.b32.xlu0 %v461, 96
    %v517 = vpop.permute.xlu0 %516
    %519 = vrot.lane.b32.xlu0 %v463, 96
    %v520 = vpop.permute.xlu0 %519
    %v522 = vsel %vm467, %v517, 0
    %v525 = vsel %vm467, %v520, 0
    %527 = vmatprep.subr.bf16.mxu0 0
    %528 = vmatpush1.bf16.xpose.msra.mxu0 0
    %529 = vmatprep.subr.bf16.mxu0 0
    %530 = vmatpush1.bf16.xpose.msra.mxu0 0
    %531 = vmatprep.subr.bf16.mxu0 0
    %532 = vmatpush1.bf16.xpose.msra.mxu0 0
    %533 = vmatprep.subr.bf16.mxu0 0
    %534 = vmatpush1.bf16.xpose.msra.mxu0 0
    %535 = vmatprep.subr.bf16.mxu0 0
    %536 = vmatpush1.bf16.xpose.msra.mxu0 0
    %537 = vmatprep.subr.bf16.mxu0 0
    %538 = vmatpush1.bf16.xpose.msra.mxu0 0
    %539 = vmatprep.subr.bf16.mxu0 0
    %540 = vmatpush1.bf16.xpose.msra.mxu0 0
    %541 = vmatprep.subr.bf16.mxu0 0
    %542 = vmatpush1.bf16.xpose.msra.mxu0 %v525
    %543 = vmatprep.subr.bf16.mxu0 0
    %544 = vmatpush2.bf16.xpose.msra.mxu0 0
    %545 = vmatprep.subr.bf16.mxu0 0
    %546 = vmatpush2.bf16.xpose.msra.mxu0 0
    %547 = vmatprep.subr.bf16.mxu0 0
    %548 = vmatpush2.bf16.xpose.msra.mxu0 0
    %549 = vmatprep.subr.bf16.mxu0 0
    %550 = vmatpush2.bf16.xpose.msra.mxu0 0
    %551 = vmatprep.subr.bf16.mxu0 0
    %552 = vmatpush2.bf16.xpose.msra.mxu0 0
    %553 = vmatprep.subr.bf16.mxu0 0
    %554 = vmatpush2.bf16.xpose.msra.mxu0 0
    %555 = vmatprep.subr.bf16.mxu0 0
    %556 = vmatpush2.bf16.xpose.msra.mxu0 0
    %557 = vmatprep.subr.bf16.mxu0 0
    %558 = vmatpush2.bf16.xpose.msra.mxu0 0
    %559 = vmatprep.mubr.bf16.mxu0 0
    %560 = vmatmul.mubr.bf16.gmra.mxu0 %v522
    %v561 = vpop.f32.mrf.mxu0
    %v562 = vadd.f32 0.0, %v561
    %v563 = vpop.f32.mrf.mxu0
    %v564 = vpop.f32.mrf.mxu0
    %v565 = vadd.f32 0.0, %v564
    %v566 = vpop.f32.mrf.mxu0
    %567 = vdwg.mxu0
    %568 = vrot.lane.b32.xlu0 %v461, 64
    %v569 = vpop.permute.xlu0 %568
    %570 = vrot.lane.b32.xlu0 %v463, 64
    %v571 = vpop.permute.xlu0 %570
    %v573 = vsel %vm467, %v569, 0
    %v576 = vsel %vm467, %v571, 0
    %578 = vmatprep.subr.bf16.mxu0 0
    %579 = vmatpush1.bf16.xpose.msra.mxu0 0
    %580 = vmatprep.subr.bf16.mxu0 0
    %581 = vmatpush1.bf16.xpose.msra.mxu0 0
    %582 = vmatprep.subr.bf16.mxu0 0
    %583 = vmatpush1.bf16.xpose.msra.mxu0 0
    %584 = vmatprep.subr.bf16.mxu0 0
    %585 = vmatpush1.bf16.xpose.msra.mxu0 0
    %586 = vmatprep.subr.bf16.mxu0 0
    %587 = vmatpush1.bf16.xpose.msra.mxu0 0
    %588 = vmatprep.subr.bf16.mxu0 0
    %589 = vmatpush1.bf16.xpose.msra.mxu0 0
    %590 = vmatprep.subr.bf16.mxu0 0
    %591 = vmatpush1.bf16.xpose.msra.mxu0 0
    %592 = vmatprep.subr.bf16.mxu0 0
    %593 = vmatpush1.bf16.xpose.msra.mxu0 %v576
    %594 = vmatprep.subr.bf16.mxu0 0
    %595 = vmatpush2.bf16.xpose.msra.mxu0 0
    %596 = vmatprep.subr.bf16.mxu0 0
    %597 = vmatpush2.bf16.xpose.msra.mxu0 0
    %598 = vmatprep.subr.bf16.mxu0 0
    %599 = vmatpush2.bf16.xpose.msra.mxu0 0
    %600 = vmatprep.subr.bf16.mxu0 0
    %601 = vmatpush2.bf16.xpose.msra.mxu0 0
    %602 = vmatprep.subr.bf16.mxu0 0
    %603 = vmatpush2.bf16.xpose.msra.mxu0 0
    %604 = vmatprep.subr.bf16.mxu0 0
    %605 = vmatpush2.bf16.xpose.msra.mxu0 0
    %606 = vmatprep.subr.bf16.mxu0 0
    %607 = vmatpush2.bf16.xpose.msra.mxu0 0
    %608 = vmatprep.subr.bf16.mxu0 0
    %609 = vmatpush2.bf16.xpose.msra.mxu0 0
    %610 = vmatprep.mubr.bf16.mxu0 0
    %611 = vmatmul.mubr.bf16.gmra.mxu0 %v573
    %v612 = vpop.f32.mrf.mxu0
    %v613 = vadd.f32 0.0, %v612
    %v614 = vpop.f32.mrf.mxu0
    %v615 = vpop.f32.mrf.mxu0
    %v616 = vadd.f32 0.0, %v615
    %v617 = vpop.f32.mrf.mxu0
    %618 = vdwg.mxu0
    %619 = vrot.lane.b32.xlu0 %v461, 32
    %v620 = vpop.permute.xlu0 %619
    %621 = vrot.lane.b32.xlu0 %v463, 32
    %v622 = vpop.permute.xlu0 %621
    %v624 = vsel %vm467, %v620, 0
    %v627 = vsel %vm467, %v622, 0
    %629 = vmatprep.subr.bf16.mxu0 0
    %630 = vmatpush1.bf16.xpose.msra.mxu0 0
    %631 = vmatprep.subr.bf16.mxu0 0
    %632 = vmatpush1.bf16.xpose.msra.mxu0 0
    %633 = vmatprep.subr.bf16.mxu0 0
    %634 = vmatpush1.bf16.xpose.msra.mxu0 0
    %635 = vmatprep.subr.bf16.mxu0 0
    %636 = vmatpush1.bf16.xpose.msra.mxu0 0
    %637 = vmatprep.subr.bf16.mxu0 0
    %638 = vmatpush1.bf16.xpose.msra.mxu0 0
    %639 = vmatprep.subr.bf16.mxu0 0
    %640 = vmatpush1.bf16.xpose.msra.mxu0 0
    %641 = vmatprep.subr.bf16.mxu0 0
    %642 = vmatpush1.bf16.xpose.msra.mxu0 0
    %643 = vmatprep.subr.bf16.mxu0 0
    %644 = vmatpush1.bf16.xpose.msra.mxu0 %v627
    %645 = vmatprep.subr.bf16.mxu0 0
    %646 = vmatpush2.bf16.xpose.msra.mxu0 0
    %647 = vmatprep.subr.bf16.mxu0 0
    %648 = vmatpush2.bf16.xpose.msra.mxu0 0
    %649 = vmatprep.subr.bf16.mxu0 0
    %650 = vmatpush2.bf16.xpose.msra.mxu0 0
    %651 = vmatprep.subr.bf16.mxu0 0
    %652 = vmatpush2.bf16.xpose.msra.mxu0 0
    %653 = vmatprep.subr.bf16.mxu0 0
    %654 = vmatpush2.bf16.xpose.msra.mxu0 0
    %655 = vmatprep.subr.bf16.mxu0 0
    %656 = vmatpush2.bf16.xpose.msra.mxu0 0
    %657 = vmatprep.subr.bf16.mxu0 0
    %658 = vmatpush2.bf16.xpose.msra.mxu0 0
    %659 = vmatprep.subr.bf16.mxu0 0
    %660 = vmatpush2.bf16.xpose.msra.mxu0 0
    %661 = vmatprep.mubr.bf16.mxu0 0
    %662 = vmatmul.mubr.bf16.gmra.mxu0 %v624
    %v663 = vpop.f32.mrf.mxu0
    %v664 = vadd.f32 0.0, %v663
    %v665 = vpop.f32.mrf.mxu0
    %v666 = vpop.f32.mrf.mxu0
    %v667 = vadd.f32 0.0, %v666
    %v668 = vpop.f32.mrf.mxu0
    %669 = vdwg.mxu0
    %v671 = vsel %vm467, %v462, 0
    %v674 = vsel %vm467, %v464, 0
    %676 = vmatprep.subr.bf16.mxu0 0
    %677 = vmatpush1.bf16.xpose.msra.mxu0 0
    %678 = vmatprep.subr.bf16.mxu0 0
    %679 = vmatpush1.bf16.xpose.msra.mxu0 0
    %680 = vmatprep.subr.bf16.mxu0 0
    %681 = vmatpush1.bf16.xpose.msra.mxu0 0
    %682 = vmatprep.subr.bf16.mxu0 0
    %683 = vmatpush1.bf16.xpose.msra.mxu0 0
    %684 = vmatprep.subr.bf16.mxu0 0
    %685 = vmatpush1.bf16.xpose.msra.mxu0 0
    %686 = vmatprep.subr.bf16.mxu0 0
    %687 = vmatpush1.bf16.xpose.msra.mxu0 0
    %688 = vmatprep.subr.bf16.mxu0 0
    %689 = vmatpush1.bf16.xpose.msra.mxu0 0
    %690 = vmatprep.subr.bf16.mxu0 0
    %691 = vmatpush1.bf16.xpose.msra.mxu0 %v674
    %692 = vmatprep.subr.bf16.mxu0 0
    %693 = vmatpush2.bf16.xpose.msra.mxu0 0
    %694 = vmatprep.subr.bf16.mxu0 0
    %695 = vmatpush2.bf16.xpose.msra.mxu0 0
    %696 = vmatprep.subr.bf16.mxu0 0
    %697 = vmatpush2.bf16.xpose.msra.mxu0 0
    %698 = vmatprep.subr.bf16.mxu0 0
    %699 = vmatpush2.bf16.xpose.msra.mxu0 0
    %700 = vmatprep.subr.bf16.mxu0 0
    %701 = vmatpush2.bf16.xpose.msra.mxu0 0
    %702 = vmatprep.subr.bf16.mxu0 0
    %703 = vmatpush2.bf16.xpose.msra.mxu0 0
    %704 = vmatprep.subr.bf16.mxu0 0
    %705 = vmatpush2.bf16.xpose.msra.mxu0 0
    %706 = vmatprep.subr.bf16.mxu0 0
    %707 = vmatpush2.bf16.xpose.msra.mxu0 0
    %708 = vmatprep.mubr.bf16.mxu0 0
    %709 = vmatmul.mubr.bf16.gmra.mxu0 %v671
    %v710 = vpop.f32.mrf.mxu0
    %v711 = vadd.f32 0.0, %v710
    %v712 = vpop.f32.mrf.mxu0
    %v713 = vpop.f32.mrf.mxu0
    %v714 = vadd.f32 0.0, %v713
    %v715 = vpop.f32.mrf.mxu0
    %716 = vdwg.mxu0
    %718 = vrot.lane.b32.xlu0 %v462, 96
    %v719 = vpop.permute.xlu0 %718
    %721 = vrot.lane.b32.xlu0 %v464, 96
    %v722 = vpop.permute.xlu0 %721
    %v724 = vsel %vm467, %v719, 0
    %v727 = vsel %vm467, %v722, 0
    %729 = vmatprep.subr.bf16.mxu0 0
    %730 = vmatpush1.bf16.xpose.msra.mxu0 0
    %731 = vmatprep.subr.bf16.mxu0 0
    %732 = vmatpush1.bf16.xpose.msra.mxu0 0
    %733 = vmatprep.subr.bf16.mxu0 0
    %734 = vmatpush1.bf16.xpose.msra.mxu0 0
    %735 = vmatprep.subr.bf16.mxu0 0
    %736 = vmatpush1.bf16.xpose.msra.mxu0 0
    %737 = vmatprep.subr.bf16.mxu0 0
    %738 = vmatpush1.bf16.xpose.msra.mxu0 0
    %739 = vmatprep.subr.bf16.mxu0 0
    %740 = vmatpush1.bf16.xpose.msra.mxu0 0
    %741 = vmatprep.subr.bf16.mxu0 0
    %742 = vmatpush1.bf16.xpose.msra.mxu0 0
    %743 = vmatprep.subr.bf16.mxu0 0
    %744 = vmatpush1.bf16.xpose.msra.mxu0 %v727
    %745 = vmatprep.subr.bf16.mxu0 0
    %746 = vmatpush2.bf16.xpose.msra.mxu0 0
    %747 = vmatprep.subr.bf16.mxu0 0
    %748 = vmatpush2.bf16.xpose.msra.mxu0 0
    %749 = vmatprep.subr.bf16.mxu0 0
    %750 = vmatpush2.bf16.xpose.msra.mxu0 0
    %751 = vmatprep.subr.bf16.mxu0 0
    %752 = vmatpush2.bf16.xpose.msra.mxu0 0
    %753 = vmatprep.subr.bf16.mxu0 0
    %754 = vmatpush2.bf16.xpose.msra.mxu0 0
    %755 = vmatprep.subr.bf16.mxu0 0
    %756 = vmatpush2.bf16.xpose.msra.mxu0 0
    %757 = vmatprep.subr.bf16.mxu0 0
    %758 = vmatpush2.bf16.xpose.msra.mxu0 0
    %759 = vmatprep.subr.bf16.mxu0 0
    %760 = vmatpush2.bf16.xpose.msra.mxu0 0
    %761 = vmatprep.mubr.bf16.mxu0 0
    %762 = vmatmul.mubr.bf16.gmra.mxu0 %v724
    %v763 = vpop.f32.mrf.mxu0
    %v764 = vadd.f32 0.0, %v763
    %v765 = vpop.f32.mrf.mxu0
    %v766 = vpop.f32.mrf.mxu0
    %v767 = vadd.f32 0.0, %v766
    %v768 = vpop.f32.mrf.mxu0
    %769 = vdwg.mxu0
    %770 = vrot.lane.b32.xlu0 %v462, 64
    %v771 = vpop.permute.xlu0 %770
    %772 = vrot.lane.b32.xlu0 %v464, 64
    %v773 = vpop.permute.xlu0 %772
    %v775 = vsel %vm467, %v771, 0
    %v778 = vsel %vm467, %v773, 0
    %780 = vmatprep.subr.bf16.mxu0 0
    %781 = vmatpush1.bf16.xpose.msra.mxu0 0
    %782 = vmatprep.subr.bf16.mxu0 0
    %783 = vmatpush1.bf16.xpose.msra.mxu0 0
    %784 = vmatprep.subr.bf16.mxu0 0
    %785 = vmatpush1.bf16.xpose.msra.mxu0 0
    %786 = vmatprep.subr.bf16.mxu0 0
    %787 = vmatpush1.bf16.xpose.msra.mxu0 0
    %788 = vmatprep.subr.bf16.mxu0 0
    %789 = vmatpush1.bf16.xpose.msra.mxu0 0
    %790 = vmatprep.subr.bf16.mxu0 0
    %791 = vmatpush1.bf16.xpose.msra.mxu0 0
    %792 = vmatprep.subr.bf16.mxu0 0
    %793 = vmatpush1.bf16.xpose.msra.mxu0 0
    %794 = vmatprep.subr.bf16.mxu0 0
    %795 = vmatpush1.bf16.xpose.msra.mxu0 %v778
    %796 = vmatprep.subr.bf16.mxu0 0
    %797 = vmatpush2.bf16.xpose.msra.mxu0 0
    %798 = vmatprep.subr.bf16.mxu0 0
    %799 = vmatpush2.bf16.xpose.msra.mxu0 0
    %800 = vmatprep.subr.bf16.mxu0 0
    %801 = vmatpush2.bf16.xpose.msra.mxu0 0
    %802 = vmatprep.subr.bf16.mxu0 0
    %803 = vmatpush2.bf16.xpose.msra.mxu0 0
    %804 = vmatprep.subr.bf16.mxu0 0
    %805 = vmatpush2.bf16.xpose.msra.mxu0 0
    %806 = vmatprep.subr.bf16.mxu0 0
    %807 = vmatpush2.bf16.xpose.msra.mxu0 0
    %808 = vmatprep.subr.bf16.mxu0 0
    %809 = vmatpush2.bf16.xpose.msra.mxu0 0
    %810 = vmatprep.subr.bf16.mxu0 0
    %811 = vmatpush2.bf16.xpose.msra.mxu0 0
    %812 = vmatprep.mubr.bf16.mxu0 0
    %813 = vmatmul.mubr.bf16.gmra.mxu0 %v775
    %v814 = vpop.f32.mrf.mxu0
    %v815 = vadd.f32 0.0, %v814
    %v816 = vpop.f32.mrf.mxu0
    %v817 = vpop.f32.mrf.mxu0
    %v818 = vadd.f32 0.0, %v817
    %v819 = vpop.f32.mrf.mxu0
    %820 = vdwg.mxu0
    %821 = vrot.lane.b32.xlu0 %v462, 32
    %v822 = vpop.permute.xlu0 %821
    %823 = vrot.lane.b32.xlu0 %v464, 32
    %v824 = vpop.permute.xlu0 %823
    %v826 = vsel %vm467, %v822, 0
    %v829 = vsel %vm467, %v824, 0
    %831 = vmatprep.subr.bf16.mxu0 0
    %832 = vmatpush1.bf16.xpose.msra.mxu0 0
    %833 = vmatprep.subr.bf16.mxu0 0
    %834 = vmatpush1.bf16.xpose.msra.mxu0 0
    %835 = vmatprep.subr.bf16.mxu0 0
    %836 = vmatpush1.bf16.xpose.msra.mxu0 0
    %837 = vmatprep.subr.bf16.mxu0 0
    %838 = vmatpush1.bf16.xpose.msra.mxu0 0
    %839 = vmatprep.subr.bf16.mxu0 0
    %840 = vmatpush1.bf16.xpose.msra.mxu0 0
    %841 = vmatprep.subr.bf16.mxu0 0
    %842 = vmatpush1.bf16.xpose.msra.mxu0 0
    %843 = vmatprep.subr.bf16.mxu0 0
    %844 = vmatpush1.bf16.xpose.msra.mxu0 0
    %845 = vmatprep.subr.bf16.mxu0 0
    %846 = vmatpush1.bf16.xpose.msra.mxu0 %v829
    %847 = vmatprep.subr.bf16.mxu0 0
    %848 = vmatpush2.bf16.xpose.msra.mxu0 0
    %849 = vmatprep.subr.bf16.mxu0 0
    %850 = vmatpush2.bf16.xpose.msra.mxu0 0
    %851 = vmatprep.subr.bf16.mxu0 0
    %852 = vmatpush2.bf16.xpose.msra.mxu0 0
    %853 = vmatprep.subr.bf16.mxu0 0
    %854 = vmatpush2.bf16.xpose.msra.mxu0 0
    %855 = vmatprep.subr.bf16.mxu0 0
    %856 = vmatpush2.bf16.xpose.msra.mxu0 0
    %857 = vmatprep.subr.bf16.mxu0 0
    %858 = vmatpush2.bf16.xpose.msra.mxu0 0
    %859 = vmatprep.subr.bf16.mxu0 0
    %860 = vmatpush2.bf16.xpose.msra.mxu0 0
    %861 = vmatprep.subr.bf16.mxu0 0
    %862 = vmatpush2.bf16.xpose.msra.mxu0 0
    %863 = vmatprep.mubr.bf16.mxu0 0
    %864 = vmatmul.mubr.bf16.gmra.mxu0 %v826
    %v865 = vpop.f32.mrf.mxu0
    %v866 = vadd.f32 0.0, %v865
    %v867 = vpop.f32.mrf.mxu0
    %v868 = vpop.f32.mrf.mxu0
    %v869 = vadd.f32 0.0, %v868
    %v870 = vpop.f32.mrf.mxu0
    %871 = vdwg.mxu0
    %vm872 = vcmask 130048
    %v873 = vsel %vm872, %v509, -inf
    %874 = vmax.xlane.f32.xlu0 %v873
    %v875 = vpop.xlane.xlu0 %874
    %v876 = vsel %vm872, %v512, -inf
    %877 = vmax.xlane.f32.xlu0 %v876
    %v878 = vpop.xlane.xlu0 %877
    %v879 = vsel %vm872, %v562, -inf
    %880 = vmax.xlane.f32.xlu0 %v879
    %v881 = vpop.xlane.xlu0 %880
    %v882 = vsel %vm872, %v565, -inf
    %883 = vmax.xlane.f32.xlu0 %v882
    %v884 = vpop.xlane.xlu0 %883
    %v885 = vsel %vm872, %v613, -inf
    %886 = vmax.xlane.f32.xlu0 %v885
    %v887 = vpop.xlane.xlu0 %886
    %v888 = vsel %vm872, %v616, -inf
    %889 = vmax.xlane.f32.xlu0 %v888
    %v890 = vpop.xlane.xlu0 %889
    %v891 = vsel %vm872, %v664, -inf
    %892 = vmax.xlane.f32.xlu0 %v891
    %v893 = vpop.xlane.xlu0 %892
    %v894 = vsel %vm872, %v667, -inf
    %895 = vmax.xlane.f32.xlu0 %v894
    %v896 = vpop.xlane.xlu0 %895
    %v897 = vsel %vm872, %v711, -inf
    %898 = vmax.xlane.f32.xlu0 %v897
    %v899 = vpop.xlane.xlu0 %898
    %v900 = vsel %vm872, %v714, -inf
    %901 = vmax.xlane.f32.xlu0 %v900
    %v902 = vpop.xlane.xlu0 %901
    %v903 = vsel %vm872, %v764, -inf
    %904 = vmax.xlane.f32.xlu0 %v903
    %v905 = vpop.xlane.xlu0 %904
    %v906 = vsel %vm872, %v767, -inf
    %907 = vmax.xlane.f32.xlu0 %v906
    %v908 = vpop.xlane.xlu0 %907
    %v909 = vsel %vm872, %v815, -inf
    %910 = vmax.xlane.f32.xlu0 %v909
    %v911 = vpop.xlane.xlu0 %910
    %v912 = vsel %vm872, %v818, -inf
    %913 = vmax.xlane.f32.xlu0 %v912
    %v914 = vpop.xlane.xlu0 %913
    %v915 = vsel %vm872, %v866, -inf
    %916 = vmax.xlane.f32.xlu0 %v915
    %v917 = vpop.xlane.xlu0 %916
    %v918 = vsel %vm872, %v869, -inf
    %919 = vmax.xlane.f32.xlu0 %v918
    %v920 = vpop.xlane.xlu0 %919
    %v921 = vsub.f32 %v509, %v875
    %v922 = vsub.f32 %v512, %v878
    %v923 = vsub.f32 %v562, %v881
    %v924 = vsub.f32 %v565, %v884
    %v925 = vsub.f32 %v613, %v887
    %v926 = vsub.f32 %v616, %v890
    %v927 = vsub.f32 %v664, %v893
    %v928 = vsub.f32 %v667, %v896
    %v929 = vsub.f32 %v711, %v899
    %v930 = vsub.f32 %v714, %v902
    %v931 = vsub.f32 %v764, %v905
    %v932 = vsub.f32 %v767, %v908
    %v933 = vsub.f32 %v815, %v911
    %v934 = vsub.f32 %v818, %v914
    %v935 = vsub.f32 %v866, %v917
    %v936 = vsub.f32 %v869, %v920
    %v937 = vmul.f32 %v921, 1.442695
    %v938 = vpow.pop %v937
    %v939 = vmul.f32 %v922, 1.442695
    %v940 = vpow.pop %v939
    %v941 = vmul.f32 %v923, 1.442695
    %v942 = vpow.pop %v941
    %v943 = vmul.f32 %v924, 1.442695
    %v944 = vpow.pop %v943
    %v945 = vmul.f32 %v925, 1.442695
    %v946 = vpow.pop %v945
    %v947 = vmul.f32 %v926, 1.442695
    %v948 = vpow.pop %v947
    %v949 = vmul.f32 %v927, 1.442695
    %v950 = vpow.pop %v949
    %v951 = vmul.f32 %v928, 1.442695
    %v952 = vpow.pop %v951
    %v953 = vmul.f32 %v929, 1.442695
    %v954 = vpow.pop %v953
    %v955 = vmul.f32 %v930, 1.442695
    %v956 = vpow.pop %v955
    %v957 = vmul.f32 %v931, 1.442695
    %v958 = vpow.pop %v957
    %v959 = vmul.f32 %v932, 1.442695
    %v960 = vpow.pop %v959
    %v961 = vmul.f32 %v933, 1.442695
    %v962 = vpow.pop %v961
    %v963 = vmul.f32 %v934, 1.442695
    %v964 = vpow.pop %v963
    %v965 = vmul.f32 %v935, 1.442695
    %v966 = vpow.pop %v965
    %v967 = vmul.f32 %v936, 1.442695
    %v968 = vpow.pop %v967
    %v969 = vsel %vm872, %v938, 0.0
    %970 = vadd.xlane.f32.xlu0 %v969
    %v971 = vpop.xlane.xlu0 %970
    %v972 = vsel %vm872, %v940, 0.0
    %973 = vadd.xlane.f32.xlu0 %v972
    %v974 = vpop.xlane.xlu0 %973
    %v975 = vsel %vm872, %v942, 0.0
    %976 = vadd.xlane.f32.xlu0 %v975
    %v977 = vpop.xlane.xlu0 %976
    %v978 = vsel %vm872, %v944, 0.0
    %979 = vadd.xlane.f32.xlu0 %v978
    %v980 = vpop.xlane.xlu0 %979
    %v981 = vsel %vm872, %v946, 0.0
    %982 = vadd.xlane.f32.xlu0 %v981
    %v983 = vpop.xlane.xlu0 %982
    %v984 = vsel %vm872, %v948, 0.0
    %985 = vadd.xlane.f32.xlu0 %v984
    %v986 = vpop.xlane.xlu0 %985
    %v987 = vsel %vm872, %v950, 0.0
    %988 = vadd.xlane.f32.xlu0 %v987
    %v989 = vpop.xlane.xlu0 %988
    %v990 = vsel %vm872, %v952, 0.0
    %991 = vadd.xlane.f32.xlu0 %v990
    %v992 = vpop.xlane.xlu0 %991
    %v993 = vsel %vm872, %v954, 0.0
    %994 = vadd.xlane.f32.xlu0 %v993
    %v995 = vpop.xlane.xlu0 %994
    %v996 = vsel %vm872, %v956, 0.0
    %997 = vadd.xlane.f32.xlu0 %v996
    %v998 = vpop.xlane.xlu0 %997
    %v999 = vsel %vm872, %v958, 0.0
    %1000 = vadd.xlane.f32.xlu0 %v999
    %v1001 = vpop.xlane.xlu0 %1000
    %v1002 = vsel %vm872, %v960, 0.0
    %1003 = vadd.xlane.f32.xlu0 %v1002
    %v1004 = vpop.xlane.xlu0 %1003
    %v1005 = vsel %vm872, %v962, 0.0
    %1006 = vadd.xlane.f32.xlu0 %v1005
    %v1007 = vpop.xlane.xlu0 %1006
    %v1008 = vsel %vm872, %v964, 0.0
    %1009 = vadd.xlane.f32.xlu0 %v1008
    %v1010 = vpop.xlane.xlu0 %1009
    %v1011 = vsel %vm872, %v966, 0.0
    %1012 = vadd.xlane.f32.xlu0 %v1011
    %v1013 = vpop.xlane.xlu0 %1012
    %v1014 = vsel %vm872, %v968, 0.0
    %1015 = vadd.xlane.f32.xlu0 %v1014
    %v1016 = vpop.xlane.xlu0 %1015
    %v1017 = vrcp.pop %v971
    %v1018 = vrcp.pop %v974
    %v1019 = vrcp.pop %v977
    %v1020 = vrcp.pop %v980
    %v1021 = vrcp.pop %v983
    %v1022 = vrcp.pop %v986
    %v1023 = vrcp.pop %v989
    %v1024 = vrcp.pop %v992
    %v1025 = vrcp.pop %v995
    %v1026 = vrcp.pop %v998
    %v1027 = vrcp.pop %v1001
    %v1028 = vrcp.pop %v1004
    %v1029 = vrcp.pop %v1007
    %v1030 = vrcp.pop %v1010
    %v1031 = vrcp.pop %v1013
    %v1032 = vrcp.pop %v1016
    %v1033 = vmul.f32 %v938, %v1017
    %v1034 = vmul.f32 %v940, %v1018
    %v1035 = vmul.f32 %v942, %v1019
    %v1036 = vmul.f32 %v944, %v1020
    %v1037 = vmul.f32 %v946, %v1021
    %v1038 = vmul.f32 %v948, %v1022
    %v1039 = vmul.f32 %v950, %v1023
    %v1040 = vmul.f32 %v952, %v1024
    %v1041 = vmul.f32 %v954, %v1025
    %v1042 = vmul.f32 %v956, %v1026
    %v1043 = vmul.f32 %v958, %v1027
    %v1044 = vmul.f32 %v960, %v1028
    %v1045 = vmul.f32 %v962, %v1029
    %v1046 = vmul.f32 %v964, %v1030
    %v1047 = vmul.f32 %v966, %v1031
    %v1048 = vmul.f32 %v968, %v1032
    %v1049 = vpack.c.bf16 %v1034, %v1033
    %v1050 = vpack.c.bf16 %v1036, %v1035
    %v1051 = vpack.c.bf16 %v1038, %v1037
    %v1052 = vpack.c.bf16 %v1040, %v1039
    %v1053 = vpack.c.bf16 %v1042, %v1041
    %v1054 = vpack.c.bf16 %v1044, %v1043
    %v1055 = vpack.c.bf16 %v1046, %v1045
    %v1056 = vpack.c.bf16 %v1048, %v1047
    %v1058 = vsel %vm872, %v1049, 0
    %1060 = vmatprep.subr.bf16.mxu0 0
    %1061 = vmatpush1.bf16.msra.mxu0 0
    %1062 = vmatprep.subr.bf16.mxu0 0
    %1063 = vmatpush1.bf16.msra.mxu0 0
    %1064 = vmatprep.subr.bf16.mxu0 0
    %1065 = vmatpush1.bf16.msra.mxu0 0
    %1066 = vmatprep.subr.bf16.mxu0 0
    %1067 = vmatpush1.bf16.msra.mxu0 0
    %1068 = vmatprep.subr.bf16.mxu0 0
    %1069 = vmatpush1.bf16.msra.mxu0 0
    %1070 = vmatprep.subr.bf16.mxu0 0
    %1071 = vmatpush1.bf16.msra.mxu0 0
    %1072 = vmatprep.subr.bf16.mxu0 0
    %1073 = vmatpush1.bf16.msra.mxu0 0
    %1074 = vmatprep.subr.bf16.mxu0 0
    %1075 = vmatpush1.bf16.msra.mxu0 %v465
    %1076 = vmatprep.subr.bf16.mxu0 0
    %1077 = vmatpush2.bf16.msra.mxu0 0
    %1078 = vmatprep.subr.bf16.mxu0 0
    %1079 = vmatpush2.bf16.msra.mxu0 0
    %1080 = vmatprep.subr.bf16.mxu0 0
    %1081 = vmatpush2.bf16.msra.mxu0 0
    %1082 = vmatprep.subr.bf16.mxu0 0
    %1083 = vmatpush2.bf16.msra.mxu0 0
    %1084 = vmatprep.subr.bf16.mxu0 0
    %1085 = vmatpush2.bf16.msra.mxu0 0
    %1086 = vmatprep.subr.bf16.mxu0 0
    %1087 = vmatpush2.bf16.msra.mxu0 0
    %1088 = vmatprep.subr.bf16.mxu0 0
    %1089 = vmatpush2.bf16.msra.mxu0 0
    %1090 = vmatprep.subr.bf16.mxu0 0
    %1091 = vmatpush2.bf16.msra.mxu0 0
    %1092 = vmatprep.mubr.bf16.mxu0 0
    %1093 = vmatmul.mubr.bf16.gmra.mxu0 %v1058
    %v1094 = vpop.f32.mrf.mxu0
    %v1095 = vadd.f32 0.0, %v1094
    %v1096 = vpop.f32.mrf.mxu0
    %v1097 = vpop.f32.mrf.mxu0
    %v1098 = vadd.f32 0.0, %v1097
    %v1099 = vpop.f32.mrf.mxu0
    %1100 = vdwg.mxu0
    %1102 = vrot.lane.b32.xlu0 %v465, 96
    %v1103 = vpop.permute.xlu0 %1102
    %v1106 = vsel %vm872, %v1050, 0
    %1108 = vmatprep.subr.bf16.mxu0 0
    %1109 = vmatpush1.bf16.msra.mxu0 0
    %1110 = vmatprep.subr.bf16.mxu0 0
    %1111 = vmatpush1.bf16.msra.mxu0 0
    %1112 = vmatprep.subr.bf16.mxu0 0
    %1113 = vmatpush1.bf16.msra.mxu0 0
    %1114 = vmatprep.subr.bf16.mxu0 0
    %1115 = vmatpush1.bf16.msra.mxu0 0
    %1116 = vmatprep.subr.bf16.mxu0 0
    %1117 = vmatpush1.bf16.msra.mxu0 0
    %1118 = vmatprep.subr.bf16.mxu0 0
    %1119 = vmatpush1.bf16.msra.mxu0 0
    %1120 = vmatprep.subr.bf16.mxu0 0
    %1121 = vmatpush1.bf16.msra.mxu0 0
    %1122 = vmatprep.subr.bf16.mxu0 0
    %1123 = vmatpush1.bf16.msra.mxu0 %v1103
    %1124 = vmatprep.subr.bf16.mxu0 0
    %1125 = vmatpush2.bf16.msra.mxu0 0
    %1126 = vmatprep.subr.bf16.mxu0 0
    %1127 = vmatpush2.bf16.msra.mxu0 0
    %1128 = vmatprep.subr.bf16.mxu0 0
    %1129 = vmatpush2.bf16.msra.mxu0 0
    %1130 = vmatprep.subr.bf16.mxu0 0
    %1131 = vmatpush2.bf16.msra.mxu0 0
    %1132 = vmatprep.subr.bf16.mxu0 0
    %1133 = vmatpush2.bf16.msra.mxu0 0
    %1134 = vmatprep.subr.bf16.mxu0 0
    %1135 = vmatpush2.bf16.msra.mxu0 0
    %1136 = vmatprep.subr.bf16.mxu0 0
    %1137 = vmatpush2.bf16.msra.mxu0 0
    %1138 = vmatprep.subr.bf16.mxu0 0
    %1139 = vmatpush2.bf16.msra.mxu0 0
    %1140 = vmatprep.mubr.bf16.mxu0 0
    %1141 = vmatmul.mubr.bf16.gmra.mxu0 %v1106
    %v1142 = vpop.f32.mrf.mxu0
    %v1143 = vadd.f32 0.0, %v1142
    %v1144 = vpop.f32.mrf.mxu0
    %v1145 = vpop.f32.mrf.mxu0
    %v1146 = vadd.f32 0.0, %v1145
    %v1147 = vpop.f32.mrf.mxu0
    %1148 = vdwg.mxu0
    %1149 = vrot.lane.b32.xlu0 %v465, 64
    %v1150 = vpop.permute.xlu0 %1149
    %v1153 = vsel %vm872, %v1051, 0
    %1155 = vmatprep.subr.bf16.mxu0 0
    %1156 = vmatpush1.bf16.msra.mxu0 0
    %1157 = vmatprep.subr.bf16.mxu0 0
    %1158 = vmatpush1.bf16.msra.mxu0 0
    %1159 = vmatprep.subr.bf16.mxu0 0
    %1160 = vmatpush1.bf16.msra.mxu0 0
    %1161 = vmatprep.subr.bf16.mxu0 0
    %1162 = vmatpush1.bf16.msra.mxu0 0
    %1163 = vmatprep.subr.bf16.mxu0 0
    %1164 = vmatpush1.bf16.msra.mxu0 0
    %1165 = vmatprep.subr.bf16.mxu0 0
    %1166 = vmatpush1.bf16.msra.mxu0 0
    %1167 = vmatprep.subr.bf16.mxu0 0
    %1168 = vmatpush1.bf16.msra.mxu0 0
    %1169 = vmatprep.subr.bf16.mxu0 0
    %1170 = vmatpush1.bf16.msra.mxu0 %v1150
    %1171 = vmatprep.subr.bf16.mxu0 0
    %1172 = vmatpush2.bf16.msra.mxu0 0
    %1173 = vmatprep.subr.bf16.mxu0 0
    %1174 = vmatpush2.bf16.msra.mxu0 0
    %1175 = vmatprep.subr.bf16.mxu0 0
    %1176 = vmatpush2.bf16.msra.mxu0 0
    %1177 = vmatprep.subr.bf16.mxu0 0
    %1178 = vmatpush2.bf16.msra.mxu0 0
    %1179 = vmatprep.subr.bf16.mxu0 0
    %1180 = vmatpush2.bf16.msra.mxu0 0
    %1181 = vmatprep.subr.bf16.mxu0 0
    %1182 = vmatpush2.bf16.msra.mxu0 0
    %1183 = vmatprep.subr.bf16.mxu0 0
    %1184 = vmatpush2.bf16.msra.mxu0 0
    %1185 = vmatprep.subr.bf16.mxu0 0
    %1186 = vmatpush2.bf16.msra.mxu0 0
    %1187 = vmatprep.mubr.bf16.mxu0 0
    %1188 = vmatmul.mubr.bf16.gmra.mxu0 %v1153
    %v1189 = vpop.f32.mrf.mxu0
    %v1190 = vadd.f32 0.0, %v1189
    %v1191 = vpop.f32.mrf.mxu0
    %v1192 = vpop.f32.mrf.mxu0
    %v1193 = vadd.f32 0.0, %v1192
    %v1194 = vpop.f32.mrf.mxu0
    %1195 = vdwg.mxu0
    %1196 = vrot.lane.b32.xlu0 %v465, 32
    %v1197 = vpop.permute.xlu0 %1196
    %v1200 = vsel %vm872, %v1052, 0
    %1202 = vmatprep.subr.bf16.mxu0 0
    %1203 = vmatpush1.bf16.msra.mxu0 0
    %1204 = vmatprep.subr.bf16.mxu0 0
    %1205 = vmatpush1.bf16.msra.mxu0 0
    %1206 = vmatprep.subr.bf16.mxu0 0
    %1207 = vmatpush1.bf16.msra.mxu0 0
    %1208 = vmatprep.subr.bf16.mxu0 0
    %1209 = vmatpush1.bf16.msra.mxu0 0
    %1210 = vmatprep.subr.bf16.mxu0 0
    %1211 = vmatpush1.bf16.msra.mxu0 0
    %1212 = vmatprep.subr.bf16.mxu0 0
    %1213 = vmatpush1.bf16.msra.mxu0 0
    %1214 = vmatprep.subr.bf16.mxu0 0
    %1215 = vmatpush1.bf16.msra.mxu0 0
    %1216 = vmatprep.subr.bf16.mxu0 0
    %1217 = vmatpush1.bf16.msra.mxu0 %v1197
    %1218 = vmatprep.subr.bf16.mxu0 0
    %1219 = vmatpush2.bf16.msra.mxu0 0
    %1220 = vmatprep.subr.bf16.mxu0 0
    %1221 = vmatpush2.bf16.msra.mxu0 0
    %1222 = vmatprep.subr.bf16.mxu0 0
    %1223 = vmatpush2.bf16.msra.mxu0 0
    %1224 = vmatprep.subr.bf16.mxu0 0
    %1225 = vmatpush2.bf16.msra.mxu0 0
    %1226 = vmatprep.subr.bf16.mxu0 0
    %1227 = vmatpush2.bf16.msra.mxu0 0
    %1228 = vmatprep.subr.bf16.mxu0 0
    %1229 = vmatpush2.bf16.msra.mxu0 0
    %1230 = vmatprep.subr.bf16.mxu0 0
    %1231 = vmatpush2.bf16.msra.mxu0 0
    %1232 = vmatprep.subr.bf16.mxu0 0
    %1233 = vmatpush2.bf16.msra.mxu0 0
    %1234 = vmatprep.mubr.bf16.mxu0 0
    %1235 = vmatmul.mubr.bf16.gmra.mxu0 %v1200
    %v1236 = vpop.f32.mrf.mxu0
    %v1237 = vadd.f32 0.0, %v1236
    %v1238 = vpop.f32.mrf.mxu0
    %v1239 = vpop.f32.mrf.mxu0
    %v1240 = vadd.f32 0.0, %v1239
    %v1241 = vpop.f32.mrf.mxu0
    %1242 = vdwg.mxu0
    %1245 = vrot.lane.b32.xlu0 %v1143, 32
    %v1246 = vpop.permute.xlu0 %1245
    %1247 = vrot.lane.b32.xlu0 %v1146, 32
    %v1248 = vpop.permute.xlu0 %1247
    %1253 = vrot.lane.b32.xlu0 %v1190, 64
    %v1254 = vpop.permute.xlu0 %1253
    %1255 = vrot.lane.b32.xlu0 %v1193, 64
    %v1256 = vpop.permute.xlu0 %1255
    %1261 = vrot.lane.b32.xlu0 %v1237, 96
    %v1262 = vpop.permute.xlu0 %1261
    %1263 = vrot.lane.b32.xlu0 %v1240, 96
    %v1264 = vpop.permute.xlu0 %1263
    %v1267 = vsel %vm467, %v1095, %v1246
    %v1268 = vsel %vm467, %v1098, %v1248
    %vm1269 = vcmask 523264
    %v1270 = vsel %vm1269, %v1267, %v1254
    %v1271 = vsel %vm1269, %v1268, %v1256
    %vm1272 = vcmask 785408
    %v1273 = vsel %vm1272, %v1270, %v1262
    %v1274 = vsel %vm1272, %v1271, %v1264
    %v1276 = vsel %vm872, %v1053, 0
    %1278 = vmatprep.subr.bf16.mxu0 0
    %1279 = vmatpush1.bf16.msra.mxu0 0
    %1280 = vmatprep.subr.bf16.mxu0 0
    %1281 = vmatpush1.bf16.msra.mxu0 0
    %1282 = vmatprep.subr.bf16.mxu0 0
    %1283 = vmatpush1.bf16.msra.mxu0 0
    %1284 = vmatprep.subr.bf16.mxu0 0
    %1285 = vmatpush1.bf16.msra.mxu0 0
    %1286 = vmatprep.subr.bf16.mxu0 0
    %1287 = vmatpush1.bf16.msra.mxu0 0
    %1288 = vmatprep.subr.bf16.mxu0 0
    %1289 = vmatpush1.bf16.msra.mxu0 0
    %1290 = vmatprep.subr.bf16.mxu0 0
    %1291 = vmatpush1.bf16.msra.mxu0 0
    %1292 = vmatprep.subr.bf16.mxu0 0
    %1293 = vmatpush1.bf16.msra.mxu0 %v466
    %1294 = vmatprep.subr.bf16.mxu0 0
    %1295 = vmatpush2.bf16.msra.mxu0 0
    %1296 = vmatprep.subr.bf16.mxu0 0
    %1297 = vmatpush2.bf16.msra.mxu0 0
    %1298 = vmatprep.subr.bf16.mxu0 0
    %1299 = vmatpush2.bf16.msra.mxu0 0
    %1300 = vmatprep.subr.bf16.mxu0 0
    %1301 = vmatpush2.bf16.msra.mxu0 0
    %1302 = vmatprep.subr.bf16.mxu0 0
    %1303 = vmatpush2.bf16.msra.mxu0 0
    %1304 = vmatprep.subr.bf16.mxu0 0
    %1305 = vmatpush2.bf16.msra.mxu0 0
    %1306 = vmatprep.subr.bf16.mxu0 0
    %1307 = vmatpush2.bf16.msra.mxu0 0
    %1308 = vmatprep.subr.bf16.mxu0 0
    %1309 = vmatpush2.bf16.msra.mxu0 0
    %1310 = vmatprep.mubr.bf16.mxu0 0
    %1311 = vmatmul.mubr.bf16.gmra.mxu0 %v1276
    %v1312 = vpop.f32.mrf.mxu0
    %v1313 = vadd.f32 0.0, %v1312
    %v1314 = vpop.f32.mrf.mxu0
    %v1315 = vpop.f32.mrf.mxu0
    %v1316 = vadd.f32 0.0, %v1315
    %v1317 = vpop.f32.mrf.mxu0
    %1318 = vdwg.mxu0
    %1320 = vrot.lane.b32.xlu0 %v466, 96
    %v1321 = vpop.permute.xlu0 %1320
    %v1324 = vsel %vm872, %v1054, 0
    %1326 = vmatprep.subr.bf16.mxu0 0
    %1327 = vmatpush1.bf16.msra.mxu0 0
    %1328 = vmatprep.subr.bf16.mxu0 0
    %1329 = vmatpush1.bf16.msra.mxu0 0
    %1330 = vmatprep.subr.bf16.mxu0 0
    %1331 = vmatpush1.bf16.msra.mxu0 0
    %1332 = vmatprep.subr.bf16.mxu0 0
    %1333 = vmatpush1.bf16.msra.mxu0 0
    %1334 = vmatprep.subr.bf16.mxu0 0
    %1335 = vmatpush1.bf16.msra.mxu0 0
    %1336 = vmatprep.subr.bf16.mxu0 0
    %1337 = vmatpush1.bf16.msra.mxu0 0
    %1338 = vmatprep.subr.bf16.mxu0 0
    %1339 = vmatpush1.bf16.msra.mxu0 0
    %1340 = vmatprep.subr.bf16.mxu0 0
    %1341 = vmatpush1.bf16.msra.mxu0 %v1321
    %1342 = vmatprep.subr.bf16.mxu0 0
    %1343 = vmatpush2.bf16.msra.mxu0 0
    %1344 = vmatprep.subr.bf16.mxu0 0
    %1345 = vmatpush2.bf16.msra.mxu0 0
    %1346 = vmatprep.subr.bf16.mxu0 0
    %1347 = vmatpush2.bf16.msra.mxu0 0
    %1348 = vmatprep.subr.bf16.mxu0 0
    %1349 = vmatpush2.bf16.msra.mxu0 0
    %1350 = vmatprep.subr.bf16.mxu0 0
    %1351 = vmatpush2.bf16.msra.mxu0 0
    %1352 = vmatprep.subr.bf16.mxu0 0
    %1353 = vmatpush2.bf16.msra.mxu0 0
    %1354 = vmatprep.subr.bf16.mxu0 0
    %1355 = vmatpush2.bf16.msra.mxu0 0
    %1356 = vmatprep.subr.bf16.mxu0 0
    %1357 = vmatpush2.bf16.msra.mxu0 0
    %1358 = vmatprep.mubr.bf16.mxu0 0
    %1359 = vmatmul.mubr.bf16.gmra.mxu0 %v1324
    %v1360 = vpop.f32.mrf.mxu0
    %v1361 = vadd.f32 0.0, %v1360
    %v1362 = vpop.f32.mrf.mxu0
    %v1363 = vpop.f32.mrf.mxu0
    %v1364 = vadd.f32 0.0, %v1363
    %v1365 = vpop.f32.mrf.mxu0
    %1366 = vdwg.mxu0
    %1367 = vrot.lane.b32.xlu0 %v466, 64
    %v1368 = vpop.permute.xlu0 %1367
    %v1371 = vsel %vm872, %v1055, 0
    %1373 = vmatprep.subr.bf16.mxu0 0
    %1374 = vmatpush1.bf16.msra.mxu0 0
    %1375 = vmatprep.subr.bf16.mxu0 0
    %1376 = vmatpush1.bf16.msra.mxu0 0
    %1377 = vmatprep.subr.bf16.mxu0 0
    %1378 = vmatpush1.bf16.msra.mxu0 0
    %1379 = vmatprep.subr.bf16.mxu0 0
    %1380 = vmatpush1.bf16.msra.mxu0 0
    %1381 = vmatprep.subr.bf16.mxu0 0
    %1382 = vmatpush1.bf16.msra.mxu0 0
    %1383 = vmatprep.subr.bf16.mxu0 0
    %1384 = vmatpush1.bf16.msra.mxu0 0
    %1385 = vmatprep.subr.bf16.mxu0 0
    %1386 = vmatpush1.bf16.msra.mxu0 0
    %1387 = vmatprep.subr.bf16.mxu0 0
    %1388 = vmatpush1.bf16.msra.mxu0 %v1368
    %1389 = vmatprep.subr.bf16.mxu0 0
    %1390 = vmatpush2.bf16.msra.mxu0 0
    %1391 = vmatprep.subr.bf16.mxu0 0
    %1392 = vmatpush2.bf16.msra.mxu0 0
    %1393 = vmatprep.subr.bf16.mxu0 0
    %1394 = vmatpush2.bf16.msra.mxu0 0
    %1395 = vmatprep.subr.bf16.mxu0 0
    %1396 = vmatpush2.bf16.msra.mxu0 0
    %1397 = vmatprep.subr.bf16.mxu0 0
    %1398 = vmatpush2.bf16.msra.mxu0 0
    %1399 = vmatprep.subr.bf16.mxu0 0
    %1400 = vmatpush2.bf16.msra.mxu0 0
    %1401 = vmatprep.subr.bf16.mxu0 0
    %1402 = vmatpush2.bf16.msra.mxu0 0
    %1403 = vmatprep.subr.bf16.mxu0 0
    %1404 = vmatpush2.bf16.msra.mxu0 0
    %1405 = vmatprep.mubr.bf16.mxu0 0
    %1406 = vmatmul.mubr.bf16.gmra.mxu0 %v1371
    %v1407 = vpop.f32.mrf.mxu0
    %v1408 = vadd.f32 0.0, %v1407
    %v1409 = vpop.f32.mrf.mxu0
    %v1410 = vpop.f32.mrf.mxu0
    %v1411 = vadd.f32 0.0, %v1410
    %v1412 = vpop.f32.mrf.mxu0
    %1413 = vdwg.mxu0
    %1414 = vrot.lane.b32.xlu0 %v466, 32
    %v1415 = vpop.permute.xlu0 %1414
    %v1418 = vsel %vm872, %v1056, 0
    %1420 = vmatprep.subr.bf16.mxu0 0
    %1421 = vmatpush1.bf16.msra.mxu0 0
    %1422 = vmatprep.subr.bf16.mxu0 0
    %1423 = vmatpush1.bf16.msra.mxu0 0
    %1424 = vmatprep.subr.bf16.mxu0 0
    %1425 = vmatpush1.bf16.msra.mxu0 0
    %1426 = vmatprep.subr.bf16.mxu0 0
    %1427 = vmatpush1.bf16.msra.mxu0 0
    %1428 = vmatprep.subr.bf16.mxu0 0
    %1429 = vmatpush1.bf16.msra.mxu0 0
    %1430 = vmatprep.subr.bf16.mxu0 0
    %1431 = vmatpush1.bf16.msra.mxu0 0
    %1432 = vmatprep.subr.bf16.mxu0 0
    %1433 = vmatpush1.bf16.msra.mxu0 0
    %1434 = vmatprep.subr.bf16.mxu0 0
    %1435 = vmatpush1.bf16.msra.mxu0 %v1415
    %1436 = vmatprep.subr.bf16.mxu0 0
    %1437 = vmatpush2.bf16.msra.mxu0 0
    %1438 = vmatprep.subr.bf16.mxu0 0
    %1439 = vmatpush2.bf16.msra.mxu0 0
    %1440 = vmatprep.subr.bf16.mxu0 0
    %1441 = vmatpush2.bf16.msra.mxu0 0
    %1442 = vmatprep.subr.bf16.mxu0 0
    %1443 = vmatpush2.bf16.msra.mxu0 0
    %1444 = vmatprep.subr.bf16.mxu0 0
    %1445 = vmatpush2.bf16.msra.mxu0 0
    %1446 = vmatprep.subr.bf16.mxu0 0
    %1447 = vmatpush2.bf16.msra.mxu0 0
    %1448 = vmatprep.subr.bf16.mxu0 0
    %1449 = vmatpush2.bf16.msra.mxu0 0
    %1450 = vmatprep.subr.bf16.mxu0 0
    %1451 = vmatpush2.bf16.msra.mxu0 0
    %1452 = vmatprep.mubr.bf16.mxu0 0
    %1453 = vmatmul.mubr.bf16.gmra.mxu0 %v1418
    %v1454 = vpop.f32.mrf.mxu0
    %v1455 = vadd.f32 0.0, %v1454
    %v1456 = vpop.f32.mrf.mxu0
    %v1457 = vpop.f32.mrf.mxu0
    %v1458 = vadd.f32 0.0, %v1457
    %v1459 = vpop.f32.mrf.mxu0
    %1460 = vdwg.mxu0
    %1463 = vrot.lane.b32.xlu0 %v1361, 32
    %v1464 = vpop.permute.xlu0 %1463
    %1465 = vrot.lane.b32.xlu0 %v1364, 32
    %v1466 = vpop.permute.xlu0 %1465
    %1471 = vrot.lane.b32.xlu0 %v1408, 64
    %v1472 = vpop.permute.xlu0 %1471
    %1473 = vrot.lane.b32.xlu0 %v1411, 64
    %v1474 = vpop.permute.xlu0 %1473
    %1479 = vrot.lane.b32.xlu0 %v1455, 96
    %v1480 = vpop.permute.xlu0 %1479
    %1481 = vrot.lane.b32.xlu0 %v1458, 96
    %v1482 = vpop.permute.xlu0 %1481
    %v1485 = vsel %vm467, %v1313, %v1464
    %v1486 = vsel %vm467, %v1316, %v1466
    %v1487 = vsel %vm1269, %v1485, %v1472
    %v1488 = vsel %vm1269, %v1486, %v1474
    %v1489 = vsel %vm1272, %v1487, %v1480
    %v1490 = vsel %vm1272, %v1488, %v1482
    %v1491 = vld [vmem:[#allocation8] sm:$0xf]
    %v1492 = vld [vmem:[#allocation8 + $0x4] sm:$0xf]
    %v1493 = vld [vmem:[#allocation8 + $0x8] sm:$0xf]
    %v1494 = vld [vmem:[#allocation8 + $0xc] sm:$0xf]
    %v1495 = vld [vmem:[#allocation8 + $0x10] sm:$0xf]
    %v1496 = vld [vmem:[#allocation8 + $0x14] sm:$0xf]
    %v1497 = vld [vmem:[#allocation8 + $0x18] sm:$0xf]
    %v1498 = vld [vmem:[#allocation8 + $0x1c] sm:$0xf]
    %v1499 = vld [vmem:[#allocation8 + $0x20] sm:$0xf]
    %v1500 = vld [vmem:[#allocation8 + $0x24] sm:$0xf]
    %v1501 = vld [vmem:[#allocation8 + $0x28] sm:$0xf]
    %v1502 = vld [vmem:[#allocation8 + $0x2c] sm:$0xf]
    %v1503 = vld [vmem:[#allocation8 + $0x30] sm:$0xf]
    %v1504 = vld [vmem:[#allocation8 + $0x34] sm:$0xf]
    %v1505 = vld [vmem:[#allocation8 + $0x38] sm:$0xf]
    %v1506 = vld [vmem:[#allocation8 + $0x3c] sm:$0xf]
    %v1507 = vpack.c.bf16 %v1274, %v1273
    %v1508 = vpack.c.bf16 %v1490, %v1489
    %v1509 = vlaneseq
    %v1510 = vshrl.u32 %v1509, 7
    %v1511 = vsub.s32 3, %v1510
    %v1512 = vrot.slane %v170, %v1511
    %v1529 = vunpack.c.l.b16 %v1491
    %v1530 = vunpack.c.l.b16 %v1492
    %v1531 = vunpack.c.l.b16 %v1493
    %v1532 = vunpack.c.l.b16 %v1494
    %v1533 = vunpack.c.l.b16 %v1495
    %v1534 = vunpack.c.l.b16 %v1496
    %v1535 = vunpack.c.l.b16 %v1497
    %v1536 = vunpack.c.l.b16 %v1498
    %v1537 = vunpack.c.l.b16 %v1499
    %v1538 = vunpack.c.l.b16 %v1500
    %v1539 = vunpack.c.l.b16 %v1501
    %v1540 = vunpack.c.l.b16 %v1502
    %v1541 = vunpack.c.l.b16 %v1503
    %v1542 = vunpack.c.l.b16 %v1504
    %v1543 = vunpack.c.l.b16 %v1505
    %v1544 = vunpack.c.l.b16 %v1506
    %v1545 = vpack.c.b16 %v1530, %v1529
    %v1546 = vpack.c.b16 %v1532, %v1531
    %v1547 = vpack.c.b16 %v1534, %v1533
    %v1548 = vpack.c.b16 %v1536, %v1535
    %v1549 = vpack.c.b16 %v1538, %v1537
    %v1550 = vpack.c.b16 %v1540, %v1539
    %v1551 = vpack.c.b16 %v1542, %v1541
    %v1552 = vpack.c.b16 %v1544, %v1543
    %1561 = vmatprep.subr.bf16.mxu0 0
    %1562 = vmatpush1.bf16.msra.mxu0 %v1552
    %1563 = vmatprep.subr.bf16.mxu0 0
    %1564 = vmatpush1.bf16.msra.mxu0 %v1551
    %1565 = vmatprep.subr.bf16.mxu0 0
    %1566 = vmatpush1.bf16.msra.mxu0 %v1550
    %1567 = vmatprep.subr.bf16.mxu0 0
    %1568 = vmatpush1.bf16.msra.mxu0 %v1549
    %1569 = vmatprep.subr.bf16.mxu0 0
    %1570 = vmatpush1.bf16.msra.mxu0 %v1548
    %1571 = vmatprep.subr.bf16.mxu0 0
    %1572 = vmatpush1.bf16.msra.mxu0 %v1547
    %1573 = vmatprep.subr.bf16.mxu0 0
    %1574 = vmatpush1.bf16.msra.mxu0 %v1546
    %1575 = vmatprep.subr.bf16.mxu0 0
    %1576 = vmatpush1.bf16.msra.mxu0 %v1545
    %1577 = vmatprep.subr.bf16.mxu0 0
    %1578 = vmatpush2.bf16.msra.mxu0 0
    %1579 = vmatprep.subr.bf16.mxu0 0
    %1580 = vmatpush2.bf16.msra.mxu0 0
    %1581 = vmatprep.subr.bf16.mxu0 0
    %1582 = vmatpush2.bf16.msra.mxu0 0
    %1583 = vmatprep.subr.bf16.mxu0 0
    %1584 = vmatpush2.bf16.msra.mxu0 0
    %1585 = vmatprep.subr.bf16.mxu0 0
    %1586 = vmatpush2.bf16.msra.mxu0 0
    %1587 = vmatprep.subr.bf16.mxu0 0
    %1588 = vmatpush2.bf16.msra.mxu0 0
    %1589 = vmatprep.subr.bf16.mxu0 0
    %1590 = vmatpush2.bf16.msra.mxu0 0
    %1591 = vmatprep.subr.bf16.mxu0 0
    %1592 = vmatpush2.bf16.msra.mxu0 0
    %1593 = vmatprep.mubr.bf16.mxu0 0
    %1594 = vmatmul.mubr.bf16.gmra.mxu0 %v1507
    %v1595 = vpop.f32.mrf.mxu0
    %v1596 = vadd.f32 %v1512, %v1595
    %v1597 = vpop.f32.mrf.mxu0
    %v1598 = vpop.f32.mrf.mxu0
    %v1599 = vadd.f32 %v1512, %v1598
    %v1600 = vpop.f32.mrf.mxu0
    %1601 = vmatprep.mubr.bf16.mxu0 0
    %1602 = vmatmul.mubr.bf16.gmra.mxu0 %v1508
    %v1603 = vpop.f32.mrf.mxu0
    %v1604 = vadd.f32 %v1512, %v1603
    %v1605 = vpop.f32.mrf.mxu0
    %v1606 = vpop.f32.mrf.mxu0
    %v1607 = vadd.f32 %v1512, %v1606
    %v1608 = vpop.f32.mrf.mxu0
    %1609 = vdwg.mxu0
    %v1610 = vadd.f32 %v162, %v1596
    %v1611 = vadd.f32 %v163, %v1599
    %v1612 = vadd.f32 %v164, %v1604
    %v1613 = vadd.f32 %v165, %v1607
    %1614 = vadd.xlane.f32.xlu0 %v1610
    %v1615 = vpop.xlane.xlu0 %1614
    %1616 = vadd.xlane.f32.xlu0 %v1611
    %v1617 = vpop.xlane.xlu0 %1616
    %1618 = vadd.xlane.f32.xlu0 %v1612
    %v1619 = vpop.xlane.xlu0 %1618
    %1620 = vadd.xlane.f32.xlu0 %v1613
    %v1621 = vpop.xlane.xlu0 %1620
    %v1622 = vrcp.pop 128.0
    %v1623 = vmul.f32 %v1615, %v1622
    %v1624 = vmul.f32 %v1617, %v1622
    %v1625 = vmul.f32 %v1619, %v1622
    %v1626 = vmul.f32 %v1621, %v1622
    %v1627 = vsub.f32 %v1610, %v1623
    %v1628 = vsub.f32 %v1611, %v1624
    %v1629 = vsub.f32 %v1612, %v1625
    %v1630 = vsub.f32 %v1613, %v1626
    %v1631 = vmul.f32 %v1627, %v1627
    %v1632 = vmul.f32 %v1628, %v1628
    %v1633 = vmul.f32 %v1629, %v1629
    %v1634 = vmul.f32 %v1630, %v1630
    %1635 = vadd.xlane.f32.xlu0 %v1631
    %v1636 = vpop.xlane.xlu0 %1635
    %1637 = vadd.xlane.f32.xlu0 %v1632
    %v1638 = vpop.xlane.xlu0 %1637
    %1639 = vadd.xlane.f32.xlu0 %v1633
    %v1640 = vpop.xlane.xlu0 %1639
    %1641 = vadd.xlane.f32.xlu0 %v1634
    %v1642 = vpop.xlane.xlu0 %1641
    %v1643 = vmul.f32 %v1636, %v1622
    %v1644 = vmul.f32 %v1638, %v1622
    %v1645 = vmul.f32 %v1640, %v1622
    %v1646 = vmul.f32 %v1642, %v1622
    %v1647 = vadd.f32 %v1643, 1e-05
    %v1648 = vadd.f32 %v1644, 1e-05
    %v1649 = vadd.f32 %v1645, 1e-05
    %v1650 = vadd.f32 %v1646, 1e-05
    %v1651 = vrsqrt.pop %v1647
    %v1652 = vrsqrt.pop %v1648
    %v1653 = vrsqrt.pop %v1649
    %v1654 = vrsqrt.pop %v1650
    %v1655 = vmul.f32 %v1627, %v1651
    %v1656 = vmul.f32 %v1628, %v1652
    %v1657 = vmul.f32 %v1629, %v1653
    %v1658 = vmul.f32 %v1630, %v1654
    %v1659 = vlaneseq
    %v1660 = vshrl.u32 %v1659, 7
    %v1661 = vsub.s32 1, %v1660
    %v1662 = vrot.slane %v171, %v1661
    %v1663 = vmul.f32 %v1655, %v1662
    %v1664 = vmul.f32 %v1656, %v1662
    %v1665 = vmul.f32 %v1657, %v1662
    %v1666 = vmul.f32 %v1658, %v1662
    %v1667 = vlaneseq
    %v1668 = vshrl.u32 %v1667, 7
    %v1669 = vsub.s32 2, %v1668
    %v1670 = vrot.slane %v171, %v1669
    %v1671 = vadd.f32 %v1663, %v1670
    %v1672 = vadd.f32 %v1664, %v1670
    %v1673 = vadd.f32 %v1665, %v1670
    %v1674 = vadd.f32 %v1666, %v1670
    %v1675 = vld [vmem:[#allocation10] sm:$0xf]
    %v1676 = vld [vmem:[#allocation10 + $0x4] sm:$0xf]
    %v1677 = vld [vmem:[#allocation10 + $0x8] sm:$0xf]
    %v1678 = vld [vmem:[#allocation10 + $0xc] sm:$0xf]
    %v1679 = vld [vmem:[#allocation10 + $0x10] sm:$0xf]
    %v1680 = vld [vmem:[#allocation10 + $0x14] sm:$0xf]
    %v1681 = vld [vmem:[#allocation10 + $0x18] sm:$0xf]
    %v1682 = vld [vmem:[#allocation10 + $0x1c] sm:$0xf]
    %v1683 = vld [vmem:[#allocation10 + $0x20] sm:$0xf]
    %v1684 = vld [vmem:[#allocation10 + $0x24] sm:$0xf]
    %v1685 = vld [vmem:[#allocation10 + $0x28] sm:$0xf]
    %v1686 = vld [vmem:[#allocation10 + $0x2c] sm:$0xf]
    %v1687 = vld [vmem:[#allocation10 + $0x30] sm:$0xf]
    %v1688 = vld [vmem:[#allocation10 + $0x34] sm:$0xf]
    %v1689 = vld [vmem:[#allocation10 + $0x38] sm:$0xf]
    %v1690 = vld [vmem:[#allocation10 + $0x3c] sm:$0xf]
    %v1691 = vpack.c.bf16 %v1672, %v1671
    %v1692 = vpack.c.bf16 %v1674, %v1673
    %v1693 = vlaneseq
    %v1694 = vshrl.u32 %v1693, 7
    %v1695 = vsub.s32 4, %v1694
    %v1696 = vrot.slane %v170, %v1695
    %v1713 = vunpack.c.l.b16 %v1675
    %v1714 = vunpack.c.l.b16 %v1676
    %v1715 = vunpack.c.l.b16 %v1677
    %v1716 = vunpack.c.l.b16 %v1678
    %v1717 = vunpack.c.l.b16 %v1679
    %v1718 = vunpack.c.l.b16 %v1680
    %v1719 = vunpack.c.l.b16 %v1681
    %v1720 = vunpack.c.l.b16 %v1682
    %v1721 = vunpack.c.l.b16 %v1683
    %v1722 = vunpack.c.l.b16 %v1684
    %v1723 = vunpack.c.l.b16 %v1685
    %v1724 = vunpack.c.l.b16 %v1686
    %v1725 = vunpack.c.l.b16 %v1687
    %v1726 = vunpack.c.l.b16 %v1688
    %v1727 = vunpack.c.l.b16 %v1689
    %v1728 = vunpack.c.l.b16 %v1690
    %v1729 = vpack.c.b16 %v1714, %v1713
    %v1730 = vpack.c.b16 %v1716, %v1715
    %v1731 = vpack.c.b16 %v1718, %v1717
    %v1732 = vpack.c.b16 %v1720, %v1719
    %v1733 = vpack.c.b16 %v1722, %v1721
    %v1734 = vpack.c.b16 %v1724, %v1723
    %v1735 = vpack.c.b16 %v1726, %v1725
    %v1736 = vpack.c.b16 %v1728, %v1727
    %1745 = vmatprep.subr.bf16.mxu0 0
    %1746 = vmatpush1.bf16.msra.mxu0 %v1736
    %1747 = vmatprep.subr.bf16.mxu0 0
    %1748 = vmatpush1.bf16.msra.mxu0 %v1735
    %1749 = vmatprep.subr.bf16.mxu0 0
    %1750 = vmatpush1.bf16.msra.mxu0 %v1734
    %1751 = vmatprep.subr.bf16.mxu0 0
    %1752 = vmatpush1.bf16.msra.mxu0 %v1733
    %1753 = vmatprep.subr.bf16.mxu0 0
    %1754 = vmatpush1.bf16.msra.mxu0 %v1732
    %1755 = vmatprep.subr.bf16.mxu0 0
    %1756 = vmatpush1.bf16.msra.mxu0 %v1731
    %1757 = vmatprep.subr.bf16.mxu0 0
    %1758 = vmatpush1.bf16.msra.mxu0 %v1730
    %1759 = vmatprep.subr.bf16.mxu0 0
    %1760 = vmatpush1.bf16.msra.mxu0 %v1729
    %1761 = vmatprep.subr.bf16.mxu0 0
    %1762 = vmatpush2.bf16.msra.mxu0 0
    %1763 = vmatprep.subr.bf16.mxu0 0
    %1764 = vmatpush2.bf16.msra.mxu0 0
    %1765 = vmatprep.subr.bf16.mxu0 0
    %1766 = vmatpush2.bf16.msra.mxu0 0
    %1767 = vmatprep.subr.bf16.mxu0 0
    %1768 = vmatpush2.bf16.msra.mxu0 0
    %1769 = vmatprep.subr.bf16.mxu0 0
    %1770 = vmatpush2.bf16.msra.mxu0 0
    %1771 = vmatprep.subr.bf16.mxu0 0
    %1772 = vmatpush2.bf16.msra.mxu0 0
    %1773 = vmatprep.subr.bf16.mxu0 0
    %1774 = vmatpush2.bf16.msra.mxu0 0
    %1775 = vmatprep.subr.bf16.mxu0 0
    %1776 = vmatpush2.bf16.msra.mxu0 0
    %1777 = vmatprep.mubr.bf16.mxu0 0
    %1778 = vmatmul.mubr.bf16.gmra.mxu0 %v1691
    %v1779 = vpop.f32.mrf.mxu0
    %v1780 = vadd.f32 %v1696, %v1779
    %v1781 = vpop.f32.mrf.mxu0
    %v1782 = vpop.f32.mrf.mxu0
    %v1783 = vadd.f32 %v1696, %v1782
    %v1784 = vpop.f32.mrf.mxu0
    %1785 = vmatprep.mubr.bf16.mxu0 0
    %1786 = vmatmul.mubr.bf16.gmra.mxu0 %v1692
    %v1787 = vpop.f32.mrf.mxu0
    %v1788 = vadd.f32 %v1696, %v1787
    %v1789 = vpop.f32.mrf.mxu0
    %v1790 = vpop.f32.mrf.mxu0
    %v1791 = vadd.f32 %v1696, %v1790
    %v1792 = vpop.f32.mrf.mxu0
    %1793 = vdwg.mxu0
    %v1794 = vld [vmem:[#allocation11] sm:$0xff]
    %v1795 = vld [vmem:[#allocation11 + $0x8] sm:$0xff]
    %v1796 = vld [vmem:[#allocation11 + $0x10] sm:$0xff]
    %v1797 = vld [vmem:[#allocation11 + $0x18] sm:$0xff]
    %v1798 = vld [vmem:[#allocation11 + $0x20] sm:$0xff]
    %v1799 = vld [vmem:[#allocation11 + $0x28] sm:$0xff]
    %v1800 = vld [vmem:[#allocation11 + $0x30] sm:$0xff]
    %v1801 = vld [vmem:[#allocation11 + $0x38] sm:$0xff]
    %v1802 = vld [vmem:[#allocation11 + $0x40] sm:$0xff]
    %v1803 = vld [vmem:[#allocation11 + $0x48] sm:$0xff]
    %v1804 = vld [vmem:[#allocation11 + $0x50] sm:$0xff]
    %v1805 = vld [vmem:[#allocation11 + $0x58] sm:$0xff]
    %v1806 = vld [vmem:[#allocation11 + $0x60] sm:$0xff]
    %v1807 = vld [vmem:[#allocation11 + $0x68] sm:$0xff]
    %v1808 = vld [vmem:[#allocation11 + $0x70] sm:$0xff]
    %v1809 = vld [vmem:[#allocation11 + $0x78] sm:$0xff]
    %v1810 = vpack.c.bf16 %v167, %v166
    %v1811 = vpack.c.bf16 %v169, %v168
    %v1828 = vunpack.c.l.b16 %v1794
    %v1829 = vunpack.c.h.b16 %v1794
    %v1830 = vunpack.c.l.b16 %v1795
    %v1831 = vunpack.c.h.b16 %v1795
    %v1832 = vunpack.c.l.b16 %v1796
    %v1833 = vunpack.c.h.b16 %v1796
    %v1834 = vunpack.c.l.b16 %v1797
    %v1835 = vunpack.c.h.b16 %v1797
    %v1836 = vunpack.c.l.b16 %v1798
    %v1837 = vunpack.c.h.b16 %v1798
    %v1838 = vunpack.c.l.b16 %v1799
    %v1839 = vunpack.c.h.b16 %v1799
    %v1840 = vunpack.c.l.b16 %v1800
    %v1841 = vunpack.c.h.b16 %v1800
    %v1842 = vunpack.c.l.b16 %v1801
    %v1843 = vunpack.c.h.b16 %v1801
    %v1844 = vunpack.c.l.b16 %v1802
    %v1845 = vunpack.c.h.b16 %v1802
    %v1846 = vunpack.c.l.b16 %v1803
    %v1847 = vunpack.c.h.b16 %v1803
    %v1848 = vunpack.c.l.b16 %v1804
    %v1849 = vunpack.c.h.b16 %v1804
    %v1850 = vunpack.c.l.b16 %v1805
    %v1851 = vunpack.c.h.b16 %v1805
    %v1852 = vunpack.c.l.b16 %v1806
    %v1853 = vunpack.c.h.b16 %v1806
    %v1854 = vunpack.c.l.b16 %v1807
    %v1855 = vunpack.c.h.b16 %v1807
    %v1856 = vunpack.c.l.b16 %v1808
    %v1857 = vunpack.c.h.b16 %v1808
    %v1858 = vunpack.c.l.b16 %v1809
    %v1859 = vunpack.c.h.b16 %v1809
    %v1860 = vpack.c.b16 %v1830, %v1828
    %v1861 = vpack.c.b16 %v1831, %v1829
    %v1862 = vpack.c.b16 %v1834, %v1832
    %v1863 = vpack.c.b16 %v1835, %v1833
    %v1864 = vpack.c.b16 %v1838, %v1836
    %v1865 = vpack.c.b16 %v1839, %v1837
    %v1866 = vpack.c.b16 %v1842, %v1840
    %v1867 = vpack.c.b16 %v1843, %v1841
    %v1868 = vpack.c.b16 %v1846, %v1844
    %v1869 = vpack.c.b16 %v1847, %v1845
    %v1870 = vpack.c.b16 %v1850, %v1848
    %v1871 = vpack.c.b16 %v1851, %v1849
    %v1872 = vpack.c.b16 %v1854, %v1852
    %v1873 = vpack.c.b16 %v1855, %v1853
    %v1874 = vpack.c.b16 %v1858, %v1856
    %v1875 = vpack.c.b16 %v1859, %v1857
    %1892 = vmatprep.subr.bf16.mxu0 %v1875
    %1893 = vmatpush1.bf16.msra.mxu0 %v1874
    %1894 = vmatprep.subr.bf16.mxu0 %v1873
    %1895 = vmatpush1.bf16.msra.mxu0 %v1872
    %1896 = vmatprep.subr.bf16.mxu0 %v1871
    %1897 = vmatpush1.bf16.msra.mxu0 %v1870
    %1898 = vmatprep.subr.bf16.mxu0 %v1869
    %1899 = vmatpush1.bf16.msra.mxu0 %v1868
    %1900 = vmatprep.subr.bf16.mxu0 %v1867
    %1901 = vmatpush1.bf16.msra.mxu0 %v1866
    %1902 = vmatprep.subr.bf16.mxu0 %v1865
    %1903 = vmatpush1.bf16.msra.mxu0 %v1864
    %1904 = vmatprep.subr.bf16.mxu0 %v1863
    %1905 = vmatpush1.bf16.msra.mxu0 %v1862
    %1906 = vmatprep.subr.bf16.mxu0 %v1861
    %1907 = vmatpush1.bf16.msra.mxu0 %v1860
    %1908 = vmatprep.subr.bf16.mxu0 0
    %1909 = vmatpush2.bf16.msra.mxu0 0
    %1910 = vmatprep.subr.bf16.mxu0 0
    %1911 = vmatpush2.bf16.msra.mxu0 0
    %1912 = vmatprep.subr.bf16.mxu0 0
    %1913 = vmatpush2.bf16.msra.mxu0 0
    %1914 = vmatprep.subr.bf16.mxu0 0
    %1915 = vmatpush2.bf16.msra.mxu0 0
    %1916 = vmatprep.subr.bf16.mxu0 0
    %1917 = vmatpush2.bf16.msra.mxu0 0
    %1918 = vmatprep.subr.bf16.mxu0 0
    %1919 = vmatpush2.bf16.msra.mxu0 0
    %1920 = vmatprep.subr.bf16.mxu0 0
    %1921 = vmatpush2.bf16.msra.mxu0 0
    %1922 = vmatprep.subr.bf16.mxu0 0
    %1923 = vmatpush2.bf16.msra.mxu0 0
    %1924 = vmatprep.mubr.bf16.mxu0 0
    %1925 = vmatmul.mubr.bf16.gmra.mxu0 %v1810
    %v1926 = vpop.f32.mrf.mxu0
    %v1927 = vadd.f32 0.0, %v1926
    %v1928 = vpop.f32.mrf.mxu0
    %v1929 = vadd.f32 0.0, %v1928
    %v1930 = vpop.f32.mrf.mxu0
    %v1931 = vadd.f32 0.0, %v1930
    %v1932 = vpop.f32.mrf.mxu0
    %v1933 = vadd.f32 0.0, %v1932
    %1934 = vmatprep.mubr.bf16.mxu0 0
    %1935 = vmatmul.mubr.bf16.gmra.mxu0 %v1811
    %v1936 = vpop.f32.mrf.mxu0
    %v1937 = vadd.f32 0.0, %v1936
    %v1938 = vpop.f32.mrf.mxu0
    %v1939 = vadd.f32 0.0, %v1938
    %v1940 = vpop.f32.mrf.mxu0
    %v1941 = vadd.f32 0.0, %v1940
    %v1942 = vpop.f32.mrf.mxu0
    %v1943 = vadd.f32 0.0, %v1942
    %1944 = vdwg.mxu0
    %v1945 = vlaneseq
    %v1946 = vshrl.u32 %v1945, 7
    %v1947 = vsub.s32 5, %v1946
    %v1948 = vrot.slane %v170, %v1947
    %v1949 = vadd.f32 %v1927, %v1948
    %v1950 = vadd.f32 %v1931, %v1948
    %v1951 = vadd.f32 %v1937, %v1948
    %v1952 = vadd.f32 %v1941, %v1948
    %v1953 = vlaneseq
    %v1954 = vshrl.u32 %v1953, 7
    %v1955 = vsub.s32 6, %v1954
    %v1956 = vrot.slane %v170, %v1955
    %v1957 = vadd.f32 %v1929, %v1956
    %v1958 = vadd.f32 %v1933, %v1956
    %v1959 = vadd.f32 %v1939, %v1956
    %v1960 = vadd.f32 %v1943, %v1956
    %v1961 = vpack.c.bf16 %v1783, %v1780
    %v1962 = vpack.c.bf16 %v1791, %v1788
    %v1963 = vpack.c.bf16 %v1950, %v1949
    %v1964 = vpack.c.bf16 %v1952, %v1951
    %v1965 = vpack.c.bf16 %v1958, %v1957
    %v1966 = vpack.c.bf16 %v1960, %v1959
    %v1968 = vsel %vm467, %v1961, 0
    %v1971 = vsel %vm467, %v1963, 0
    %1973 = vmatprep.subr.bf16.mxu0 0
    %1974 = vmatpush1.bf16.xpose.msra.mxu0 0
    %1975 = vmatprep.subr.bf16.mxu0 0
    %1976 = vmatpush1.bf16.xpose.msra.mxu0 0
    %1977 = vmatprep.subr.bf16.mxu0 0
    %1978 = vmatpush1.bf16.xpose.msra.mxu0 0
    %1979 = vmatprep.subr.bf16.mxu0 0
    %1980 = vmatpush1.bf16.xpose.msra.mxu0 0
    %1981 = vmatprep.subr.bf16.mxu0 0
    %1982 = vmatpush1.bf16.xpose.msra.mxu0 0
    %1983 = vmatprep.subr.bf16.mxu0 0
    %1984 = vmatpush1.bf16.xpose.msra.mxu0 0
    %1985 = vmatprep.subr.bf16.mxu0 0
    %1986 = vmatpush1.bf16.xpose.msra.mxu0 0
    %1987 = vmatprep.subr.bf16.mxu0 0
    %1988 = vmatpush1.bf16.xpose.msra.mxu0 %v1971
    %1989 = vmatprep.subr.bf16.mxu0 0
    %1990 = vmatpush2.bf16.xpose.msra.mxu0 0
    %1991 = vmatprep.subr.bf16.mxu0 0
    %1992 = vmatpush2.bf16.xpose.msra.mxu0 0
    %1993 = vmatprep.subr.bf16.mxu0 0
    %1994 = vmatpush2.bf16.xpose.msra.mxu0 0
    %1995 = vmatprep.subr.bf16.mxu0 0
    %1996 = vmatpush2.bf16.xpose.msra.mxu0 0
    %1997 = vmatprep.subr.bf16.mxu0 0
    %1998 = vmatpush2.bf16.xpose.msra.mxu0 0
    %1999 = vmatprep.subr.bf16.mxu0 0
    %2000 = vmatpush2.bf16.xpose.msra.mxu0 0
    %2001 = vmatprep.subr.bf16.mxu0 0
    %2002 = vmatpush2.bf16.xpose.msra.mxu0 0
    %2003 = vmatprep.subr.bf16.mxu0 0
    %2004 = vmatpush2.bf16.xpose.msra.mxu0 0
    %2005 = vmatprep.mubr.bf16.mxu0 0
    %2006 = vmatmul.mubr.bf16.gmra.mxu0 %v1968
    %v2007 = vpop.f32.mrf.mxu0
    %v2008 = vadd.f32 0.0, %v2007
    %v2009 = vpop.f32.mrf.mxu0
    %v2010 = vpop.f32.mrf.mxu0
    %v2011 = vadd.f32 0.0, %v2010
    %v2012 = vpop.f32.mrf.mxu0
    %2013 = vdwg.mxu0
    %2015 = vrot.lane.b32.xlu0 %v1961, 96
    %v2016 = vpop.permute.xlu0 %2015
    %2018 = vrot.lane.b32.xlu0 %v1963, 96
    %v2019 = vpop.permute.xlu0 %2018
    %v2021 = vsel %vm467, %v2016, 0
    %v2024 = vsel %vm467, %v2019, 0
    %2026 = vmatprep.subr.bf16.mxu0 0
    %2027 = vmatpush1.bf16.xpose.msra.mxu0 0
    %2028 = vmatprep.subr.bf16.mxu0 0
    %2029 = vmatpush1.bf16.xpose.msra.mxu0 0
    %2030 = vmatprep.subr.bf16.mxu0 0
    %2031 = vmatpush1.bf16.xpose.msra.mxu0 0
    %2032 = vmatprep.subr.bf16.mxu0 0
    %2033 = vmatpush1.bf16.xpose.msra.mxu0 0
    %2034 = vmatprep.subr.bf16.mxu0 0
    %2035 = vmatpush1.bf16.xpose.msra.mxu0 0
    %2036 = vmatprep.subr.bf16.mxu0 0
    %2037 = vmatpush1.bf16.xpose.msra.mxu0 0
    %2038 = vmatprep.subr.bf16.mxu0 0
    %2039 = vmatpush1.bf16.xpose.msra.mxu0 0
    %2040 = vmatprep.subr.bf16.mxu0 0
    %2041 = vmatpush1.bf16.xpose.msra.mxu0 %v2024
    %2042 = vmatprep.subr.bf16.mxu0 0
    %2043 = vmatpush2.bf16.xpose.msra.mxu0 0
    %2044 = vmatprep.subr.bf16.mxu0 0
    %2045 = vmatpush2.bf16.xpose.msra.mxu0 0
    %2046 = vmatprep.subr.bf16.mxu0 0
    %2047 = vmatpush2.bf16.xpose.msra.mxu0 0
    %2048 = vmatprep.subr.bf16.mxu0 0
    %2049 = vmatpush2.bf16.xpose.msra.mxu0 0
    %2050 = vmatprep.subr.bf16.mxu0 0
    %2051 = vmatpush2.bf16.xpose.msra.mxu0 0
    %2052 = vmatprep.subr.bf16.mxu0 0
    %2053 = vmatpush2.bf16.xpose.msra.mxu0 0
    %2054 = vmatprep.subr.bf16.mxu0 0
    %2055 = vmatpush2.bf16.xpose.msra.mxu0 0
    %2056 = vmatprep.subr.bf16.mxu0 0
    %2057 = vmatpush2.bf16.xpose.msra.mxu0 0
    %2058 = vmatprep.mubr.bf16.mxu0 0
    %2059 = vmatmul.mubr.bf16.gmra.mxu0 %v2021
    %v2060 = vpop.f32.mrf.mxu0
    %v2061 = vadd.f32 0.0, %v2060
    %v2062 = vpop.f32.mrf.mxu0
    %v2063 = vpop.f32.mrf.mxu0
    %v2064 = vadd.f32 0.0, %v2063
    %v2065 = vpop.f32.mrf.mxu0
    %2066 = vdwg.mxu0
    %2067 = vrot.lane.b32.xlu0 %v1961, 64
    %v2068 = vpop.permute.xlu0 %2067
    %2069 = vrot.lane.b32.xlu0 %v1963, 64
    %v2070 = vpop.permute.xlu0 %2069
    %v2072 = vsel %vm467, %v2068, 0
    %v2075 = vsel %vm467, %v2070, 0
    %2077 = vmatprep.subr.bf16.mxu0 0
    %2078 = vmatpush1.bf16.xpose.msra.mxu0 0
    %2079 = vmatprep.subr.bf16.mxu0 0
    %2080 = vmatpush1.bf16.xpose.msra.mxu0 0
    %2081 = vmatprep.subr.bf16.mxu0 0
    %2082 = vmatpush1.bf16.xpose.msra.mxu0 0
    %2083 = vmatprep.subr.bf16.mxu0 0
    %2084 = vmatpush1.bf16.xpose.msra.mxu0 0
    %2085 = vmatprep.subr.bf16.mxu0 0
    %2086 = vmatpush1.bf16.xpose.msra.mxu0 0
    %2087 = vmatprep.subr.bf16.mxu0 0
    %2088 = vmatpush1.bf16.xpose.msra.mxu0 0
    %2089 = vmatprep.subr.bf16.mxu0 0
    %2090 = vmatpush1.bf16.xpose.msra.mxu0 0
    %2091 = vmatprep.subr.bf16.mxu0 0
    %2092 = vmatpush1.bf16.xpose.msra.mxu0 %v2075
    %2093 = vmatprep.subr.bf16.mxu0 0
    %2094 = vmatpush2.bf16.xpose.msra.mxu0 0
    %2095 = vmatprep.subr.bf16.mxu0 0
    %2096 = vmatpush2.bf16.xpose.msra.mxu0 0
    %2097 = vmatprep.subr.bf16.mxu0 0
    %2098 = vmatpush2.bf16.xpose.msra.mxu0 0
    %2099 = vmatprep.subr.bf16.mxu0 0
    %2100 = vmatpush2.bf16.xpose.msra.mxu0 0
    %2101 = vmatprep.subr.bf16.mxu0 0
    %2102 = vmatpush2.bf16.xpose.msra.mxu0 0
    %2103 = vmatprep.subr.bf16.mxu0 0
    %2104 = vmatpush2.bf16.xpose.msra.mxu0 0
    %2105 = vmatprep.subr.bf16.mxu0 0
    %2106 = vmatpush2.bf16.xpose.msra.mxu0 0
    %2107 = vmatprep.subr.bf16.mxu0 0
    %2108 = vmatpush2.bf16.xpose.msra.mxu0 0
    %2109 = vmatprep.mubr.bf16.mxu0 0
    %2110 = vmatmul.mubr.bf16.gmra.mxu0 %v2072
    %v2111 = vpop.f32.mrf.mxu0
    %v2112 = vadd.f32 0.0, %v2111
    %v2113 = vpop.f32.mrf.mxu0
    %v2114 = vpop.f32.mrf.mxu0
    %v2115 = vadd.f32 0.0, %v2114
    %v2116 = vpop.f32.mrf.mxu0
    %2117 = vdwg.mxu0
    %2118 = vrot.lane.b32.xlu0 %v1961, 32
    %v2119 = vpop.permute.xlu0 %2118
    %2120 = vrot.lane.b32.xlu0 %v1963, 32
    %v2121 = vpop.permute.xlu0 %2120
    %v2123 = vsel %vm467, %v2119, 0
    %v2126 = vsel %vm467, %v2121, 0
    %2128 = vmatprep.subr.bf16.mxu0 0
    %2129 = vmatpush1.bf16.xpose.msra.mxu0 0
    %2130 = vmatprep.subr.bf16.mxu0 0
    %2131 = vmatpush1.bf16.xpose.msra.mxu0 0
    %2132 = vmatprep.subr.bf16.mxu0 0
    %2133 = vmatpush1.bf16.xpose.msra.mxu0 0
    %2134 = vmatprep.subr.bf16.mxu0 0
    %2135 = vmatpush1.bf16.xpose.msra.mxu0 0
    %2136 = vmatprep.subr.bf16.mxu0 0
    %2137 = vmatpush1.bf16.xpose.msra.mxu0 0
    %2138 = vmatprep.subr.bf16.mxu0 0
    %2139 = vmatpush1.bf16.xpose.msra.mxu0 0
    %2140 = vmatprep.subr.bf16.mxu0 0
    %2141 = vmatpush1.bf16.xpose.msra.mxu0 0
    %2142 = vmatprep.subr.bf16.mxu0 0
    %2143 = vmatpush1.bf16.xpose.msra.mxu0 %v2126
    %2144 = vmatprep.subr.bf16.mxu0 0
    %2145 = vmatpush2.bf16.xpose.msra.mxu0 0
    %2146 = vmatprep.subr.bf16.mxu0 0
    %2147 = vmatpush2.bf16.xpose.msra.mxu0 0
    %2148 = vmatprep.subr.bf16.mxu0 0
    %2149 = vmatpush2.bf16.xpose.msra.mxu0 0
    %2150 = vmatprep.subr.bf16.mxu0 0
    %2151 = vmatpush2.bf16.xpose.msra.mxu0 0
    %2152 = vmatprep.subr.bf16.mxu0 0
    %2153 = vmatpush2.bf16.xpose.msra.mxu0 0
    %2154 = vmatprep.subr.bf16.mxu0 0
    %2155 = vmatpush2.bf16.xpose.msra.mxu0 0
    %2156 = vmatprep.subr.bf16.mxu0 0
    %2157 = vmatpush2.bf16.xpose.msra.mxu0 0
    %2158 = vmatprep.subr.bf16.mxu0 0
    %2159 = vmatpush2.bf16.xpose.msra.mxu0 0
    %2160 = vmatprep.mubr.bf16.mxu0 0
    %2161 = vmatmul.mubr.bf16.gmra.mxu0 %v2123
    %v2162 = vpop.f32.mrf.mxu0
    %v2163 = vadd.f32 0.0, %v2162
    %v2164 = vpop.f32.mrf.mxu0
    %v2165 = vpop.f32.mrf.mxu0
    %v2166 = vadd.f32 0.0, %v2165
    %v2167 = vpop.f32.mrf.mxu0
    %2168 = vdwg.mxu0
    %v2170 = vsel %vm467, %v1962, 0
    %v2173 = vsel %vm467, %v1964, 0
    %2175 = vmatprep.subr.bf16.mxu0 0
    %2176 = vmatpush1.bf16.xpose.msra.mxu0 0
    %2177 = vmatprep.subr.bf16.mxu0 0
    %2178 = vmatpush1.bf16.xpose.msra.mxu0 0
    %2179 = vmatprep.subr.bf16.mxu0 0
    %2180 = vmatpush1.bf16.xpose.msra.mxu0 0
    %2181 = vmatprep.subr.bf16.mxu0 0
    %2182 = vmatpush1.bf16.xpose.msra.mxu0 0
    %2183 = vmatprep.subr.bf16.mxu0 0
    %2184 = vmatpush1.bf16.xpose.msra.mxu0 0
    %2185 = vmatprep.subr.bf16.mxu0 0
    %2186 = vmatpush1.bf16.xpose.msra.mxu0 0
    %2187 = vmatprep.subr.bf16.mxu0 0
    %2188 = vmatpush1.bf16.xpose.msra.mxu0 0
    %2189 = vmatprep.subr.bf16.mxu0 0
    %2190 = vmatpush1.bf16.xpose.msra.mxu0 %v2173
    %2191 = vmatprep.subr.bf16.mxu0 0
    %2192 = vmatpush2.bf16.xpose.msra.mxu0 0
    %2193 = vmatprep.subr.bf16.mxu0 0
    %2194 = vmatpush2.bf16.xpose.msra.mxu0 0
    %2195 = vmatprep.subr.bf16.mxu0 0
    %2196 = vmatpush2.bf16.xpose.msra.mxu0 0
    %2197 = vmatprep.subr.bf16.mxu0 0
    %2198 = vmatpush2.bf16.xpose.msra.mxu0 0
    %2199 = vmatprep.subr.bf16.mxu0 0
    %2200 = vmatpush2.bf16.xpose.msra.mxu0 0
    %2201 = vmatprep.subr.bf16.mxu0 0
    %2202 = vmatpush2.bf16.xpose.msra.mxu0 0
    %2203 = vmatprep.subr.bf16.mxu0 0
    %2204 = vmatpush2.bf16.xpose.msra.mxu0 0
    %2205 = vmatprep.subr.bf16.mxu0 0
    %2206 = vmatpush2.bf16.xpose.msra.mxu0 0
    %2207 = vmatprep.mubr.bf16.mxu0 0
    %2208 = vmatmul.mubr.bf16.gmra.mxu0 %v2170
    %v2209 = vpop.f32.mrf.mxu0
    %v2210 = vadd.f32 0.0, %v2209
    %v2211 = vpop.f32.mrf.mxu0
    %v2212 = vpop.f32.mrf.mxu0
    %v2213 = vadd.f32 0.0, %v2212
    %v2214 = vpop.f32.mrf.mxu0
    %2215 = vdwg.mxu0
    %2217 = vrot.lane.b32.xlu0 %v1962, 96
    %v2218 = vpop.permute.xlu0 %2217
    %2220 = vrot.lane.b32.xlu0 %v1964, 96
    %v2221 = vpop.permute.xlu0 %2220
    %v2223 = vsel %vm467, %v2218, 0
    %v2226 = vsel %vm467, %v2221, 0
    %2228 = vmatprep.subr.bf16.mxu0 0
    %2229 = vmatpush1.bf16.xpose.msra.mxu0 0
    %2230 = vmatprep.subr.bf16.mxu0 0
    %2231 = vmatpush1.bf16.xpose.msra.mxu0 0
    %2232 = vmatprep.subr.bf16.mxu0 0
    %2233 = vmatpush1.bf16.xpose.msra.mxu0 0
    %2234 = vmatprep.subr.bf16.mxu0 0
    %2235 = vmatpush1.bf16.xpose.msra.mxu0 0
    %2236 = vmatprep.subr.bf16.mxu0 0
    %2237 = vmatpush1.bf16.xpose.msra.mxu0 0
    %2238 = vmatprep.subr.bf16.mxu0 0
    %2239 = vmatpush1.bf16.xpose.msra.mxu0 0
    %2240 = vmatprep.subr.bf16.mxu0 0
    %2241 = vmatpush1.bf16.xpose.msra.mxu0 0
    %2242 = vmatprep.subr.bf16.mxu0 0
    %2243 = vmatpush1.bf16.xpose.msra.mxu0 %v2226
    %2244 = vmatprep.subr.bf16.mxu0 0
    %2245 = vmatpush2.bf16.xpose.msra.mxu0 0
    %2246 = vmatprep.subr.bf16.mxu0 0
    %2247 = vmatpush2.bf16.xpose.msra.mxu0 0
    %2248 = vmatprep.subr.bf16.mxu0 0
    %2249 = vmatpush2.bf16.xpose.msra.mxu0 0
    %2250 = vmatprep.subr.bf16.mxu0 0
    %2251 = vmatpush2.bf16.xpose.msra.mxu0 0
    %2252 = vmatprep.subr.bf16.mxu0 0
    %2253 = vmatpush2.bf16.xpose.msra.mxu0 0
    %2254 = vmatprep.subr.bf16.mxu0 0
    %2255 = vmatpush2.bf16.xpose.msra.mxu0 0
    %2256 = vmatprep.subr.bf16.mxu0 0
    %2257 = vmatpush2.bf16.xpose.msra.mxu0 0
    %2258 = vmatprep.subr.bf16.mxu0 0
    %2259 = vmatpush2.bf16.xpose.msra.mxu0 0
    %2260 = vmatprep.mubr.bf16.mxu0 0
    %2261 = vmatmul.mubr.bf16.gmra.mxu0 %v2223
    %v2262 = vpop.f32.mrf.mxu0
    %v2263 = vadd.f32 0.0, %v2262
    %v2264 = vpop.f32.mrf.mxu0
    %v2265 = vpop.f32.mrf.mxu0
    %v2266 = vadd.f32 0.0, %v2265
    %v2267 = vpop.f32.mrf.mxu0
    %2268 = vdwg.mxu0
    %2269 = vrot.lane.b32.xlu0 %v1962, 64
    %v2270 = vpop.permute.xlu0 %2269
    %2271 = vrot.lane.b32.xlu0 %v1964, 64
    %v2272 = vpop.permute.xlu0 %2271
    %v2274 = vsel %vm467, %v2270, 0
    %v2277 = vsel %vm467, %v2272, 0
    %2279 = vmatprep.subr.bf16.mxu0 0
    %2280 = vmatpush1.bf16.xpose.msra.mxu0 0
    %2281 = vmatprep.subr.bf16.mxu0 0
    %2282 = vmatpush1.bf16.xpose.msra.mxu0 0
    %2283 = vmatprep.subr.bf16.mxu0 0
    %2284 = vmatpush1.bf16.xpose.msra.mxu0 0
    %2285 = vmatprep.subr.bf16.mxu0 0
    %2286 = vmatpush1.bf16.xpose.msra.mxu0 0
    %2287 = vmatprep.subr.bf16.mxu0 0
    %2288 = vmatpush1.bf16.xpose.msra.mxu0 0
    %2289 = vmatprep.subr.bf16.mxu0 0
    %2290 = vmatpush1.bf16.xpose.msra.mxu0 0
    %2291 = vmatprep.subr.bf16.mxu0 0
    %2292 = vmatpush1.bf16.xpose.msra.mxu0 0
    %2293 = vmatprep.subr.bf16.mxu0 0
    %2294 = vmatpush1.bf16.xpose.msra.mxu0 %v2277
    %2295 = vmatprep.subr.bf16.mxu0 0
    %2296 = vmatpush2.bf16.xpose.msra.mxu0 0
    %2297 = vmatprep.subr.bf16.mxu0 0
    %2298 = vmatpush2.bf16.xpose.msra.mxu0 0
    %2299 = vmatprep.subr.bf16.mxu0 0
    %2300 = vmatpush2.bf16.xpose.msra.mxu0 0
    %2301 = vmatprep.subr.bf16.mxu0 0
    %2302 = vmatpush2.bf16.xpose.msra.mxu0 0
    %2303 = vmatprep.subr.bf16.mxu0 0
    %2304 = vmatpush2.bf16.xpose.msra.mxu0 0
    %2305 = vmatprep.subr.bf16.mxu0 0
    %2306 = vmatpush2.bf16.xpose.msra.mxu0 0
    %2307 = vmatprep.subr.bf16.mxu0 0
    %2308 = vmatpush2.bf16.xpose.msra.mxu0 0
    %2309 = vmatprep.subr.bf16.mxu0 0
    %2310 = vmatpush2.bf16.xpose.msra.mxu0 0
    %2311 = vmatprep.mubr.bf16.mxu0 0
    %2312 = vmatmul.mubr.bf16.gmra.mxu0 %v2274
    %v2313 = vpop.f32.mrf.mxu0
    %v2314 = vadd.f32 0.0, %v2313
    %v2315 = vpop.f32.mrf.mxu0
    %v2316 = vpop.f32.mrf.mxu0
    %v2317 = vadd.f32 0.0, %v2316
    %v2318 = vpop.f32.mrf.mxu0
    %2319 = vdwg.mxu0
    %2320 = vrot.lane.b32.xlu0 %v1962, 32
    %v2321 = vpop.permute.xlu0 %2320
    %2322 = vrot.lane.b32.xlu0 %v1964, 32
    %v2323 = vpop.permute.xlu0 %2322
    %v2325 = vsel %vm467, %v2321, 0
    %v2328 = vsel %vm467, %v2323, 0
    %2330 = vmatprep.subr.bf16.mxu0 0
    %2331 = vmatpush1.bf16.xpose.msra.mxu0 0
    %2332 = vmatprep.subr.bf16.mxu0 0
    %2333 = vmatpush1.bf16.xpose.msra.mxu0 0
    %2334 = vmatprep.subr.bf16.mxu0 0
    %2335 = vmatpush1.bf16.xpose.msra.mxu0 0
    %2336 = vmatprep.subr.bf16.mxu0 0
    %2337 = vmatpush1.bf16.xpose.msra.mxu0 0
    %2338 = vmatprep.subr.bf16.mxu0 0
    %2339 = vmatpush1.bf16.xpose.msra.mxu0 0
    %2340 = vmatprep.subr.bf16.mxu0 0
    %2341 = vmatpush1.bf16.xpose.msra.mxu0 0
    %2342 = vmatprep.subr.bf16.mxu0 0
    %2343 = vmatpush1.bf16.xpose.msra.mxu0 0
    %2344 = vmatprep.subr.bf16.mxu0 0
    %2345 = vmatpush1.bf16.xpose.msra.mxu0 %v2328
    %2346 = vmatprep.subr.bf16.mxu0 0
    %2347 = vmatpush2.bf16.xpose.msra.mxu0 0
    %2348 = vmatprep.subr.bf16.mxu0 0
    %2349 = vmatpush2.bf16.xpose.msra.mxu0 0
    %2350 = vmatprep.subr.bf16.mxu0 0
    %2351 = vmatpush2.bf16.xpose.msra.mxu0 0
    %2352 = vmatprep.subr.bf16.mxu0 0
    %2353 = vmatpush2.bf16.xpose.msra.mxu0 0
    %2354 = vmatprep.subr.bf16.mxu0 0
    %2355 = vmatpush2.bf16.xpose.msra.mxu0 0
    %2356 = vmatprep.subr.bf16.mxu0 0
    %2357 = vmatpush2.bf16.xpose.msra.mxu0 0
    %2358 = vmatprep.subr.bf16.mxu0 0
    %2359 = vmatpush2.bf16.xpose.msra.mxu0 0
    %2360 = vmatprep.subr.bf16.mxu0 0
    %2361 = vmatpush2.bf16.xpose.msra.mxu0 0
    %2362 = vmatprep.mubr.bf16.mxu0 0
    %2363 = vmatmul.mubr.bf16.gmra.mxu0 %v2325
    %v2364 = vpop.f32.mrf.mxu0
    %v2365 = vadd.f32 0.0, %v2364
    %v2366 = vpop.f32.mrf.mxu0
    %v2367 = vpop.f32.mrf.mxu0
    %v2368 = vadd.f32 0.0, %v2367
    %v2369 = vpop.f32.mrf.mxu0
    %2370 = vdwg.mxu0
    %v2371 = vsel %vm872, %v2008, -inf
    %2372 = vmax.xlane.f32.xlu0 %v2371
    %v2373 = vpop.xlane.xlu0 %2372
    %v2374 = vsel %vm872, %v2011, -inf
    %2375 = vmax.xlane.f32.xlu0 %v2374
    %v2376 = vpop.xlane.xlu0 %2375
    %v2377 = vsel %vm872, %v2061, -inf
    %2378 = vmax.xlane.f32.xlu0 %v2377
    %v2379 = vpop.xlane.xlu0 %2378
    %v2380 = vsel %vm872, %v2064, -inf
    %2381 = vmax.xlane.f32.xlu0 %v2380
    %v2382 = vpop.xlane.xlu0 %2381
    %v2383 = vsel %vm872, %v2112, -inf
    %2384 = vmax.xlane.f32.xlu0 %v2383
    %v2385 = vpop.xlane.xlu0 %2384
    %v2386 = vsel %vm872, %v2115, -inf
    %2387 = vmax.xlane.f32.xlu0 %v2386
    %v2388 = vpop.xlane.xlu0 %2387
    %v2389 = vsel %vm872, %v2163, -inf
    %2390 = vmax.xlane.f32.xlu0 %v2389
    %v2391 = vpop.xlane.xlu0 %2390
    %v2392 = vsel %vm872, %v2166, -inf
    %2393 = vmax.xlane.f32.xlu0 %v2392
    %v2394 = vpop.xlane.xlu0 %2393
    %v2395 = vsel %vm872, %v2210, -inf
    %2396 = vmax.xlane.f32.xlu0 %v2395
    %v2397 = vpop.xlane.xlu0 %2396
    %v2398 = vsel %vm872, %v2213, -inf
    %2399 = vmax.xlane.f32.xlu0 %v2398
    %v2400 = vpop.xlane.xlu0 %2399
    %v2401 = vsel %vm872, %v2263, -inf
    %2402 = vmax.xlane.f32.xlu0 %v2401
    %v2403 = vpop.xlane.xlu0 %2402
    %v2404 = vsel %vm872, %v2266, -inf
    %2405 = vmax.xlane.f32.xlu0 %v2404
    %v2406 = vpop.xlane.xlu0 %2405
    %v2407 = vsel %vm872, %v2314, -inf
    %2408 = vmax.xlane.f32.xlu0 %v2407
    %v2409 = vpop.xlane.xlu0 %2408
    %v2410 = vsel %vm872, %v2317, -inf
    %2411 = vmax.xlane.f32.xlu0 %v2410
    %v2412 = vpop.xlane.xlu0 %2411
    %v2413 = vsel %vm872, %v2365, -inf
    %2414 = vmax.xlane.f32.xlu0 %v2413
    %v2415 = vpop.xlane.xlu0 %2414
    %v2416 = vsel %vm872, %v2368, -inf
    %2417 = vmax.xlane.f32.xlu0 %v2416
    %v2418 = vpop.xlane.xlu0 %2417
    %v2419 = vsub.f32 %v2008, %v2373
    %v2420 = vsub.f32 %v2011, %v2376
    %v2421 = vsub.f32 %v2061, %v2379
    %v2422 = vsub.f32 %v2064, %v2382
    %v2423 = vsub.f32 %v2112, %v2385
    %v2424 = vsub.f32 %v2115, %v2388
    %v2425 = vsub.f32 %v2163, %v2391
    %v2426 = vsub.f32 %v2166, %v2394
    %v2427 = vsub.f32 %v2210, %v2397
    %v2428 = vsub.f32 %v2213, %v2400
    %v2429 = vsub.f32 %v2263, %v2403
    %v2430 = vsub.f32 %v2266, %v2406
    %v2431 = vsub.f32 %v2314, %v2409
    %v2432 = vsub.f32 %v2317, %v2412
    %v2433 = vsub.f32 %v2365, %v2415
    %v2434 = vsub.f32 %v2368, %v2418
    %v2435 = vmul.f32 %v2419, 1.442695
    %v2436 = vpow.pop %v2435
    %v2437 = vmul.f32 %v2420, 1.442695
    %v2438 = vpow.pop %v2437
    %v2439 = vmul.f32 %v2421, 1.442695
    %v2440 = vpow.pop %v2439
    %v2441 = vmul.f32 %v2422, 1.442695
    %v2442 = vpow.pop %v2441
    %v2443 = vmul.f32 %v2423, 1.442695
    %v2444 = vpow.pop %v2443
    %v2445 = vmul.f32 %v2424, 1.442695
    %v2446 = vpow.pop %v2445
    %v2447 = vmul.f32 %v2425, 1.442695
    %v2448 = vpow.pop %v2447
    %v2449 = vmul.f32 %v2426, 1.442695
    %v2450 = vpow.pop %v2449
    %v2451 = vmul.f32 %v2427, 1.442695
    %v2452 = vpow.pop %v2451
    %v2453 = vmul.f32 %v2428, 1.442695
    %v2454 = vpow.pop %v2453
    %v2455 = vmul.f32 %v2429, 1.442695
    %v2456 = vpow.pop %v2455
    %v2457 = vmul.f32 %v2430, 1.442695
    %v2458 = vpow.pop %v2457
    %v2459 = vmul.f32 %v2431, 1.442695
    %v2460 = vpow.pop %v2459
    %v2461 = vmul.f32 %v2432, 1.442695
    %v2462 = vpow.pop %v2461
    %v2463 = vmul.f32 %v2433, 1.442695
    %v2464 = vpow.pop %v2463
    %v2465 = vmul.f32 %v2434, 1.442695
    %v2466 = vpow.pop %v2465
    %v2467 = vsel %vm872, %v2436, 0.0
    %2468 = vadd.xlane.f32.xlu0 %v2467
    %v2469 = vpop.xlane.xlu0 %2468
    %v2470 = vsel %vm872, %v2438, 0.0
    %2471 = vadd.xlane.f32.xlu0 %v2470
    %v2472 = vpop.xlane.xlu0 %2471
    %v2473 = vsel %vm872, %v2440, 0.0
    %2474 = vadd.xlane.f32.xlu0 %v2473
    %v2475 = vpop.xlane.xlu0 %2474
    %v2476 = vsel %vm872, %v2442, 0.0
    %2477 = vadd.xlane.f32.xlu0 %v2476
    %v2478 = vpop.xlane.xlu0 %2477
    %v2479 = vsel %vm872, %v2444, 0.0
    %2480 = vadd.xlane.f32.xlu0 %v2479
    %v2481 = vpop.xlane.xlu0 %2480
    %v2482 = vsel %vm872, %v2446, 0.0
    %2483 = vadd.xlane.f32.xlu0 %v2482
    %v2484 = vpop.xlane.xlu0 %2483
    %v2485 = vsel %vm872, %v2448, 0.0
    %2486 = vadd.xlane.f32.xlu0 %v2485
    %v2487 = vpop.xlane.xlu0 %2486
    %v2488 = vsel %vm872, %v2450, 0.0
    %2489 = vadd.xlane.f32.xlu0 %v2488
    %v2490 = vpop.xlane.xlu0 %2489
    %v2491 = vsel %vm872, %v2452, 0.0
    %2492 = vadd.xlane.f32.xlu0 %v2491
    %v2493 = vpop.xlane.xlu0 %2492
    %v2494 = vsel %vm872, %v2454, 0.0
    %2495 = vadd.xlane.f32.xlu0 %v2494
    %v2496 = vpop.xlane.xlu0 %2495
    %v2497 = vsel %vm872, %v2456, 0.0
    %2498 = vadd.xlane.f32.xlu0 %v2497
    %v2499 = vpop.xlane.xlu0 %2498
    %v2500 = vsel %vm872, %v2458, 0.0
    %2501 = vadd.xlane.f32.xlu0 %v2500
    %v2502 = vpop.xlane.xlu0 %2501
    %v2503 = vsel %vm872, %v2460, 0.0
    %2504 = vadd.xlane.f32.xlu0 %v2503
    %v2505 = vpop.xlane.xlu0 %2504
    %v2506 = vsel %vm872, %v2462, 0.0
    %2507 = vadd.xlane.f32.xlu0 %v2506
    %v2508 = vpop.xlane.xlu0 %2507
    %v2509 = vsel %vm872, %v2464, 0.0
    %2510 = vadd.xlane.f32.xlu0 %v2509
    %v2511 = vpop.xlane.xlu0 %2510
    %v2512 = vsel %vm872, %v2466, 0.0
    %2513 = vadd.xlane.f32.xlu0 %v2512
    %v2514 = vpop.xlane.xlu0 %2513
    %v2515 = vrcp.pop %v2469
    %v2516 = vrcp.pop %v2472
    %v2517 = vrcp.pop %v2475
    %v2518 = vrcp.pop %v2478
    %v2519 = vrcp.pop %v2481
    %v2520 = vrcp.pop %v2484
    %v2521 = vrcp.pop %v2487
    %v2522 = vrcp.pop %v2490
    %v2523 = vrcp.pop %v2493
    %v2524 = vrcp.pop %v2496
    %v2525 = vrcp.pop %v2499
    %v2526 = vrcp.pop %v2502
    %v2527 = vrcp.pop %v2505
    %v2528 = vrcp.pop %v2508
    %v2529 = vrcp.pop %v2511
    %v2530 = vrcp.pop %v2514
    %v2531 = vmul.f32 %v2436, %v2515
    %v2532 = vmul.f32 %v2438, %v2516
    %v2533 = vmul.f32 %v2440, %v2517
    %v2534 = vmul.f32 %v2442, %v2518
    %v2535 = vmul.f32 %v2444, %v2519
    %v2536 = vmul.f32 %v2446, %v2520
    %v2537 = vmul.f32 %v2448, %v2521
    %v2538 = vmul.f32 %v2450, %v2522
    %v2539 = vmul.f32 %v2452, %v2523
    %v2540 = vmul.f32 %v2454, %v2524
    %v2541 = vmul.f32 %v2456, %v2525
    %v2542 = vmul.f32 %v2458, %v2526
    %v2543 = vmul.f32 %v2460, %v2527
    %v2544 = vmul.f32 %v2462, %v2528
    %v2545 = vmul.f32 %v2464, %v2529
    %v2546 = vmul.f32 %v2466, %v2530
    %v2547 = vpack.c.bf16 %v2532, %v2531
    %v2548 = vpack.c.bf16 %v2534, %v2533
    %v2549 = vpack.c.bf16 %v2536, %v2535
    %v2550 = vpack.c.bf16 %v2538, %v2537
    %v2551 = vpack.c.bf16 %v2540, %v2539
    %v2552 = vpack.c.bf16 %v2542, %v2541
    %v2553 = vpack.c.bf16 %v2544, %v2543
    %v2554 = vpack.c.bf16 %v2546, %v2545
    %v2556 = vsel %vm872, %v2547, 0
    %2558 = vmatprep.subr.bf16.mxu0 0
    %2559 = vmatpush1.bf16.msra.mxu0 0
    %2560 = vmatprep.subr.bf16.mxu0 0
    %2561 = vmatpush1.bf16.msra.mxu0 0
    %2562 = vmatprep.subr.bf16.mxu0 0
    %2563 = vmatpush1.bf16.msra.mxu0 0
    %2564 = vmatprep.subr.bf16.mxu0 0
    %2565 = vmatpush1.bf16.msra.mxu0 0
    %2566 = vmatprep.subr.bf16.mxu0 0
    %2567 = vmatpush1.bf16.msra.mxu0 0
    %2568 = vmatprep.subr.bf16.mxu0 0
    %2569 = vmatpush1.bf16.msra.mxu0 0
    %2570 = vmatprep.subr.bf16.mxu0 0
    %2571 = vmatpush1.bf16.msra.mxu0 0
    %2572 = vmatprep.subr.bf16.mxu0 0
    %2573 = vmatpush1.bf16.msra.mxu0 %v1965
    %2574 = vmatprep.subr.bf16.mxu0 0
    %2575 = vmatpush2.bf16.msra.mxu0 0
    %2576 = vmatprep.subr.bf16.mxu0 0
    %2577 = vmatpush2.bf16.msra.mxu0 0
    %2578 = vmatprep.subr.bf16.mxu0 0
    %2579 = vmatpush2.bf16.msra.mxu0 0
    %2580 = vmatprep.subr.bf16.mxu0 0
    %2581 = vmatpush2.bf16.msra.mxu0 0
    %2582 = vmatprep.subr.bf16.mxu0 0
    %2583 = vmatpush2.bf16.msra.mxu0 0
    %2584 = vmatprep.subr.bf16.mxu0 0
    %2585 = vmatpush2.bf16.msra.mxu0 0
    %2586 = vmatprep.subr.bf16.mxu0 0
    %2587 = vmatpush2.bf16.msra.mxu0 0
    %2588 = vmatprep.subr.bf16.mxu0 0
    %2589 = vmatpush2.bf16.msra.mxu0 0
    %2590 = vmatprep.mubr.bf16.mxu0 0
    %2591 = vmatmul.mubr.bf16.gmra.mxu0 %v2556
    %v2592 = vpop.f32.mrf.mxu0
    %v2593 = vadd.f32 0.0, %v2592
    %v2594 = vpop.f32.mrf.mxu0
    %v2595 = vpop.f32.mrf.mxu0
    %v2596 = vadd.f32 0.0, %v2595
    %v2597 = vpop.f32.mrf.mxu0
    %2598 = vdwg.mxu0
    %2600 = vrot.lane.b32.xlu0 %v1965, 96
    %v2601 = vpop.permute.xlu0 %2600
    %v2604 = vsel %vm872, %v2548, 0
    %2606 = vmatprep.subr.bf16.mxu0 0
    %2607 = vmatpush1.bf16.msra.mxu0 0
    %2608 = vmatprep.subr.bf16.mxu0 0
    %2609 = vmatpush1.bf16.msra.mxu0 0
    %2610 = vmatprep.subr.bf16.mxu0 0
    %2611 = vmatpush1.bf16.msra.mxu0 0
    %2612 = vmatprep.subr.bf16.mxu0 0
    %2613 = vmatpush1.bf16.msra.mxu0 0
    %2614 = vmatprep.subr.bf16.mxu0 0
    %2615 = vmatpush1.bf16.msra.mxu0 0
    %2616 = vmatprep.subr.bf16.mxu0 0
    %2617 = vmatpush1.bf16.msra.mxu0 0
    %2618 = vmatprep.subr.bf16.mxu0 0
    %2619 = vmatpush1.bf16.msra.mxu0 0
    %2620 = vmatprep.subr.bf16.mxu0 0
    %2621 = vmatpush1.bf16.msra.mxu0 %v2601
    %2622 = vmatprep.subr.bf16.mxu0 0
    %2623 = vmatpush2.bf16.msra.mxu0 0
    %2624 = vmatprep.subr.bf16.mxu0 0
    %2625 = vmatpush2.bf16.msra.mxu0 0
    %2626 = vmatprep.subr.bf16.mxu0 0
    %2627 = vmatpush2.bf16.msra.mxu0 0
    %2628 = vmatprep.subr.bf16.mxu0 0
    %2629 = vmatpush2.bf16.msra.mxu0 0
    %2630 = vmatprep.subr.bf16.mxu0 0
    %2631 = vmatpush2.bf16.msra.mxu0 0
    %2632 = vmatprep.subr.bf16.mxu0 0
    %2633 = vmatpush2.bf16.msra.mxu0 0
    %2634 = vmatprep.subr.bf16.mxu0 0
    %2635 = vmatpush2.bf16.msra.mxu0 0
    %2636 = vmatprep.subr.bf16.mxu0 0
    %2637 = vmatpush2.bf16.msra.mxu0 0
    %2638 = vmatprep.mubr.bf16.mxu0 0
    %2639 = vmatmul.mubr.bf16.gmra.mxu0 %v2604
    %v2640 = vpop.f32.mrf.mxu0
    %v2641 = vadd.f32 0.0, %v2640
    %v2642 = vpop.f32.mrf.mxu0
    %v2643 = vpop.f32.mrf.mxu0
    %v2644 = vadd.f32 0.0, %v2643
    %v2645 = vpop.f32.mrf.mxu0
    %2646 = vdwg.mxu0
    %2647 = vrot.lane.b32.xlu0 %v1965, 64
    %v2648 = vpop.permute.xlu0 %2647
    %v2651 = vsel %vm872, %v2549, 0
    %2653 = vmatprep.subr.bf16.mxu0 0
    %2654 = vmatpush1.bf16.msra.mxu0 0
    %2655 = vmatprep.subr.bf16.mxu0 0
    %2656 = vmatpush1.bf16.msra.mxu0 0
    %2657 = vmatprep.subr.bf16.mxu0 0
    %2658 = vmatpush1.bf16.msra.mxu0 0
    %2659 = vmatprep.subr.bf16.mxu0 0
    %2660 = vmatpush1.bf16.msra.mxu0 0
    %2661 = vmatprep.subr.bf16.mxu0 0
    %2662 = vmatpush1.bf16.msra.mxu0 0
    %2663 = vmatprep.subr.bf16.mxu0 0
    %2664 = vmatpush1.bf16.msra.mxu0 0
    %2665 = vmatprep.subr.bf16.mxu0 0
    %2666 = vmatpush1.bf16.msra.mxu0 0
    %2667 = vmatprep.subr.bf16.mxu0 0
    %2668 = vmatpush1.bf16.msra.mxu0 %v2648
    %2669 = vmatprep.subr.bf16.mxu0 0
    %2670 = vmatpush2.bf16.msra.mxu0 0
    %2671 = vmatprep.subr.bf16.mxu0 0
    %2672 = vmatpush2.bf16.msra.mxu0 0
    %2673 = vmatprep.subr.bf16.mxu0 0
    %2674 = vmatpush2.bf16.msra.mxu0 0
    %2675 = vmatprep.subr.bf16.mxu0 0
    %2676 = vmatpush2.bf16.msra.mxu0 0
    %2677 = vmatprep.subr.bf16.mxu0 0
    %2678 = vmatpush2.bf16.msra.mxu0 0
    %2679 = vmatprep.subr.bf16.mxu0 0
    %2680 = vmatpush2.bf16.msra.mxu0 0
    %2681 = vmatprep.subr.bf16.mxu0 0
    %2682 = vmatpush2.bf16.msra.mxu0 0
    %2683 = vmatprep.subr.bf16.mxu0 0
    %2684 = vmatpush2.bf16.msra.mxu0 0
    %2685 = vmatprep.mubr.bf16.mxu0 0
    %2686 = vmatmul.mubr.bf16.gmra.mxu0 %v2651
    %v2687 = vpop.f32.mrf.mxu0
    %v2688 = vadd.f32 0.0, %v2687
    %v2689 = vpop.f32.mrf.mxu0
    %v2690 = vpop.f32.mrf.mxu0
    %v2691 = vadd.f32 0.0, %v2690
    %v2692 = vpop.f32.mrf.mxu0
    %2693 = vdwg.mxu0
    %2694 = vrot.lane.b32.xlu0 %v1965, 32
    %v2695 = vpop.permute.xlu0 %2694
    %v2698 = vsel %vm872, %v2550, 0
    %2700 = vmatprep.subr.bf16.mxu0 0
    %2701 = vmatpush1.bf16.msra.mxu0 0
    %2702 = vmatprep.subr.bf16.mxu0 0
    %2703 = vmatpush1.bf16.msra.mxu0 0
    %2704 = vmatprep.subr.bf16.mxu0 0
    %2705 = vmatpush1.bf16.msra.mxu0 0
    %2706 = vmatprep.subr.bf16.mxu0 0
    %2707 = vmatpush1.bf16.msra.mxu0 0
    %2708 = vmatprep.subr.bf16.mxu0 0
    %2709 = vmatpush1.bf16.msra.mxu0 0
    %2710 = vmatprep.subr.bf16.mxu0 0
    %2711 = vmatpush1.bf16.msra.mxu0 0
    %2712 = vmatprep.subr.bf16.mxu0 0
    %2713 = vmatpush1.bf16.msra.mxu0 0
    %2714 = vmatprep.subr.bf16.mxu0 0
    %2715 = vmatpush1.bf16.msra.mxu0 %v2695
    %2716 = vmatprep.subr.bf16.mxu0 0
    %2717 = vmatpush2.bf16.msra.mxu0 0
    %2718 = vmatprep.subr.bf16.mxu0 0
    %2719 = vmatpush2.bf16.msra.mxu0 0
    %2720 = vmatprep.subr.bf16.mxu0 0
    %2721 = vmatpush2.bf16.msra.mxu0 0
    %2722 = vmatprep.subr.bf16.mxu0 0
    %2723 = vmatpush2.bf16.msra.mxu0 0
    %2724 = vmatprep.subr.bf16.mxu0 0
    %2725 = vmatpush2.bf16.msra.mxu0 0
    %2726 = vmatprep.subr.bf16.mxu0 0
    %2727 = vmatpush2.bf16.msra.mxu0 0
    %2728 = vmatprep.subr.bf16.mxu0 0
    %2729 = vmatpush2.bf16.msra.mxu0 0
    %2730 = vmatprep.subr.bf16.mxu0 0
    %2731 = vmatpush2.bf16.msra.mxu0 0
    %2732 = vmatprep.mubr.bf16.mxu0 0
    %2733 = vmatmul.mubr.bf16.gmra.mxu0 %v2698
    %v2734 = vpop.f32.mrf.mxu0
    %v2735 = vadd.f32 0.0, %v2734
    %v2736 = vpop.f32.mrf.mxu0
    %v2737 = vpop.f32.mrf.mxu0
    %v2738 = vadd.f32 0.0, %v2737
    %v2739 = vpop.f32.mrf.mxu0
    %2740 = vdwg.mxu0
    %2743 = vrot.lane.b32.xlu0 %v2641, 32
    %v2744 = vpop.permute.xlu0 %2743
    %2745 = vrot.lane.b32.xlu0 %v2644, 32
    %v2746 = vpop.permute.xlu0 %2745
    %2751 = vrot.lane.b32.xlu0 %v2688, 64
    %v2752 = vpop.permute.xlu0 %2751
    %2753 = vrot.lane.b32.xlu0 %v2691, 64
    %v2754 = vpop.permute.xlu0 %2753
    %2759 = vrot.lane.b32.xlu0 %v2735, 96
    %v2760 = vpop.permute.xlu0 %2759
    %2761 = vrot.lane.b32.xlu0 %v2738, 96
    %v2762 = vpop.permute.xlu0 %2761
    %v2765 = vsel %vm467, %v2593, %v2744
    %v2766 = vsel %vm467, %v2596, %v2746
    %v2767 = vsel %vm1269, %v2765, %v2752
    %v2768 = vsel %vm1269, %v2766, %v2754
    %v2769 = vsel %vm1272, %v2767, %v2760
    %v2770 = vsel %vm1272, %v2768, %v2762
    %v2772 = vsel %vm872, %v2551, 0
    %2774 = vmatprep.subr.bf16.mxu0 0
    %2775 = vmatpush1.bf16.msra.mxu0 0
    %2776 = vmatprep.subr.bf16.mxu0 0
    %2777 = vmatpush1.bf16.msra.mxu0 0
    %2778 = vmatprep.subr.bf16.mxu0 0
    %2779 = vmatpush1.bf16.msra.mxu0 0
    %2780 = vmatprep.subr.bf16.mxu0 0
    %2781 = vmatpush1.bf16.msra.mxu0 0
    %2782 = vmatprep.subr.bf16.mxu0 0
    %2783 = vmatpush1.bf16.msra.mxu0 0
    %2784 = vmatprep.subr.bf16.mxu0 0
    %2785 = vmatpush1.bf16.msra.mxu0 0
    %2786 = vmatprep.subr.bf16.mxu0 0
    %2787 = vmatpush1.bf16.msra.mxu0 0
    %2788 = vmatprep.subr.bf16.mxu0 0
    %2789 = vmatpush1.bf16.msra.mxu0 %v1966
    %2790 = vmatprep.subr.bf16.mxu0 0
    %2791 = vmatpush2.bf16.msra.mxu0 0
    %2792 = vmatprep.subr.bf16.mxu0 0
    %2793 = vmatpush2.bf16.msra.mxu0 0
    %2794 = vmatprep.subr.bf16.mxu0 0
    %2795 = vmatpush2.bf16.msra.mxu0 0
    %2796 = vmatprep.subr.bf16.mxu0 0
    %2797 = vmatpush2.bf16.msra.mxu0 0
    %2798 = vmatprep.subr.bf16.mxu0 0
    %2799 = vmatpush2.bf16.msra.mxu0 0
    %2800 = vmatprep.subr.bf16.mxu0 0
    %2801 = vmatpush2.bf16.msra.mxu0 0
    %2802 = vmatprep.subr.bf16.mxu0 0
    %2803 = vmatpush2.bf16.msra.mxu0 0
    %2804 = vmatprep.subr.bf16.mxu0 0
    %2805 = vmatpush2.bf16.msra.mxu0 0
    %2806 = vmatprep.mubr.bf16.mxu0 0
    %2807 = vmatmul.mubr.bf16.gmra.mxu0 %v2772
    %v2808 = vpop.f32.mrf.mxu0
    %v2809 = vadd.f32 0.0, %v2808
    %v2810 = vpop.f32.mrf.mxu0
    %v2811 = vpop.f32.mrf.mxu0
    %v2812 = vadd.f32 0.0, %v2811
    %v2813 = vpop.f32.mrf.mxu0
    %2814 = vdwg.mxu0
    %2816 = vrot.lane.b32.xlu0 %v1966, 96
    %v2817 = vpop.permute.xlu0 %2816
    %v2820 = vsel %vm872, %v2552, 0
    %2822 = vmatprep.subr.bf16.mxu0 0
    %2823 = vmatpush1.bf16.msra.mxu0 0
    %2824 = vmatprep.subr.bf16.mxu0 0
    %2825 = vmatpush1.bf16.msra.mxu0 0
    %2826 = vmatprep.subr.bf16.mxu0 0
    %2827 = vmatpush1.bf16.msra.mxu0 0
    %2828 = vmatprep.subr.bf16.mxu0 0
    %2829 = vmatpush1.bf16.msra.mxu0 0
    %2830 = vmatprep.subr.bf16.mxu0 0
    %2831 = vmatpush1.bf16.msra.mxu0 0
    %2832 = vmatprep.subr.bf16.mxu0 0
    %2833 = vmatpush1.bf16.msra.mxu0 0
    %2834 = vmatprep.subr.bf16.mxu0 0
    %2835 = vmatpush1.bf16.msra.mxu0 0
    %2836 = vmatprep.subr.bf16.mxu0 0
    %2837 = vmatpush1.bf16.msra.mxu0 %v2817
    %2838 = vmatprep.subr.bf16.mxu0 0
    %2839 = vmatpush2.bf16.msra.mxu0 0
    %2840 = vmatprep.subr.bf16.mxu0 0
    %2841 = vmatpush2.bf16.msra.mxu0 0
    %2842 = vmatprep.subr.bf16.mxu0 0
    %2843 = vmatpush2.bf16.msra.mxu0 0
    %2844 = vmatprep.subr.bf16.mxu0 0
    %2845 = vmatpush2.bf16.msra.mxu0 0
    %2846 = vmatprep.subr.bf16.mxu0 0
    %2847 = vmatpush2.bf16.msra.mxu0 0
    %2848 = vmatprep.subr.bf16.mxu0 0
    %2849 = vmatpush2.bf16.msra.mxu0 0
    %2850 = vmatprep.subr.bf16.mxu0 0
    %2851 = vmatpush2.bf16.msra.mxu0 0
    %2852 = vmatprep.subr.bf16.mxu0 0
    %2853 = vmatpush2.bf16.msra.mxu0 0
    %2854 = vmatprep.mubr.bf16.mxu0 0
    %2855 = vmatmul.mubr.bf16.gmra.mxu0 %v2820
    %v2856 = vpop.f32.mrf.mxu0
    %v2857 = vadd.f32 0.0, %v2856
    %v2858 = vpop.f32.mrf.mxu0
    %v2859 = vpop.f32.mrf.mxu0
    %v2860 = vadd.f32 0.0, %v2859
    %v2861 = vpop.f32.mrf.mxu0
    %2862 = vdwg.mxu0
    %2863 = vrot.lane.b32.xlu0 %v1966, 64
    %v2864 = vpop.permute.xlu0 %2863
    %v2867 = vsel %vm872, %v2553, 0
    %2869 = vmatprep.subr.bf16.mxu0 0
    %2870 = vmatpush1.bf16.msra.mxu0 0
    %2871 = vmatprep.subr.bf16.mxu0 0
    %2872 = vmatpush1.bf16.msra.mxu0 0
    %2873 = vmatprep.subr.bf16.mxu0 0
    %2874 = vmatpush1.bf16.msra.mxu0 0
    %2875 = vmatprep.subr.bf16.mxu0 0
    %2876 = vmatpush1.bf16.msra.mxu0 0
    %2877 = vmatprep.subr.bf16.mxu0 0
    %2878 = vmatpush1.bf16.msra.mxu0 0
    %2879 = vmatprep.subr.bf16.mxu0 0
    %2880 = vmatpush1.bf16.msra.mxu0 0
    %2881 = vmatprep.subr.bf16.mxu0 0
    %2882 = vmatpush1.bf16.msra.mxu0 0
    %2883 = vmatprep.subr.bf16.mxu0 0
    %2884 = vmatpush1.bf16.msra.mxu0 %v2864
    %2885 = vmatprep.subr.bf16.mxu0 0
    %2886 = vmatpush2.bf16.msra.mxu0 0
    %2887 = vmatprep.subr.bf16.mxu0 0
    %2888 = vmatpush2.bf16.msra.mxu0 0
    %2889 = vmatprep.subr.bf16.mxu0 0
    %2890 = vmatpush2.bf16.msra.mxu0 0
    %2891 = vmatprep.subr.bf16.mxu0 0
    %2892 = vmatpush2.bf16.msra.mxu0 0
    %2893 = vmatprep.subr.bf16.mxu0 0
    %2894 = vmatpush2.bf16.msra.mxu0 0
    %2895 = vmatprep.subr.bf16.mxu0 0
    %2896 = vmatpush2.bf16.msra.mxu0 0
    %2897 = vmatprep.subr.bf16.mxu0 0
    %2898 = vmatpush2.bf16.msra.mxu0 0
    %2899 = vmatprep.subr.bf16.mxu0 0
    %2900 = vmatpush2.bf16.msra.mxu0 0
    %2901 = vmatprep.mubr.bf16.mxu0 0
    %2902 = vmatmul.mubr.bf16.gmra.mxu0 %v2867
    %v2903 = vpop.f32.mrf.mxu0
    %v2904 = vadd.f32 0.0, %v2903
    %v2905 = vpop.f32.mrf.mxu0
    %v2906 = vpop.f32.mrf.mxu0
    %v2907 = vadd.f32 0.0, %v2906
    %v2908 = vpop.f32.mrf.mxu0
    %2909 = vdwg.mxu0
    %2910 = vrot.lane.b32.xlu0 %v1966, 32
    %v2911 = vpop.permute.xlu0 %2910
    %v2914 = vsel %vm872, %v2554, 0
    %2916 = vmatprep.subr.bf16.mxu0 0
    %2917 = vmatpush1.bf16.msra.mxu0 0
    %2918 = vmatprep.subr.bf16.mxu0 0
    %2919 = vmatpush1.bf16.msra.mxu0 0
    %2920 = vmatprep.subr.bf16.mxu0 0
    %2921 = vmatpush1.bf16.msra.mxu0 0
    %2922 = vmatprep.subr.bf16.mxu0 0
    %2923 = vmatpush1.bf16.msra.mxu0 0
    %2924 = vmatprep.subr.bf16.mxu0 0
    %2925 = vmatpush1.bf16.msra.mxu0 0
    %2926 = vmatprep.subr.bf16.mxu0 0
    %2927 = vmatpush1.bf16.msra.mxu0 0
    %2928 = vmatprep.subr.bf16.mxu0 0
    %2929 = vmatpush1.bf16.msra.mxu0 0
    %2930 = vmatprep.subr.bf16.mxu0 0
    %2931 = vmatpush1.bf16.msra.mxu0 %v2911
    %2932 = vmatprep.subr.bf16.mxu0 0
    %2933 = vmatpush2.bf16.msra.mxu0 0
    %2934 = vmatprep.subr.bf16.mxu0 0
    %2935 = vmatpush2.bf16.msra.mxu0 0
    %2936 = vmatprep.subr.bf16.mxu0 0
    %2937 = vmatpush2.bf16.msra.mxu0 0
    %2938 = vmatprep.subr.bf16.mxu0 0
    %2939 = vmatpush2.bf16.msra.mxu0 0
    %2940 = vmatprep.subr.bf16.mxu0 0
    %2941 = vmatpush2.bf16.msra.mxu0 0
    %2942 = vmatprep.subr.bf16.mxu0 0
    %2943 = vmatpush2.bf16.msra.mxu0 0
    %2944 = vmatprep.subr.bf16.mxu0 0
    %2945 = vmatpush2.bf16.msra.mxu0 0
    %2946 = vmatprep.subr.bf16.mxu0 0
    %2947 = vmatpush2.bf16.msra.mxu0 0
    %2948 = vmatprep.mubr.bf16.mxu0 0
    %2949 = vmatmul.mubr.bf16.gmra.mxu0 %v2914
    %v2950 = vpop.f32.mrf.mxu0
    %v2951 = vadd.f32 0.0, %v2950
    %v2952 = vpop.f32.mrf.mxu0
    %v2953 = vpop.f32.mrf.mxu0
    %v2954 = vadd.f32 0.0, %v2953
    %v2955 = vpop.f32.mrf.mxu0
    %2956 = vdwg.mxu0
    %2959 = vrot.lane.b32.xlu0 %v2857, 32
    %v2960 = vpop.permute.xlu0 %2959
    %2961 = vrot.lane.b32.xlu0 %v2860, 32
    %v2962 = vpop.permute.xlu0 %2961
    %2967 = vrot.lane.b32.xlu0 %v2904, 64
    %v2968 = vpop.permute.xlu0 %2967
    %2969 = vrot.lane.b32.xlu0 %v2907, 64
    %v2970 = vpop.permute.xlu0 %2969
    %2975 = vrot.lane.b32.xlu0 %v2951, 96
    %v2976 = vpop.permute.xlu0 %2975
    %2977 = vrot.lane.b32.xlu0 %v2954, 96
    %v2978 = vpop.permute.xlu0 %2977
    %v2981 = vsel %vm467, %v2809, %v2960
    %v2982 = vsel %vm467, %v2812, %v2962
    %v2983 = vsel %vm1269, %v2981, %v2968
    %v2984 = vsel %vm1269, %v2982, %v2970
    %v2985 = vsel %vm1272, %v2983, %v2976
    %v2986 = vsel %vm1272, %v2984, %v2978
    %v2987 = vld [vmem:[#allocation13] sm:$0xf]
    %v2988 = vld [vmem:[#allocation13 + $0x4] sm:$0xf]
    %v2989 = vld [vmem:[#allocation13 + $0x8] sm:$0xf]
    %v2990 = vld [vmem:[#allocation13 + $0xc] sm:$0xf]
    %v2991 = vld [vmem:[#allocation13 + $0x10] sm:$0xf]
    %v2992 = vld [vmem:[#allocation13 + $0x14] sm:$0xf]
    %v2993 = vld [vmem:[#allocation13 + $0x18] sm:$0xf]
    %v2994 = vld [vmem:[#allocation13 + $0x1c] sm:$0xf]
    %v2995 = vld [vmem:[#allocation13 + $0x20] sm:$0xf]
    %v2996 = vld [vmem:[#allocation13 + $0x24] sm:$0xf]
    %v2997 = vld [vmem:[#allocation13 + $0x28] sm:$0xf]
    %v2998 = vld [vmem:[#allocation13 + $0x2c] sm:$0xf]
    %v2999 = vld [vmem:[#allocation13 + $0x30] sm:$0xf]
    %v3000 = vld [vmem:[#allocation13 + $0x34] sm:$0xf]
    %v3001 = vld [vmem:[#allocation13 + $0x38] sm:$0xf]
    %v3002 = vld [vmem:[#allocation13 + $0x3c] sm:$0xf]
    %v3003 = vpack.c.bf16 %v2770, %v2769
    %v3004 = vpack.c.bf16 %v2986, %v2985
    %v3005 = vlaneseq
    %v3006 = vshrl.u32 %v3005, 7
    %v3007 = vsub.s32 7, %v3006
    %v3008 = vrot.slane %v170, %v3007
    %v3025 = vunpack.c.l.b16 %v2987
    %v3026 = vunpack.c.l.b16 %v2988
    %v3027 = vunpack.c.l.b16 %v2989
    %v3028 = vunpack.c.l.b16 %v2990
    %v3029 = vunpack.c.l.b16 %v2991
    %v3030 = vunpack.c.l.b16 %v2992
    %v3031 = vunpack.c.l.b16 %v2993
    %v3032 = vunpack.c.l.b16 %v2994
    %v3033 = vunpack.c.l.b16 %v2995
    %v3034 = vunpack.c.l.b16 %v2996
    %v3035 = vunpack.c.l.b16 %v2997
    %v3036 = vunpack.c.l.b16 %v2998
    %v3037 = vunpack.c.l.b16 %v2999
    %v3038 = vunpack.c.l.b16 %v3000
    %v3039 = vunpack.c.l.b16 %v3001
    %v3040 = vunpack.c.l.b16 %v3002
    %v3041 = vpack.c.b16 %v3026, %v3025
    %v3042 = vpack.c.b16 %v3028, %v3027
    %v3043 = vpack.c.b16 %v3030, %v3029
    %v3044 = vpack.c.b16 %v3032, %v3031
    %v3045 = vpack.c.b16 %v3034, %v3033
    %v3046 = vpack.c.b16 %v3036, %v3035
    %v3047 = vpack.c.b16 %v3038, %v3037
    %v3048 = vpack.c.b16 %v3040, %v3039
    %3057 = vmatprep.subr.bf16.mxu0 0
    %3058 = vmatpush1.bf16.msra.mxu0 %v3048
    %3059 = vmatprep.subr.bf16.mxu0 0
    %3060 = vmatpush1.bf16.msra.mxu0 %v3047
    %3061 = vmatprep.subr.bf16.mxu0 0
    %3062 = vmatpush1.bf16.msra.mxu0 %v3046
    %3063 = vmatprep.subr.bf16.mxu0 0
    %3064 = vmatpush1.bf16.msra.mxu0 %v3045
    %3065 = vmatprep.subr.bf16.mxu0 0
    %3066 = vmatpush1.bf16.msra.mxu0 %v3044
    %3067 = vmatprep.subr.bf16.mxu0 0
    %3068 = vmatpush1.bf16.msra.mxu0 %v3043
    %3069 = vmatprep.subr.bf16.mxu0 0
    %3070 = vmatpush1.bf16.msra.mxu0 %v3042
    %3071 = vmatprep.subr.bf16.mxu0 0
    %3072 = vmatpush1.bf16.msra.mxu0 %v3041
    %3073 = vmatprep.subr.bf16.mxu0 0
    %3074 = vmatpush2.bf16.msra.mxu0 0
    %3075 = vmatprep.subr.bf16.mxu0 0
    %3076 = vmatpush2.bf16.msra.mxu0 0
    %3077 = vmatprep.subr.bf16.mxu0 0
    %3078 = vmatpush2.bf16.msra.mxu0 0
    %3079 = vmatprep.subr.bf16.mxu0 0
    %3080 = vmatpush2.bf16.msra.mxu0 0
    %3081 = vmatprep.subr.bf16.mxu0 0
    %3082 = vmatpush2.bf16.msra.mxu0 0
    %3083 = vmatprep.subr.bf16.mxu0 0
    %3084 = vmatpush2.bf16.msra.mxu0 0
    %3085 = vmatprep.subr.bf16.mxu0 0
    %3086 = vmatpush2.bf16.msra.mxu0 0
    %3087 = vmatprep.subr.bf16.mxu0 0
    %3088 = vmatpush2.bf16.msra.mxu0 0
    %3089 = vmatprep.mubr.bf16.mxu0 0
    %3090 = vmatmul.mubr.bf16.gmra.mxu0 %v3003
    %v3091 = vpop.f32.mrf.mxu0
    %v3092 = vadd.f32 %v3008, %v3091
    %v3093 = vpop.f32.mrf.mxu0
    %v3094 = vpop.f32.mrf.mxu0
    %v3095 = vadd.f32 %v3008, %v3094
    %v3096 = vpop.f32.mrf.mxu0
    %3097 = vmatprep.mubr.bf16.mxu0 0
    %3098 = vmatmul.mubr.bf16.gmra.mxu0 %v3004
    %v3099 = vpop.f32.mrf.mxu0
    %v3100 = vadd.f32 %v3008, %v3099
    %v3101 = vpop.f32.mrf.mxu0
    %v3102 = vpop.f32.mrf.mxu0
    %v3103 = vadd.f32 %v3008, %v3102
    %v3104 = vpop.f32.mrf.mxu0
    %3105 = vdwg.mxu0
    %v3106 = vadd.f32 %v1671, %v3092
    %v3107 = vadd.f32 %v1672, %v3095
    %v3108 = vadd.f32 %v1673, %v3100
    %v3109 = vadd.f32 %v1674, %v3103
    %3110 = vadd.xlane.f32.xlu0 %v3106
    %v3111 = vpop.xlane.xlu0 %3110
    %3112 = vadd.xlane.f32.xlu0 %v3107
    %v3113 = vpop.xlane.xlu0 %3112
    %3114 = vadd.xlane.f32.xlu0 %v3108
    %v3115 = vpop.xlane.xlu0 %3114
    %3116 = vadd.xlane.f32.xlu0 %v3109
    %v3117 = vpop.xlane.xlu0 %3116
    %v3118 = vmul.f32 %v3111, %v1622
    %v3119 = vmul.f32 %v3113, %v1622
    %v3120 = vmul.f32 %v3115, %v1622
    %v3121 = vmul.f32 %v3117, %v1622
    %v3122 = vsub.f32 %v3106, %v3118
    %v3123 = vsub.f32 %v3107, %v3119
    %v3124 = vsub.f32 %v3108, %v3120
    %v3125 = vsub.f32 %v3109, %v3121
    %v3126 = vmul.f32 %v3122, %v3122
    %v3127 = vmul.f32 %v3123, %v3123
    %v3128 = vmul.f32 %v3124, %v3124
    %v3129 = vmul.f32 %v3125, %v3125
    %3130 = vadd.xlane.f32.xlu0 %v3126
    %v3131 = vpop.xlane.xlu0 %3130
    %3132 = vadd.xlane.f32.xlu0 %v3127
    %v3133 = vpop.xlane.xlu0 %3132
    %3134 = vadd.xlane.f32.xlu0 %v3128
    %v3135 = vpop.xlane.xlu0 %3134
    %3136 = vadd.xlane.f32.xlu0 %v3129
    %v3137 = vpop.xlane.xlu0 %3136
    %v3138 = vmul.f32 %v3131, %v1622
    %v3139 = vmul.f32 %v3133, %v1622
    %v3140 = vmul.f32 %v3135, %v1622
    %v3141 = vmul.f32 %v3137, %v1622
    %v3142 = vadd.f32 %v3138, 1e-05
    %v3143 = vadd.f32 %v3139, 1e-05
    %v3144 = vadd.f32 %v3140, 1e-05
    %v3145 = vadd.f32 %v3141, 1e-05
    %v3146 = vrsqrt.pop %v3142
    %v3147 = vrsqrt.pop %v3143
    %v3148 = vrsqrt.pop %v3144
    %v3149 = vrsqrt.pop %v3145
    %v3150 = vmul.f32 %v3122, %v3146
    %v3151 = vmul.f32 %v3123, %v3147
    %v3152 = vmul.f32 %v3124, %v3148
    %v3153 = vmul.f32 %v3125, %v3149
    %v3154 = vlaneseq
    %v3155 = vshrl.u32 %v3154, 7
    %v3156 = vsub.s32 3, %v3155
    %v3157 = vrot.slane %v171, %v3156
    %v3158 = vmul.f32 %v3150, %v3157
    %v3159 = vmul.f32 %v3151, %v3157
    %v3160 = vmul.f32 %v3152, %v3157
    %v3161 = vmul.f32 %v3153, %v3157
    %v3162 = vlaneseq
    %v3163 = vshrl.u32 %v3162, 7
    %v3164 = vsub.s32 4, %v3163
    %v3165 = vrot.slane %v171, %v3164
    %v3166 = vadd.f32 %v3158, %v3165
    %v3167 = vadd.f32 %v3159, %v3165
    %v3168 = vadd.f32 %v3160, %v3165
    %v3169 = vadd.f32 %v3161, %v3165
    %v3170 = vld [vmem:[#allocation14] sm:$0xff]
    %v3171 = vld [vmem:[#allocation14 + $0x8] sm:$0xff]
    %v3172 = vld [vmem:[#allocation14 + $0x10] sm:$0xff]
    %v3173 = vld [vmem:[#allocation14 + $0x18] sm:$0xff]
    %v3174 = vld [vmem:[#allocation14 + $0x20] sm:$0xff]
    %v3175 = vld [vmem:[#allocation14 + $0x28] sm:$0xff]
    %v3176 = vld [vmem:[#allocation14 + $0x30] sm:$0xff]
    %v3177 = vld [vmem:[#allocation14 + $0x38] sm:$0xff]
    %v3178 = vld [vmem:[#allocation14 + $0x40] sm:$0xff]
    %v3179 = vld [vmem:[#allocation14 + $0x48] sm:$0xff]
    %v3180 = vld [vmem:[#allocation14 + $0x50] sm:$0xff]
    %v3181 = vld [vmem:[#allocation14 + $0x58] sm:$0xff]
    %v3182 = vld [vmem:[#allocation14 + $0x60] sm:$0xff]
    %v3183 = vld [vmem:[#allocation14 + $0x68] sm:$0xff]
    %v3184 = vld [vmem:[#allocation14 + $0x70] sm:$0xff]
    %v3185 = vld [vmem:[#allocation14 + $0x78] sm:$0xff]
    %v3186 = vpack.c.bf16 %v3167, %v3166
    %v3187 = vpack.c.bf16 %v3169, %v3168
    %v3189 = vlaneseq
    %v3190 = vshrl.u32 %v3189, 7
    %v3191 = vsub.s32 0, %v3190
    %v3192 = vrot.slane %v172, %v3191
    %v3193 = vlaneseq
    %v3194 = vshrl.u32 %v3193, 7
    %v3195 = vsub.s32 1, %v3194
    %v3196 = vrot.slane %v172, %v3195
    %v3215 = vunpack.c.l.b16 %v3170
    %v3216 = vunpack.c.h.b16 %v3170
    %v3217 = vunpack.c.l.b16 %v3171
    %v3218 = vunpack.c.h.b16 %v3171
    %v3219 = vunpack.c.l.b16 %v3172
    %v3220 = vunpack.c.h.b16 %v3172
    %v3221 = vunpack.c.l.b16 %v3173
    %v3222 = vunpack.c.h.b16 %v3173
    %v3223 = vunpack.c.l.b16 %v3174
    %v3224 = vunpack.c.h.b16 %v3174
    %v3225 = vunpack.c.l.b16 %v3175
    %v3226 = vunpack.c.h.b16 %v3175
    %v3227 = vunpack.c.l.b16 %v3176
    %v3228 = vunpack.c.h.b16 %v3176
    %v3229 = vunpack.c.l.b16 %v3177
    %v3230 = vunpack.c.h.b16 %v3177
    %v3231 = vunpack.c.l.b16 %v3178
    %v3232 = vunpack.c.h.b16 %v3178
    %v3233 = vunpack.c.l.b16 %v3179
    %v3234 = vunpack.c.h.b16 %v3179
    %v3235 = vunpack.c.l.b16 %v3180
    %v3236 = vunpack.c.h.b16 %v3180
    %v3237 = vunpack.c.l.b16 %v3181
    %v3238 = vunpack.c.h.b16 %v3181
    %v3239 = vunpack.c.l.b16 %v3182
    %v3240 = vunpack.c.h.b16 %v3182
    %v3241 = vunpack.c.l.b16 %v3183
    %v3242 = vunpack.c.h.b16 %v3183
    %v3243 = vunpack.c.l.b16 %v3184
    %v3244 = vunpack.c.h.b16 %v3184
    %v3245 = vunpack.c.l.b16 %v3185
    %v3246 = vunpack.c.h.b16 %v3185
    %v3247 = vpack.c.b16 %v3217, %v3215
    %v3248 = vpack.c.b16 %v3218, %v3216
    %v3249 = vpack.c.b16 %v3221, %v3219
    %v3250 = vpack.c.b16 %v3222, %v3220
    %v3251 = vpack.c.b16 %v3225, %v3223
    %v3252 = vpack.c.b16 %v3226, %v3224
    %v3253 = vpack.c.b16 %v3229, %v3227
    %v3254 = vpack.c.b16 %v3230, %v3228
    %v3255 = vpack.c.b16 %v3233, %v3231
    %v3256 = vpack.c.b16 %v3234, %v3232
    %v3257 = vpack.c.b16 %v3237, %v3235
    %v3258 = vpack.c.b16 %v3238, %v3236
    %v3259 = vpack.c.b16 %v3241, %v3239
    %v3260 = vpack.c.b16 %v3242, %v3240
    %v3261 = vpack.c.b16 %v3245, %v3243
    %v3262 = vpack.c.b16 %v3246, %v3244
    %3279 = vmatprep.subr.bf16.mxu0 %v3262
    %3280 = vmatpush1.bf16.msra.mxu0 %v3261
    %3281 = vmatprep.subr.bf16.mxu0 %v3260
    %3282 = vmatpush1.bf16.msra.mxu0 %v3259
    %3283 = vmatprep.subr.bf16.mxu0 %v3258
    %3284 = vmatpush1.bf16.msra.mxu0 %v3257
    %3285 = vmatprep.subr.bf16.mxu0 %v3256
    %3286 = vmatpush1.bf16.msra.mxu0 %v3255
    %3287 = vmatprep.subr.bf16.mxu0 %v3254
    %3288 = vmatpush1.bf16.msra.mxu0 %v3253
    %3289 = vmatprep.subr.bf16.mxu0 %v3252
    %3290 = vmatpush1.bf16.msra.mxu0 %v3251
    %3291 = vmatprep.subr.bf16.mxu0 %v3250
    %3292 = vmatpush1.bf16.msra.mxu0 %v3249
    %3293 = vmatprep.subr.bf16.mxu0 %v3248
    %3294 = vmatpush1.bf16.msra.mxu0 %v3247
    %3295 = vmatprep.subr.bf16.mxu0 0
    %3296 = vmatpush2.bf16.msra.mxu0 0
    %3297 = vmatprep.subr.bf16.mxu0 0
    %3298 = vmatpush2.bf16.msra.mxu0 0
    %3299 = vmatprep.subr.bf16.mxu0 0
    %3300 = vmatpush2.bf16.msra.mxu0 0
    %3301 = vmatprep.subr.bf16.mxu0 0
    %3302 = vmatpush2.bf16.msra.mxu0 0
    %3303 = vmatprep.subr.bf16.mxu0 0
    %3304 = vmatpush2.bf16.msra.mxu0 0
    %3305 = vmatprep.subr.bf16.mxu0 0
    %3306 = vmatpush2.bf16.msra.mxu0 0
    %3307 = vmatprep.subr.bf16.mxu0 0
    %3308 = vmatpush2.bf16.msra.mxu0 0
    %3309 = vmatprep.subr.bf16.mxu0 0
    %3310 = vmatpush2.bf16.msra.mxu0 0
    %3311 = vmatprep.mubr.bf16.mxu0 0
    %3312 = vmatmul.mubr.bf16.gmra.mxu0 %v3186
    %v3313 = vpop.f32.mrf.mxu0
    %v3314 = vadd.f32 %v3192, %v3313
    %v3315 = vpop.f32.mrf.mxu0
    %v3316 = vadd.f32 %v3196, %v3315
    %v3317 = vpop.f32.mrf.mxu0
    %v3318 = vadd.f32 %v3192, %v3317
    %v3319 = vpop.f32.mrf.mxu0
    %v3320 = vadd.f32 %v3196, %v3319
    %3321 = vmatprep.mubr.bf16.mxu0 0
    %3322 = vmatmul.mubr.bf16.gmra.mxu0 %v3187
    %v3323 = vpop.f32.mrf.mxu0
    %v3324 = vadd.f32 %v3192, %v3323
    %v3325 = vpop.f32.mrf.mxu0
    %v3326 = vadd.f32 %v3196, %v3325
    %v3327 = vpop.f32.mrf.mxu0
    %v3328 = vadd.f32 %v3192, %v3327
    %v3329 = vpop.f32.mrf.mxu0
    %v3330 = vadd.f32 %v3196, %v3329
    %3331 = vdwg.mxu0
    %v3332 = vmax.f32 %v3314, 0.0
    %v3333 = vmax.f32 %v3316, 0.0
    %v3334 = vmax.f32 %v3318, 0.0
    %v3335 = vmax.f32 %v3320, 0.0
    %v3336 = vmax.f32 %v3324, 0.0
    %v3337 = vmax.f32 %v3326, 0.0
    %v3338 = vmax.f32 %v3328, 0.0
    %v3339 = vmax.f32 %v3330, 0.0
    %v3340 = vld [vmem:[#allocation16] sm:$0xf]
    %v3341 = vld [vmem:[#allocation16 + $0x4] sm:$0xf]
    %v3342 = vld [vmem:[#allocation16 + $0x8] sm:$0xf]
    %v3343 = vld [vmem:[#allocation16 + $0xc] sm:$0xf]
    %v3344 = vld [vmem:[#allocation16 + $0x10] sm:$0xf]
    %v3345 = vld [vmem:[#allocation16 + $0x14] sm:$0xf]
    %v3346 = vld [vmem:[#allocation16 + $0x18] sm:$0xf]
    %v3347 = vld [vmem:[#allocation16 + $0x1c] sm:$0xf]
    %v3348 = vld [vmem:[#allocation16 + $0x20] sm:$0xf]
    %v3349 = vld [vmem:[#allocation16 + $0x24] sm:$0xf]
    %v3350 = vld [vmem:[#allocation16 + $0x28] sm:$0xf]
    %v3351 = vld [vmem:[#allocation16 + $0x2c] sm:$0xf]
    %v3352 = vld [vmem:[#allocation16 + $0x30] sm:$0xf]
    %v3353 = vld [vmem:[#allocation16 + $0x34] sm:$0xf]
    %v3354 = vld [vmem:[#allocation16 + $0x38] sm:$0xf]
    %v3355 = vld [vmem:[#allocation16 + $0x3c] sm:$0xf]
    %v3356 = vld [vmem:[#allocation16 + $0x40] sm:$0xf]
    %v3357 = vld [vmem:[#allocation16 + $0x44] sm:$0xf]
    %v3358 = vld [vmem:[#allocation16 + $0x48] sm:$0xf]
    %v3359 = vld [vmem:[#allocation16 + $0x4c] sm:$0xf]
    %v3360 = vld [vmem:[#allocation16 + $0x50] sm:$0xf]
    %v3361 = vld [vmem:[#allocation16 + $0x54] sm:$0xf]
    %v3362 = vld [vmem:[#allocation16 + $0x58] sm:$0xf]
    %v3363 = vld [vmem:[#allocation16 + $0x5c] sm:$0xf]
    %v3364 = vld [vmem:[#allocation16 + $0x60] sm:$0xf]
    %v3365 = vld [vmem:[#allocation16 + $0x64] sm:$0xf]
    %v3366 = vld [vmem:[#allocation16 + $0x68] sm:$0xf]
    %v3367 = vld [vmem:[#allocation16 + $0x6c] sm:$0xf]
    %v3368 = vld [vmem:[#allocation16 + $0x70] sm:$0xf]
    %v3369 = vld [vmem:[#allocation16 + $0x74] sm:$0xf]
    %v3370 = vld [vmem:[#allocation16 + $0x78] sm:$0xf]
    %v3371 = vld [vmem:[#allocation16 + $0x7c] sm:$0xf]
    %v3372 = vpack.c.bf16 %v3334, %v3332
    %v3373 = vpack.c.bf16 %v3335, %v3333
    %v3374 = vpack.c.bf16 %v3338, %v3336
    %v3375 = vpack.c.bf16 %v3339, %v3337
    %v3376 = vlaneseq
    %v3377 = vshrl.u32 %v3376, 7
    %v3378 = vsub.s32 0, %v3377
    %v3379 = vrot.slane %v171, %v3378
    %v3412 = vunpack.c.l.b16 %v3340
    %v3413 = vunpack.c.l.b16 %v3341
    %v3414 = vunpack.c.l.b16 %v3342
    %v3415 = vunpack.c.l.b16 %v3343
    %v3416 = vunpack.c.l.b16 %v3344
    %v3417 = vunpack.c.l.b16 %v3345
    %v3418 = vunpack.c.l.b16 %v3346
    %v3419 = vunpack.c.l.b16 %v3347
    %v3420 = vunpack.c.l.b16 %v3348
    %v3421 = vunpack.c.l.b16 %v3349
    %v3422 = vunpack.c.l.b16 %v3350
    %v3423 = vunpack.c.l.b16 %v3351
    %v3424 = vunpack.c.l.b16 %v3352
    %v3425 = vunpack.c.l.b16 %v3353
    %v3426 = vunpack.c.l.b16 %v3354
    %v3427 = vunpack.c.l.b16 %v3355
    %v3428 = vunpack.c.l.b16 %v3356
    %v3429 = vunpack.c.l.b16 %v3357
    %v3430 = vunpack.c.l.b16 %v3358
    %v3431 = vunpack.c.l.b16 %v3359
    %v3432 = vunpack.c.l.b16 %v3360
    %v3433 = vunpack.c.l.b16 %v3361
    %v3434 = vunpack.c.l.b16 %v3362
    %v3435 = vunpack.c.l.b16 %v3363
    %v3436 = vunpack.c.l.b16 %v3364
    %v3437 = vunpack.c.l.b16 %v3365
    %v3438 = vunpack.c.l.b16 %v3366
    %v3439 = vunpack.c.l.b16 %v3367
    %v3440 = vunpack.c.l.b16 %v3368
    %v3441 = vunpack.c.l.b16 %v3369
    %v3442 = vunpack.c.l.b16 %v3370
    %v3443 = vunpack.c.l.b16 %v3371
    %v3444 = vpack.c.b16 %v3413, %v3412
    %v3445 = vpack.c.b16 %v3415, %v3414
    %v3446 = vpack.c.b16 %v3417, %v3416
    %v3447 = vpack.c.b16 %v3419, %v3418
    %v3448 = vpack.c.b16 %v3421, %v3420
    %v3449 = vpack.c.b16 %v3423, %v3422
    %v3450 = vpack.c.b16 %v3425, %v3424
    %v3451 = vpack.c.b16 %v3427, %v3426
    %v3452 = vpack.c.b16 %v3429, %v3428
    %v3453 = vpack.c.b16 %v3431, %v3430
    %v3454 = vpack.c.b16 %v3433, %v3432
    %v3455 = vpack.c.b16 %v3435, %v3434
    %v3456 = vpack.c.b16 %v3437, %v3436
    %v3457 = vpack.c.b16 %v3439, %v3438
    %v3458 = vpack.c.b16 %v3441, %v3440
    %v3459 = vpack.c.b16 %v3443, %v3442
    %3476 = vmatprep.subr.bf16.mxu0 0
    %3477 = vmatpush1.bf16.msra.mxu0 %v3451
    %3478 = vmatprep.subr.bf16.mxu0 0
    %3479 = vmatpush1.bf16.msra.mxu0 %v3450
    %3480 = vmatprep.subr.bf16.mxu0 0
    %3481 = vmatpush1.bf16.msra.mxu0 %v3449
    %3482 = vmatprep.subr.bf16.mxu0 0
    %3483 = vmatpush1.bf16.msra.mxu0 %v3448
    %3484 = vmatprep.subr.bf16.mxu0 0
    %3485 = vmatpush1.bf16.msra.mxu0 %v3447
    %3486 = vmatprep.subr.bf16.mxu0 0
    %3487 = vmatpush1.bf16.msra.mxu0 %v3446
    %3488 = vmatprep.subr.bf16.mxu0 0
    %3489 = vmatpush1.bf16.msra.mxu0 %v3445
    %3490 = vmatprep.subr.bf16.mxu0 0
    %3491 = vmatpush1.bf16.msra.mxu0 %v3444
    %3492 = vmatprep.subr.bf16.mxu0 0
    %3493 = vmatpush2.bf16.msra.mxu0 %v3459
    %3494 = vmatprep.subr.bf16.mxu0 0
    %3495 = vmatpush2.bf16.msra.mxu0 %v3458
    %3496 = vmatprep.subr.bf16.mxu0 0
    %3497 = vmatpush2.bf16.msra.mxu0 %v3457
    %3498 = vmatprep.subr.bf16.mxu0 0
    %3499 = vmatpush2.bf16.msra.mxu0 %v3456
    %3500 = vmatprep.subr.bf16.mxu0 0
    %3501 = vmatpush2.bf16.msra.mxu0 %v3455
    %3502 = vmatprep.subr.bf16.mxu0 0
    %3503 = vmatpush2.bf16.msra.mxu0 %v3454
    %3504 = vmatprep.subr.bf16.mxu0 0
    %3505 = vmatpush2.bf16.msra.mxu0 %v3453
    %3506 = vmatprep.subr.bf16.mxu0 0
    %3507 = vmatpush2.bf16.msra.mxu0 %v3452
    %3508 = vmatprep.mubr.bf16.mxu0 %v3373
    %3509 = vmatmul.mubr.bf16.gmra.mxu0 %v3372
    %v3510 = vpop.f32.mrf.mxu0
    %v3511 = vadd.f32 %v3379, %v3510
    %v3512 = vpop.f32.mrf.mxu0
    %v3513 = vpop.f32.mrf.mxu0
    %v3514 = vadd.f32 %v3379, %v3513
    %v3515 = vpop.f32.mrf.mxu0
    %3516 = vmatprep.mubr.bf16.mxu0 %v3375
    %3517 = vmatmul.mubr.bf16.gmra.mxu0 %v3374
    %v3518 = vpop.f32.mrf.mxu0
    %v3519 = vadd.f32 %v3379, %v3518
    %v3520 = vpop.f32.mrf.mxu0
    %v3521 = vpop.f32.mrf.mxu0
    %v3522 = vadd.f32 %v3379, %v3521
    %v3523 = vpop.f32.mrf.mxu0
    %3524 = vdwg.mxu0
    %v3525 = vadd.f32 %v3166, %v3511
    %v3526 = vadd.f32 %v3167, %v3514
    %v3527 = vadd.f32 %v3168, %v3519
    %v3528 = vadd.f32 %v3169, %v3522
    %3529 = vadd.xlane.f32.xlu0 %v3525
    %v3530 = vpop.xlane.xlu0 %3529
    %3531 = vadd.xlane.f32.xlu0 %v3526
    %v3532 = vpop.xlane.xlu0 %3531
    %3533 = vadd.xlane.f32.xlu0 %v3527
    %v3534 = vpop.xlane.xlu0 %3533
    %3535 = vadd.xlane.f32.xlu0 %v3528
    %v3536 = vpop.xlane.xlu0 %3535
    %v3537 = vmul.f32 %v3530, %v1622
    %v3538 = vmul.f32 %v3532, %v1622
    %v3539 = vmul.f32 %v3534, %v1622
    %v3540 = vmul.f32 %v3536, %v1622
    %v3541 = vsub.f32 %v3525, %v3537
    %v3542 = vsub.f32 %v3526, %v3538
    %v3543 = vsub.f32 %v3527, %v3539
    %v3544 = vsub.f32 %v3528, %v3540
    %v3545 = vmul.f32 %v3541, %v3541
    %v3546 = vmul.f32 %v3542, %v3542
    %v3547 = vmul.f32 %v3543, %v3543
    %v3548 = vmul.f32 %v3544, %v3544
    %3549 = vadd.xlane.f32.xlu0 %v3545
    %v3550 = vpop.xlane.xlu0 %3549
    %3551 = vadd.xlane.f32.xlu0 %v3546
    %v3552 = vpop.xlane.xlu0 %3551
    %3553 = vadd.xlane.f32.xlu0 %v3547
    %v3554 = vpop.xlane.xlu0 %3553
    %3555 = vadd.xlane.f32.xlu0 %v3548
    %v3556 = vpop.xlane.xlu0 %3555
    %v3557 = vmul.f32 %v3550, %v1622
    %v3558 = vmul.f32 %v3552, %v1622
    %v3559 = vmul.f32 %v3554, %v1622
    %v3560 = vmul.f32 %v3556, %v1622
    %v3561 = vadd.f32 %v3557, 1e-05
    %v3562 = vadd.f32 %v3558, 1e-05
    %v3563 = vadd.f32 %v3559, 1e-05
    %v3564 = vadd.f32 %v3560, 1e-05
    %v3565 = vrsqrt.pop %v3561
    %v3566 = vrsqrt.pop %v3562
    %v3567 = vrsqrt.pop %v3563
    %v3568 = vrsqrt.pop %v3564
    %v3569 = vmul.f32 %v3541, %v3565
    %v3570 = vmul.f32 %v3542, %v3566
    %v3571 = vmul.f32 %v3543, %v3567
    %v3572 = vmul.f32 %v3544, %v3568
    %v3573 = vlaneseq
    %v3574 = vshrl.u32 %v3573, 7
    %v3575 = vsub.s32 5, %v3574
    %v3576 = vrot.slane %v171, %v3575
    %v3577 = vmul.f32 %v3569, %v3576
    %v3578 = vmul.f32 %v3570, %v3576
    %v3579 = vmul.f32 %v3571, %v3576
    %v3580 = vmul.f32 %v3572, %v3576
    %v3581 = vlaneseq
    %v3582 = vshrl.u32 %v3581, 7
    %v3583 = vsub.s32 6, %v3582
    %v3584 = vrot.slane %v171, %v3583
    %v3585 = vadd.f32 %v3577, %v3584
    %v3586 = vadd.f32 %v3578, %v3584
    %v3587 = vadd.f32 %v3579, %v3584
    %v3588 = vadd.f32 %v3580, %v3584
    %3589 = vst [vmem:[#allocation17] sm:$0xff] %v3585
    %3590 = vst [vmem:[#allocation17 + $0x8] sm:$0xff] %v3586
    %3591 = vst [vmem:[#allocation17 + $0x10] sm:$0xff] %v3587
    %3592 = vst [vmem:[#allocation17 + $0x18] sm:$0xff] %v3588
    // Predicated region
    $region82: #{tpu_custom_call.1} parent=1 // pred_check
      _
    $region83: #{tpu_custom_call.1} parent=1 // pred_check_branch
      %3594 = sbr.rel (0) target = $region85
    $region84: #{tpu_custom_call.1} parent=1 // pred_region
      %s3596 = ssub.s32 512, 512
      %3597 = vsyncadd [#allocation4], %s3596
      %s3598 = sshll.u32 [#allocation17], 4
      %s3599 = int_to_ptr.vmem [resolvable:$true] %s3598
      %3604 = dma.vmem_to_hbm [thread:$0]  %s3599, 512, %s11, [#allocation4], 128, 128, 8
    $region85: #{tpu_custom_call.1} parent=1 // pred_fallthru
      _
    // Predicated region
    $region86: #{tpu_custom_call.1} parent=1 // pred_check
      _
    $region87: #{tpu_custom_call.1} parent=1 // pred_check_branch
      %3606 = sbr.rel (0) target = $region89
    $region88: #{tpu_custom_call.1} parent=1 // pred_region
      %3607 = dma.done [#allocation4], 512
    $region89: #{tpu_custom_call.1} parent=1 // pred_fallthru
      _
    %3608 = vsyncpa [#allocation3], 1
    %3609 = vsyncpa [#allocation6], 1
    %3610 = vsyncpa [#allocation9], 1
    %3611 = vsyncpa [#allocation12], 1
    %3612 = vsyncpa [#allocation15], 1
    %3613 = vsyncpa [#allocation4], 1

</llo_original>
